<compile_context>
chip_gen: v7x
topology: tpu7x:2x2x1
jax: 0.10.0
libtpu: 0.0.40
codegen_flags: <defaults>
</compile_context>

<pallas_src>
import functools

import jax
import jax.numpy as jnp
import numpy as np
from jax.experimental import pallas as pl
from jax.experimental.pallas import tpu as pltpu


# ---------------------------------------------------------------------------
# model config (matches Net(vocab_size=128, embedding_size=200), hidden=256)
# ---------------------------------------------------------------------------
VOCAB = 128
EMBED = 200          # logical embedding size (PyTorch default arg)
EMBED_PAD = 256      # zero-padded to 2x128 lanes for clean MXU / DMA
HIDDEN = 256
BATCH = 16           # T*B = 128 rows -> full MXU M dim; B multiple of 8
SEQ = 8

assert EMBED_PAD == HIDDEN  # the layer-input scratch is reused across layers


def _sigmoid(x):
    # tanh-route sigmoid: one EUP op + VPU mul/add, no VPU divide.
    # Used identically in kernel and reference.
    return 0.5 * jnp.tanh(0.5 * x) + 0.5


# ---------------------------------------------------------------------------
# fused network kernel: one QRNN layer per grid step (+ FC on the last step)
# ---------------------------------------------------------------------------
def net_kernel(tok_ref, emb_ref, w_ref, b_ref, fcw_ref, fcb_ref,
               out_ref,
               x_ref, h_ref, iz_ref, f_ref, o_ref,
               *, batch, seq, hidden, vocab):
    B, T, H, V = batch, seq, hidden, vocab
    TB = T * B
    C = x_ref.shape[1] // 2          # per-tap channels (== EMBED_PAD == HIDDEN)
    layer = pl.program_id(0)
    last = pl.num_programs(0) - 1

    def write_layer_input(x_f32):
        # x_ref row r = t*B + b holds [x_t | x_{t-1}] (x_{-1} = 0), cast bf16
        # as one full aligned slab (row/col concat boundaries are 8/128-tile
        # aligned in f32).
        x_prev = jnp.concatenate(
            [jnp.zeros((B, C), jnp.float32), x_f32[:TB - B, :]], axis=0)
        x_ref[...] = jnp.concatenate([x_f32, x_prev], axis=1).astype(x_ref.dtype)

    # --- step 0: fused embedding gather (exact one-hot matmul), time-major.
    @pl.when(layer == 0)
    def _():
        tok = tok_ref[...]                                        # (TB, 1) i32
        ids = jax.lax.broadcasted_iota(jnp.int32, (TB, V), 1)
        onehot = jnp.where(tok == ids, 1.0, 0.0).astype(jnp.bfloat16)
        x_emb = jnp.dot(onehot, emb_ref[...],
                        preferred_element_type=jnp.float32)       # (TB, C)
        write_layer_input(x_emb)

    # --- causal width-2 conv as ONE K=2C matmul (both taps merged along K);
    # gate nonlinearities applied in the epilogue; only activated slabs stored.
    gates = (jnp.dot(x_ref[...], w_ref[0],
                     preferred_element_type=jnp.float32)
             + b_ref[0])                                          # (TB, 4H) f32
    z = jnp.tanh(gates[:, 0:H])
    i = _sigmoid(gates[:, 3 * H:4 * H])
    iz_ref[...] = i * z
    f_ref[...] = _sigmoid(gates[:, H:2 * H])
    o_ref[...] = _sigmoid(gates[:, 2 * H:3 * H])

    # --- fo-pool recurrence, fully unrolled (T static): the serial chain is
    # just c = f*c + i*z ; h = o*c on (B, H) f32 tiles (sublane aligned).
    c = jnp.zeros((B, H), jnp.float32)
    for t in range(T):
        r = pl.ds(t * B, B)
        c = f_ref[r, :] * c + iz_ref[r, :]
        h_ref[r, :] = o_ref[r, :] * c

    # --- epilogue: feed the next layer, or final Linear(H -> vocab).
    h = h_ref[...]

    @pl.when(layer < last)
    def _():
        write_layer_input(h)

    @pl.when(layer == last)
    def _():
        out_ref[...] = (jnp.dot(h.astype(jnp.bfloat16), fcw_ref[...],
                                preferred_element_type=jnp.float32)
                        + fcb_ref[...]).astype(out_ref.dtype)


def net_forward(tokens, params):
    B, T = tokens.shape
    TB = T * B
    V = params["fc_w"].shape[1]
    n_layers = params["w"].shape[0]

    # time-major token ids: row t*B + b (tiny int32 transpose; the heavy
    # embedding gather / activation transpose happens inside the kernel)
    tok_tb = jnp.transpose(tokens, (1, 0)).reshape(TB, 1).astype(jnp.int32)

    def full(a):
        nd = a.ndim
        return pl.BlockSpec(a.shape, lambda l, _nd=nd: (0,) * _nd)

    w_spec = pl.BlockSpec((1, 2 * EMBED_PAD, 4 * HIDDEN), lambda l: (l, 0, 0))
    b_spec = pl.BlockSpec((1, 1, 4 * HIDDEN), lambda l: (l, 0, 0))

    cost = pl.CostEstimate(
        flops=int(2 * TB * (2 * EMBED_PAD) * (4 * HIDDEN) * n_layers
                  + 2 * TB * V * EMBED_PAD + 2 * TB * HIDDEN * V),
        transcendentals=int(n_layers * TB * 4 * HIDDEN),
        bytes_accessed=int(sum(int(a.size) * a.dtype.itemsize for a in
                               (tok_tb, params["emb"], params["w"], params["b"],
                                params["fc_w"], params["fc_b"]))
                           + TB * V * 4),
    )

    kernel = functools.partial(net_kernel, batch=B, seq=T, hidden=HIDDEN,
                               vocab=V)
    logits2d = pl.pallas_call(
        kernel,
        out_shape=jax.ShapeDtypeStruct((TB, V), jnp.float32),
        grid=(n_layers,),                     # one QRNN layer per grid step
        in_specs=[full(tok_tb), full(params["emb"]),
                  w_spec, b_spec,
                  full(params["fc_w"]), full(params["fc_b"])],
        out_specs=pl.BlockSpec((TB, V), lambda l: (0, 0)),
        scratch_shapes=[
            pltpu.VMEM((TB, 2 * EMBED_PAD), jnp.bfloat16),   # [x_t | x_{t-1}]
            pltpu.VMEM((TB, HIDDEN), jnp.float32),           # h
            pltpu.VMEM((TB, HIDDEN), jnp.float32),           # i*z
            pltpu.VMEM((TB, HIDDEN), jnp.float32),           # f
            pltpu.VMEM((TB, HIDDEN), jnp.float32),           # o
        ],
        compiler_params=pltpu.CompilerParams(
            dimension_semantics=("arbitrary",)),
        cost_estimate=cost,
    )(tok_tb, params["emb"], params["w"], params["b"],
      params["fc_w"], params["fc_b"])

    # TODO(synk): a v7x 2-TensorCore split of H would need a cross-core h
    # exchange between layers (the next layer contracts over the full H), so
    # it is not implemented here.
    return jnp.transpose(logits2d.reshape(T, B, V), (1, 0, 2))     # (B, T, V)


# ---------------------------------------------------------------------------
# Pure-JAX reference (same math / same bf16 quantization points)
# ---------------------------------------------------------------------------
def _qrnn_layer_ref(x_bf16, w, b):
    # x_bf16: (T, B, C) bf16; w: (2C, 4H) bf16 ([W_cur ; W_prev]); b: (1, 4H)
    T, B, C = x_bf16.shape
    H = w.shape[1] // 4
    x_prev = jnp.concatenate(
        [jnp.zeros((1, B, C), x_bf16.dtype), x_bf16[:-1]], axis=0)
    x_cat = jnp.concatenate([x_bf16, x_prev], axis=-1)              # (T, B, 2C)
    gates = jnp.einsum("tbc,cg->tbg", x_cat, w,
                       preferred_element_type=jnp.float32) + b[0]
    Z = jnp.tanh(gates[..., 0:H])
    F = _sigmoid(gates[..., H:2 * H])
    O = _sigmoid(gates[..., 2 * H:3 * H])
    I = _sigmoid(gates[..., 3 * H:4 * H])
    c = jnp.zeros((B, H), jnp.float32)
    hs = []
    for t in range(T):
        c = F[t] * c + I[t] * Z[t]
        hs.append(O[t] * c)
    return jnp.stack(hs, axis=0)                                    # (T,B,H) f32


def net_ref(tokens, params):
    emb = jnp.take(params["emb"], tokens, axis=0)                   # (B,T,C) bf16
    h = jnp.transpose(emb, (1, 0, 2))
    for l in range(params["w"].shape[0]):
        h = _qrnn_layer_ref(h.astype(jnp.bfloat16),
                            params["w"][l], params["b"][l])
    logits = (jnp.einsum("tbh,hv->tbv", h.astype(jnp.bfloat16), params["fc_w"],
                         preferred_element_type=jnp.float32)
              + params["fc_b"][0])
    return jnp.transpose(logits, (1, 0, 2))


# ---------------------------------------------------------------------------
# deterministic parameter init (shapes from Net.__init__), bf16 weights,
# channel dims zero-padded 200 -> 256, taps merged along K: [W_cur ; W_prev]
# ---------------------------------------------------------------------------
def init_params(key):
    keys = jax.random.split(key, 6)
    emb = jax.random.normal(keys[0], (VOCAB, EMBED), jnp.float32)
    emb = jnp.pad(emb, ((0, 0), (0, EMBED_PAD - EMBED))).astype(jnp.bfloat16)

    ws, bs = [], []
    in_sizes = [EMBED, HIDDEN, HIDDEN]
    for li, cin in enumerate(in_sizes):
        scale = 1.0 / np.sqrt(2.0 * cin)       # PyTorch Conv1d default bound
        k0, k1, kb = jax.random.split(keys[1 + li], 3)
        w_cur = jax.random.uniform(k1, (cin, 4 * HIDDEN), jnp.float32, -scale, scale)
        w_prev = jax.random.uniform(k0, (cin, 4 * HIDDEN), jnp.float32, -scale, scale)
        w = jnp.zeros((2 * EMBED_PAD, 4 * HIDDEN), jnp.float32)
        w = w.at[0:cin].set(w_cur).at[EMBED_PAD:EMBED_PAD + cin].set(w_prev)
        ws.append(w)
        bs.append(jax.random.uniform(kb, (1, 4 * HIDDEN), jnp.float32, -scale, scale))

    params = {
        "emb": emb,
        "w": jnp.stack(ws).astype(jnp.bfloat16),        # (3, 512, 1024) bf16
        "b": jnp.stack(bs),                             # (3, 1, 1024)  f32
    }
    fscale = 1.0 / np.sqrt(HIDDEN)
    params["fc_w"] = jax.random.uniform(keys[4], (HIDDEN, VOCAB), jnp.float32,
                                        -fscale, fscale).astype(jnp.bfloat16)
    params["fc_b"] = jax.random.uniform(keys[5], (1, VOCAB), jnp.float32,
                                        -fscale, fscale)
    return params


if __name__ == "__main__":
    key = jax.random.PRNGKey(0)
    pkey, tkey = jax.random.split(key)
    params = init_params(pkey)
    tokens = jax.random.randint(tkey, (BATCH, SEQ), 0, VOCAB, dtype=jnp.int32)

    fwd = jax.jit(net_forward)
    out = jax.block_until_ready(fwd(tokens, params))
    assert out.shape == (BATCH, SEQ, VOCAB), out.shape

    ref = jax.block_until_ready(net_ref(tokens, params))
    np.testing.assert_allclose(np.asarray(out), np.asarray(ref),
                               rtol=3e-3, atol=3e-3)
    print("KERNEL_OK")
</pallas_src>

<mosaic_0001>
module attributes {stable_mosaic.version = 11 : i64} {
  func.func @net_kernel(%arg0: i32, %arg1: memref<128x1xi32, #tpu.memory_space<vmem>>, %arg2: memref<128x256xbf16, #tpu.memory_space<vmem>>, %arg3: memref<1x512x1024xbf16, #tpu.memory_space<vmem>>, %arg4: memref<1x1x1024xf32, #tpu.memory_space<vmem>>, %arg5: memref<256x128xbf16, #tpu.memory_space<vmem>>, %arg6: memref<1x128xf32, #tpu.memory_space<vmem>>, %arg7: memref<128x128xf32, #tpu.memory_space<vmem>>, %arg8: memref<128x512xbf16, #tpu.memory_space<vmem>>, %arg9: memref<128x256xf32, #tpu.memory_space<vmem>>, %arg10: memref<128x256xf32, #tpu.memory_space<vmem>>, %arg11: memref<128x256xf32, #tpu.memory_space<vmem>>, %arg12: memref<128x256xf32, #tpu.memory_space<vmem>>) attributes {dimension_semantics = [#tpu.dimension_semantics<arbitrary>], iteration_bounds = array<i64: 3>, scalar_prefetch = 0 : i64, scratch_operands = 5 : i64, tpu.core_type = #tpu.core_type<tc>, window_params = [{pipeline_mode = #tpu.pipeline_mode<synchronous>, transform_indices = @transform_0, window_bounds = array<i64: 128, 1>}, {pipeline_mode = #tpu.pipeline_mode<synchronous>, transform_indices = @transform_1, window_bounds = array<i64: 128, 256>}, {transform_indices = @transform_2, window_bounds = array<i64: 1, 512, 1024>}, {transform_indices = @transform_3, window_bounds = array<i64: 1, 1, 1024>}, {pipeline_mode = #tpu.pipeline_mode<synchronous>, transform_indices = @transform_4, window_bounds = array<i64: 256, 128>}, {pipeline_mode = #tpu.pipeline_mode<synchronous>, transform_indices = @transform_5, window_bounds = array<i64: 1, 128>}, {pipeline_mode = #tpu.pipeline_mode<synchronous>, transform_indices = @transform_6, window_bounds = array<i64: 128, 128>}]} {
    %c0_i32 = arith.constant 0 : i32
    %0 = arith.cmpi eq, %arg0, %c0_i32 : i32
    %1 = arith.extui %0 : i1 to i32
    %c0_i32_0 = arith.constant 0 : i32
    %2 = arith.cmpi ne, %1, %c0_i32_0 : i32
    scf.if %2 {
      %c0_86 = arith.constant 0 : index
      %c0_87 = arith.constant 0 : index
      %105 = vector.load %arg1[%c0_86, %c0_87] : memref<128x1xi32, #tpu.memory_space<vmem>>, vector<128x1xi32>
      %106 = tpu.iota {dimensions = array<i32: 1>} : vector<128x128xi32>
      %107 = vector.broadcast %105 : vector<128x1xi32> to vector<128x128xi32>
      %108 = arith.cmpi eq, %107, %106 : vector<128x128xi32>
      %cst_88 = arith.constant 1.000000e+00 : f32
      %cst_89 = arith.constant 0.000000e+00 : f32
      %109 = vector.broadcast %cst_88 : f32 to vector<128x128xf32>
      %110 = vector.broadcast %cst_89 : f32 to vector<128x128xf32>
      %111 = arith.select %108, %109, %110 : vector<128x128xi1>, vector<128x128xf32>
      %112 = arith.truncf %111 : vector<128x128xf32> to vector<128x128xbf16>
      %c0_90 = arith.constant 0 : index
      %c0_91 = arith.constant 0 : index
      %113 = vector.load %arg2[%c0_90, %c0_91] : memref<128x256xbf16, #tpu.memory_space<vmem>>, vector<128x256xbf16>
      %cst_92 = arith.constant dense<0.000000e+00> : vector<128x256xf32>
      %114 = tpu.matmul %112, %113, %cst_92 {dimension_numbers = #tpu.dot_dimension_numbers<[1], [0], [0], [1], [0, 0, 1, 1], [], []>} : vector<128x128xbf16>, vector<128x256xbf16>, vector<128x256xf32> -> vector<128x256xf32>
      %cst_93 = arith.constant 0.000000e+00 : f32
      %115 = vector.broadcast %cst_93 : f32 to vector<16x256xf32>
      %116 = vector.extract_strided_slice %114 {offsets = [0, 0], sizes = [112, 256], strides = [1, 1]} : vector<128x256xf32> to vector<112x256xf32>
      %117 = tpu.concatenate %115, %116 in 0 : vector<16x256xf32>, vector<112x256xf32> -> vector<128x256xf32>
      %118 = tpu.concatenate %114, %117 in 1 : vector<128x256xf32>, vector<128x256xf32> -> vector<128x512xf32>
      %119 = arith.truncf %118 : vector<128x512xf32> to vector<128x512xbf16>
      %c0_94 = arith.constant 0 : index
      %c0_95 = arith.constant 0 : index
      %120 = vector.load %arg8[%c0_94, %c0_95] : memref<128x512xbf16, #tpu.memory_space<vmem>>, vector<128x512xbf16>
      tpu.vector_store %arg8[%c0_94, %c0_95], %119 {strides = array<i32>} : memref<128x512xbf16, #tpu.memory_space<vmem>>, vector<128x512xbf16>,
    } else {
    }
    %c0 = arith.constant 0 : index
    %c0_1 = arith.constant 0 : index
    %3 = vector.load %arg8[%c0, %c0_1] : memref<128x512xbf16, #tpu.memory_space<vmem>>, vector<128x512xbf16>
    %c0_2 = arith.constant 0 : index
    %c0_3 = arith.constant 0 : index
    %c0_4 = arith.constant 0 : index
    %4 = vector.load %arg3[%c0_2, %c0_3, %c0_4] : memref<1x512x1024xbf16, #tpu.memory_space<vmem>>, vector<1x512x1024xbf16>
    %5 = vector.shape_cast %4 : vector<1x512x1024xbf16> to vector<512x1024xbf16>
    %cst = arith.constant dense<0.000000e+00> : vector<128x1024xf32>
    %6 = tpu.matmul %3, %5, %cst {dimension_numbers = #tpu.dot_dimension_numbers<[1], [0], [0], [1], [0, 0, 1, 1], [], []>} : vector<128x512xbf16>, vector<512x1024xbf16>, vector<128x1024xf32> -> vector<128x1024xf32>
    %c0_5 = arith.constant 0 : index
    %c0_6 = arith.constant 0 : index
    %c0_7 = arith.constant 0 : index
    %7 = vector.load %arg4[%c0_5, %c0_6, %c0_7] : memref<1x1x1024xf32, #tpu.memory_space<vmem>>, vector<1x1x1024xf32>
    %8 = vector.shape_cast %7 : vector<1x1x1024xf32> to vector<1x1024xf32>
    %9 = vector.broadcast %8 : vector<1x1024xf32> to vector<128x1024xf32>
    %10 = arith.addf %6, %9 : vector<128x1024xf32>
    %11 = vector.extract_strided_slice %10 {offsets = [0, 0], sizes = [128, 256], strides = [1, 1]} : vector<128x1024xf32> to vector<128x256xf32>
    %12 = math.tanh %11 : vector<128x256xf32>
    %13 = vector.extract_strided_slice %10 {offsets = [0, 768], sizes = [128, 256], strides = [1, 1]} : vector<128x1024xf32> to vector<128x256xf32>
    %cst_8 = arith.constant 5.000000e-01 : f32
    %14 = vector.broadcast %cst_8 : f32 to vector<128x256xf32>
    %15 = arith.mulf %14, %13 : vector<128x256xf32>
    %16 = math.tanh %15 : vector<128x256xf32>
    %cst_9 = arith.constant 5.000000e-01 : f32
    %17 = vector.broadcast %cst_9 : f32 to vector<128x256xf32>
    %18 = arith.mulf %17, %16 : vector<128x256xf32>
    %cst_10 = arith.constant 5.000000e-01 : f32
    %19 = vector.broadcast %cst_10 : f32 to vector<128x256xf32>
    %20 = arith.addf %18, %19 : vector<128x256xf32>
    %21 = arith.mulf %20, %12 : vector<128x256xf32>
    %c0_11 = arith.constant 0 : index
    %c0_12 = arith.constant 0 : index
    %22 = vector.load %arg10[%c0_11, %c0_12] : memref<128x256xf32, #tpu.memory_space<vmem>>, vector<128x256xf32>
    tpu.vector_store %arg10[%c0_11, %c0_12], %21 {strides = array<i32>} : memref<128x256xf32, #tpu.memory_space<vmem>>, vector<128x256xf32>,
    %23 = vector.extract_strided_slice %10 {offsets = [0, 256], sizes = [128, 256], strides = [1, 1]} : vector<128x1024xf32> to vector<128x256xf32>
    %cst_13 = arith.constant 5.000000e-01 : f32
    %24 = vector.broadcast %cst_13 : f32 to vector<128x256xf32>
    %25 = arith.mulf %24, %23 : vector<128x256xf32>
    %26 = math.tanh %25 : vector<128x256xf32>
    %cst_14 = arith.constant 5.000000e-01 : f32
    %27 = vector.broadcast %cst_14 : f32 to vector<128x256xf32>
    %28 = arith.mulf %27, %26 : vector<128x256xf32>
    %cst_15 = arith.constant 5.000000e-01 : f32
    %29 = vector.broadcast %cst_15 : f32 to vector<128x256xf32>
    %30 = arith.addf %28, %29 : vector<128x256xf32>
    %c0_16 = arith.constant 0 : index
    %c0_17 = arith.constant 0 : index
    %31 = vector.load %arg11[%c0_16, %c0_17] : memref<128x256xf32, #tpu.memory_space<vmem>>, vector<128x256xf32>
    tpu.vector_store %arg11[%c0_16, %c0_17], %30 {strides = array<i32>} : memref<128x256xf32, #tpu.memory_space<vmem>>, vector<128x256xf32>,
    %32 = vector.extract_strided_slice %10 {offsets = [0, 512], sizes = [128, 256], strides = [1, 1]} : vector<128x1024xf32> to vector<128x256xf32>
    %cst_18 = arith.constant 5.000000e-01 : f32
    %33 = vector.broadcast %cst_18 : f32 to vector<128x256xf32>
    %34 = arith.mulf %33, %32 : vector<128x256xf32>
    %35 = math.tanh %34 : vector<128x256xf32>
    %cst_19 = arith.constant 5.000000e-01 : f32
    %36 = vector.broadcast %cst_19 : f32 to vector<128x256xf32>
    %37 = arith.mulf %36, %35 : vector<128x256xf32>
    %cst_20 = arith.constant 5.000000e-01 : f32
    %38 = vector.broadcast %cst_20 : f32 to vector<128x256xf32>
    %39 = arith.addf %37, %38 : vector<128x256xf32>
    %c0_21 = arith.constant 0 : index
    %c0_22 = arith.constant 0 : index
    %40 = vector.load %arg12[%c0_21, %c0_22] : memref<128x256xf32, #tpu.memory_space<vmem>>, vector<128x256xf32>
    tpu.vector_store %arg12[%c0_21, %c0_22], %39 {strides = array<i32>} : memref<128x256xf32, #tpu.memory_space<vmem>>, vector<128x256xf32>,
    %cst_23 = arith.constant 0.000000e+00 : f32
    %41 = vector.broadcast %cst_23 : f32 to vector<16x256xf32>
    %c0_24 = arith.constant 0 : index
    %c0_25 = arith.constant 0 : index
    %42 = vector.load %arg11[%c0_24, %c0_25] : memref<128x256xf32, #tpu.memory_space<vmem>>, vector<16x256xf32>
    %43 = arith.mulf %42, %41 : vector<16x256xf32>
    %c0_26 = arith.constant 0 : index
    %c0_27 = arith.constant 0 : index
    %44 = vector.load %arg10[%c0_26, %c0_27] : memref<128x256xf32, #tpu.memory_space<vmem>>, vector<16x256xf32>
    %45 = arith.addf %43, %44 : vector<16x256xf32>
    %c0_28 = arith.constant 0 : index
    %c0_29 = arith.constant 0 : index
    %46 = vector.load %arg12[%c0_28, %c0_29] : memref<128x256xf32, #tpu.memory_space<vmem>>, vector<16x256xf32>
    %47 = arith.mulf %46, %45 : vector<16x256xf32>
    %c0_30 = arith.constant 0 : index
    %c0_31 = arith.constant 0 : index
    %48 = vector.load %arg9[%c0_30, %c0_31] : memref<128x256xf32, #tpu.memory_space<vmem>>, vector<16x256xf32>
    tpu.vector_store %arg9[%c0_30, %c0_31], %47 {strides = array<i32>} : memref<128x256xf32, #tpu.memory_space<vmem>>, vector<16x256xf32>,
    %c16 = arith.constant 16 : index
    %c0_32 = arith.constant 0 : index
    %49 = vector.load %arg11[%c16, %c0_32] : memref<128x256xf32, #tpu.memory_space<vmem>>, vector<16x256xf32>
    %50 = arith.mulf %49, %45 : vector<16x256xf32>
    %c16_33 = arith.constant 16 : index
    %c0_34 = arith.constant 0 : index
    %51 = vector.load %arg10[%c16_33, %c0_34] : memref<128x256xf32, #tpu.memory_space<vmem>>, vector<16x256xf32>
    %52 = arith.addf %50, %51 : vector<16x256xf32>
    %c16_35 = arith.constant 16 : index
    %c0_36 = arith.constant 0 : index
    %53 = vector.load %arg12[%c16_35, %c0_36] : memref<128x256xf32, #tpu.memory_space<vmem>>, vector<16x256xf32>
    %54 = arith.mulf %53, %52 : vector<16x256xf32>
    %c16_37 = arith.constant 16 : index
    %c0_38 = arith.constant 0 : index
    %55 = vector.load %arg9[%c16_37, %c0_38] : memref<128x256xf32, #tpu.memory_space<vmem>>, vector<16x256xf32>
    tpu.vector_store %arg9[%c16_37, %c0_38], %54 {strides = array<i32>} : memref<128x256xf32, #tpu.memory_space<vmem>>, vector<16x256xf32>,
    %c32 = arith.constant 32 : index
    %c0_39 = arith.constant 0 : index
    %56 = vector.load %arg11[%c32, %c0_39] : memref<128x256xf32, #tpu.memory_space<vmem>>, vector<16x256xf32>
    %57 = arith.mulf %56, %52 : vector<16x256xf32>
    %c32_40 = arith.constant 32 : index
    %c0_41 = arith.constant 0 : index
    %58 = vector.load %arg10[%c32_40, %c0_41] : memref<128x256xf32, #tpu.memory_space<vmem>>, vector<16x256xf32>
    %59 = arith.addf %57, %58 : vector<16x256xf32>
    %c32_42 = arith.constant 32 : index
    %c0_43 = arith.constant 0 : index
    %60 = vector.load %arg12[%c32_42, %c0_43] : memref<128x256xf32, #tpu.memory_space<vmem>>, vector<16x256xf32>
    %61 = arith.mulf %60, %59 : vector<16x256xf32>
    %c32_44 = arith.constant 32 : index
    %c0_45 = arith.constant 0 : index
    %62 = vector.load %arg9[%c32_44, %c0_45] : memref<128x256xf32, #tpu.memory_space<vmem>>, vector<16x256xf32>
    tpu.vector_store %arg9[%c32_44, %c0_45], %61 {strides = array<i32>} : memref<128x256xf32, #tpu.memory_space<vmem>>, vector<16x256xf32>,
    %c48 = arith.constant 48 : index
    %c0_46 = arith.constant 0 : index
    %63 = vector.load %arg11[%c48, %c0_46] : memref<128x256xf32, #tpu.memory_space<vmem>>, vector<16x256xf32>
    %64 = arith.mulf %63, %59 : vector<16x256xf32>
    %c48_47 = arith.constant 48 : index
    %c0_48 = arith.constant 0 : index
    %65 = vector.load %arg10[%c48_47, %c0_48] : memref<128x256xf32, #tpu.memory_space<vmem>>, vector<16x256xf32>
    %66 = arith.addf %64, %65 : vector<16x256xf32>
    %c48_49 = arith.constant 48 : index
    %c0_50 = arith.constant 0 : index
    %67 = vector.load %arg12[%c48_49, %c0_50] : memref<128x256xf32, #tpu.memory_space<vmem>>, vector<16x256xf32>
    %68 = arith.mulf %67, %66 : vector<16x256xf32>
    %c48_51 = arith.constant 48 : index
    %c0_52 = arith.constant 0 : index
    %69 = vector.load %arg9[%c48_51, %c0_52] : memref<128x256xf32, #tpu.memory_space<vmem>>, vector<16x256xf32>
    tpu.vector_store %arg9[%c48_51, %c0_52], %68 {strides = array<i32>} : memref<128x256xf32, #tpu.memory_space<vmem>>, vector<16x256xf32>,
    %c64 = arith.constant 64 : index
    %c0_53 = arith.constant 0 : index
    %70 = vector.load %arg11[%c64, %c0_53] : memref<128x256xf32, #tpu.memory_space<vmem>>, vector<16x256xf32>
    %71 = arith.mulf %70, %66 : vector<16x256xf32>
    %c64_54 = arith.constant 64 : index
    %c0_55 = arith.constant 0 : index
    %72 = vector.load %arg10[%c64_54, %c0_55] : memref<128x256xf32, #tpu.memory_space<vmem>>, vector<16x256xf32>
    %73 = arith.addf %71, %72 : vector<16x256xf32>
    %c64_56 = arith.constant 64 : index
    %c0_57 = arith.constant 0 : index
    %74 = vector.load %arg12[%c64_56, %c0_57] : memref<128x256xf32, #tpu.memory_space<vmem>>, vector<16x256xf32>
    %75 = arith.mulf %74, %73 : vector<16x256xf32>
    %c64_58 = arith.constant 64 : index
    %c0_59 = arith.constant 0 : index
    %76 = vector.load %arg9[%c64_58, %c0_59] : memref<128x256xf32, #tpu.memory_space<vmem>>, vector<16x256xf32>
    tpu.vector_store %arg9[%c64_58, %c0_59], %75 {strides = array<i32>} : memref<128x256xf32, #tpu.memory_space<vmem>>, vector<16x256xf32>,
    %c80 = arith.constant 80 : index
    %c0_60 = arith.constant 0 : index
    %77 = vector.load %arg11[%c80, %c0_60] : memref<128x256xf32, #tpu.memory_space<vmem>>, vector<16x256xf32>
    %78 = arith.mulf %77, %73 : vector<16x256xf32>
    %c80_61 = arith.constant 80 : index
    %c0_62 = arith.constant 0 : index
    %79 = vector.load %arg10[%c80_61, %c0_62] : memref<128x256xf32, #tpu.memory_space<vmem>>, vector<16x256xf32>
    %80 = arith.addf %78, %79 : vector<16x256xf32>
    %c80_63 = arith.constant 80 : index
    %c0_64 = arith.constant 0 : index
    %81 = vector.load %arg12[%c80_63, %c0_64] : memref<128x256xf32, #tpu.memory_space<vmem>>, vector<16x256xf32>
    %82 = arith.mulf %81, %80 : vector<16x256xf32>
    %c80_65 = arith.constant 80 : index
    %c0_66 = arith.constant 0 : index
    %83 = vector.load %arg9[%c80_65, %c0_66] : memref<128x256xf32, #tpu.memory_space<vmem>>, vector<16x256xf32>
    tpu.vector_store %arg9[%c80_65, %c0_66], %82 {strides = array<i32>} : memref<128x256xf32, #tpu.memory_space<vmem>>, vector<16x256xf32>,
    %c96 = arith.constant 96 : index
    %c0_67 = arith.constant 0 : index
    %84 = vector.load %arg11[%c96, %c0_67] : memref<128x256xf32, #tpu.memory_space<vmem>>, vector<16x256xf32>
    %85 = arith.mulf %84, %80 : vector<16x256xf32>
    %c96_68 = arith.constant 96 : index
    %c0_69 = arith.constant 0 : index
    %86 = vector.load %arg10[%c96_68, %c0_69] : memref<128x256xf32, #tpu.memory_space<vmem>>, vector<16x256xf32>
    %87 = arith.addf %85, %86 : vector<16x256xf32>
    %c96_70 = arith.constant 96 : index
    %c0_71 = arith.constant 0 : index
    %88 = vector.load %arg12[%c96_70, %c0_71] : memref<128x256xf32, #tpu.memory_space<vmem>>, vector<16x256xf32>
    %89 = arith.mulf %88, %87 : vector<16x256xf32>
    %c96_72 = arith.constant 96 : index
    %c0_73 = arith.constant 0 : index
    %90 = vector.load %arg9[%c96_72, %c0_73] : memref<128x256xf32, #tpu.memory_space<vmem>>, vector<16x256xf32>
    tpu.vector_store %arg9[%c96_72, %c0_73], %89 {strides = array<i32>} : memref<128x256xf32, #tpu.memory_space<vmem>>, vector<16x256xf32>,
    %c112 = arith.constant 112 : index
    %c0_74 = arith.constant 0 : index
    %91 = vector.load %arg11[%c112, %c0_74] : memref<128x256xf32, #tpu.memory_space<vmem>>, vector<16x256xf32>
    %92 = arith.mulf %91, %87 : vector<16x256xf32>
    %c112_75 = arith.constant 112 : index
    %c0_76 = arith.constant 0 : index
    %93 = vector.load %arg10[%c112_75, %c0_76] : memref<128x256xf32, #tpu.memory_space<vmem>>, vector<16x256xf32>
    %94 = arith.addf %92, %93 : vector<16x256xf32>
    %c112_77 = arith.constant 112 : index
    %c0_78 = arith.constant 0 : index
    %95 = vector.load %arg12[%c112_77, %c0_78] : memref<128x256xf32, #tpu.memory_space<vmem>>, vector<16x256xf32>
    %96 = arith.mulf %95, %94 : vector<16x256xf32>
    %c112_79 = arith.constant 112 : index
    %c0_80 = arith.constant 0 : index
    %97 = vector.load %arg9[%c112_79, %c0_80] : memref<128x256xf32, #tpu.memory_space<vmem>>, vector<16x256xf32>
    tpu.vector_store %arg9[%c112_79, %c0_80], %96 {strides = array<i32>} : memref<128x256xf32, #tpu.memory_space<vmem>>, vector<16x256xf32>,
    %c0_81 = arith.constant 0 : index
    %c0_82 = arith.constant 0 : index
    %98 = vector.load %arg9[%c0_81, %c0_82] : memref<128x256xf32, #tpu.memory_space<vmem>>, vector<128x256xf32>
    %c2_i32 = arith.constant 2 : i32
    %99 = arith.cmpi slt, %arg0, %c2_i32 : i32
    %100 = arith.extui %99 : i1 to i32
    %c0_i32_83 = arith.constant 0 : i32
    %101 = arith.cmpi ne, %100, %c0_i32_83 : i32
    scf.if %101 {
      %cst_86 = arith.constant 0.000000e+00 : f32
      %105 = vector.broadcast %cst_86 : f32 to vector<16x256xf32>
      %106 = vector.extract_strided_slice %98 {offsets = [0, 0], sizes = [112, 256], strides = [1, 1]} : vector<128x256xf32> to vector<112x256xf32>
      %107 = tpu.concatenate %105, %106 in 0 : vector<16x256xf32>, vector<112x256xf32> -> vector<128x256xf32>
      %108 = tpu.concatenate %98, %107 in 1 : vector<128x256xf32>, vector<128x256xf32> -> vector<128x512xf32>
      %109 = arith.truncf %108 : vector<128x512xf32> to vector<128x512xbf16>
      %c0_87 = arith.constant 0 : index
      %c0_88 = arith.constant 0 : index
      %110 = vector.load %arg8[%c0_87, %c0_88] : memref<128x512xbf16, #tpu.memory_space<vmem>>, vector<128x512xbf16>
      tpu.vector_store %arg8[%c0_87, %c0_88], %109 {strides = array<i32>} : memref<128x512xbf16, #tpu.memory_space<vmem>>, vector<128x512xbf16>,
    } else {
    }
    %c2_i32_84 = arith.constant 2 : i32
    %102 = arith.cmpi eq, %arg0, %c2_i32_84 : i32
    %103 = arith.extui %102 : i1 to i32
    %c0_i32_85 = arith.constant 0 : i32
    %104 = arith.cmpi ne, %103, %c0_i32_85 : i32
    scf.if %104 {
      %105 = arith.truncf %98 : vector<128x256xf32> to vector<128x256xbf16>
      %c0_86 = arith.constant 0 : index
      %c0_87 = arith.constant 0 : index
      %106 = vector.load %arg5[%c0_86, %c0_87] : memref<256x128xbf16, #tpu.memory_space<vmem>>, vector<256x128xbf16>
      %cst_88 = arith.constant dense<0.000000e+00> : vector<128x128xf32>
      %107 = tpu.matmul %105, %106, %cst_88 {dimension_numbers = #tpu.dot_dimension_numbers<[1], [0], [0], [1], [0, 0, 1, 1], [], []>} : vector<128x256xbf16>, vector<256x128xbf16>, vector<128x128xf32> -> vector<128x128xf32>
      %c0_89 = arith.constant 0 : index
      %c0_90 = arith.constant 0 : index
      %108 = vector.load %arg6[%c0_89, %c0_90] : memref<1x128xf32, #tpu.memory_space<vmem>>, vector<1x128xf32>
      %109 = vector.broadcast %108 : vector<1x128xf32> to vector<128x128xf32>
      %110 = arith.addf %107, %109 : vector<128x128xf32>
      %c0_91 = arith.constant 0 : index
      %c0_92 = arith.constant 0 : index
      %111 = vector.load %arg7[%c0_91, %c0_92] : memref<128x128xf32, #tpu.memory_space<vmem>>, vector<128x128xf32>
      tpu.vector_store %arg7[%c0_91, %c0_92], %110 {strides = array<i32>} : memref<128x128xf32, #tpu.memory_space<vmem>>, vector<128x128xf32>,
    } else {
    }
    return
  }
  func.func @transform_0(%arg0: i32) -> (i32, i32) {
    %c0_i32 = arith.constant 0 : i32
    %c0_i32_0 = arith.constant 0 : i32
    %c0_i32_1 = arith.constant 0 : i32
    return %c0_i32, %c0_i32_0 : i32, i32
  }
  func.func @transform_1(%arg0: i32) -> (i32, i32) {
    %c0_i32 = arith.constant 0 : i32
    %c0_i32_0 = arith.constant 0 : i32
    %c0_i32_1 = arith.constant 0 : i32
    return %c0_i32, %c0_i32_0 : i32, i32
  }
  func.func @transform_2(%arg0: i32) -> (i32, i32, i32) {
    %c0_i32 = arith.constant 0 : i32
    %c0_i32_0 = arith.constant 0 : i32
    %c0_i32_1 = arith.constant 0 : i32
    return %arg0, %c0_i32, %c0_i32_0 : i32, i32, i32
  }
  func.func @transform_3(%arg0: i32) -> (i32, i32, i32) {
    %c0_i32 = arith.constant 0 : i32
    %c0_i32_0 = arith.constant 0 : i32
    %c0_i32_1 = arith.constant 0 : i32
    return %arg0, %c0_i32, %c0_i32_0 : i32, i32, i32
  }
  func.func @transform_4(%arg0: i32) -> (i32, i32) {
    %c0_i32 = arith.constant 0 : i32
    %c0_i32_0 = arith.constant 0 : i32
    %c0_i32_1 = arith.constant 0 : i32
    return %c0_i32, %c0_i32_0 : i32, i32
  }
  func.func @transform_5(%arg0: i32) -> (i32, i32) {
    %c0_i32 = arith.constant 0 : i32
    %c0_i32_0 = arith.constant 0 : i32
    %c0_i32_1 = arith.constant 0 : i32
    return %c0_i32, %c0_i32_0 : i32, i32
  }
  func.func @transform_6(%arg0: i32) -> (i32, i32) {
    %c0_i32 = arith.constant 0 : i32
    %c0_i32_0 = arith.constant 0 : i32
    %c0_i32_1 = arith.constant 0 : i32
    return %c0_i32, %c0_i32_0 : i32, i32
  }
}

</mosaic_0001>

<llo_original>
// kernel: net_forward.1
$region0: #{net_forward.1}
  #allocation0 [shape = 'u32[]', space=smem, size = 0x4, offset = 0x4, fixed_abs, tag = 'smem constant byte address 0x4 - core index']
  #allocation1 [shape = 'u32[144,128]{1,0:T(1,128)}', space=vmem, size = 0x12000, scoped, tag = 'internal scratch']
  #allocation2 [shape = 'bf16[128,512]{1,0:T(16,128)(2,1)}', space=vmem, size = 0x20000, scoped, tag = 'scratch operand']
  #allocation3 [shape = 'f32[128,256]{1,0:T(8,128)}', space=vmem, size = 0x20000, scoped, tag = 'scratch operand']
  #allocation4 [shape = 'f32[128,256]{1,0:T(8,128)}', space=vmem, size = 0x20000, scoped, tag = 'scratch operand']
  #allocation5 [shape = 'f32[128,256]{1,0:T(8,128)}', space=vmem, size = 0x20000, scoped, tag = 'scratch operand']
  #allocation6 [shape = 'f32[128,256]{1,0:T(8,128)}', space=vmem, size = 0x20000, scoped, tag = 'scratch operand']
  %s0 = inlined_call_operand.vmem [shape: s32[128,1], index: 0, kind: input, shape index: {}]
  %s1 = inlined_call_operand.hbm [shape: bf16[128,256], index: 1, kind: input, shape index: {}]
  %s2 = inlined_call_operand.hbm [shape: bf16[3,512,1024], index: 2, kind: input, shape index: {}]
  %s3 = inlined_call_operand.hbm [shape: f32[3,1,1024], index: 3, kind: input, shape index: {}]
  %s4 = inlined_call_operand.hbm [shape: bf16[256,128], index: 4, kind: input, shape index: {}]
  %s5 = inlined_call_operand.hbm [shape: f32[1,128], index: 5, kind: input, shape index: {}]
  %s6 = inlined_call_operand.vmem [shape: f32[128,128], index: 6, kind: output, shape index: {}]
  %s7 = sld [smem:[#allocation0]]
  $region89: #{net_forward.1} parent=0
    _
  %s9 = ssub.s32 1, %s7
  %s10 = scalar_select 0, %s9, %s7
  $region1: #{net_forward.1} parent=0
    #allocation7 [shape = 'u8[65536]{0}', space=vmem, size = 0x10000, scoped, tag = 'input window, operand 1, single buffered']
    #allocation8 [shape = 's32[2]{0}', space=sflag, size = 0x8, scoped, tag = 'scoped memory for net_forward.1']
    #allocation9 [shape = 'u8[2097152]{0}', space=vmem, size = 0x200000, scoped, tag = 'input window, operand 2']
    #allocation10 [shape = 's32[2]{0}', space=sflag, size = 0x8, scoped, tag = 'scoped memory for net_forward.1']
    #allocation11 [shape = 'u8[8192]{0}', space=vmem, size = 0x2000, scoped, tag = 'input window, operand 3']
    #allocation12 [shape = 'u8[65536]{0}', space=vmem, size = 0x10000, scoped, tag = 'input window, operand 4, single buffered']
    #allocation13 [shape = 's32[1]{0}', space=sflag, size = 0x4, scoped, tag = 'scoped memory for net_forward.1']
    #allocation14 [shape = 'u8[512]{0}', space=vmem, size = 0x400, scoped, tag = 'input window, operand 5, single buffered']
    %11 = vsyncpa [#allocation8], 0
    %12 = vsyncpa [#allocation10], 0
    %s13 = scalar_lea.sflag [#allocation10], 1
    %14 = vsyncpa %s13, 0
    %15 = vsyncpa [#allocation13], 0
    loop: start=0, step=1, limit=5
    $region2: #{net_forward.1} parent=1 // loop_pre_header
      _
    $region3: #{net_forward.1} parent=1 // loop_header
      %s17 = sphi 0, %s21
      %p18 = scmp.ge.s32.totalorder %s17, 5
      %s25 = sphi 0, %s25
      %s27 = sphi 0, %s25
      %s28 = sphi 0, %s27
      %s42 = sphi 0, %s28
      %s46 = sphi 0, %s46
      %s48 = sphi 0, %s46
      %s49 = sphi 0, %s48
      %s63 = sphi 0, %s49
      %s69 = sphi 0, %s71
      %s72 = sphi 0, %s69
      %s73 = sphi 0, %s72
      %s89 = sphi 0, %s73
      %s95 = sphi 0, %s97
      %s98 = sphi 0, %s95
      %s99 = sphi 0, %s98
      %s115 = sphi 0, %s99
      %s119 = sphi 0, %s119
      %s121 = sphi 0, %s119
      %s122 = sphi 0, %s121
      %s136 = sphi 0, %s122
      %s140 = sphi 0, %s140
      %s142 = sphi 0, %s140
      %s143 = sphi 0, %s142
      %s157 = sphi 0, %s143
      %s161 = sphi 0, %s161
      %s163 = sphi 0, %s161
      %s164 = sphi 0, %s163
      %s178 = sphi 0, %s164
    $region4: #{net_forward.1} parent=1 // loop_header_branch
      %20 = sbr.rel (%p18) target = $region8
    $region5: #{net_forward.1} parent=1 // loop_body
      %s22 = ssub.s32 %s17, 1
      %s23 = ssub.s32 %s17, 2
      %s24 = sadd.s32 %s17, 1
      %s26 = sadd.s32 %s25, 1
      %p29 = scmp.eq.s32.totalorder %s17, 2
      %p30 = scmp.ne.s32.totalorder %s25, %s27
      %p31 = scmp.eq.s32.totalorder %s17, 0
      %p32 = por %p30, %p31
      %p33 = scmp.ne.s32.totalorder %s25, %s27
      %p34 = scmp.eq.s32.totalorder %s22, 2
      %p35 = por %p33, %p34
      %p36 = scmp.ne.s32.totalorder %s27, %s28
      %p37 = scmp.eq.s32.totalorder %s22, 0
      %p38 = por %p36, %p37
      %p39 = scmp.ne.s32.totalorder %s27, %s28
      %p40 = scmp.eq.s32.totalorder %s23, 2
      %p41 = por %p39, %p40
      %p43 = scmp.ne.s32.totalorder %s28, %s42
      %p44 = scmp.eq.s32.totalorder %s23, 0
      %p45 = por %p43, %p44
      %s47 = sadd.s32 %s46, 1
      %p50 = scmp.eq.s32.totalorder %s17, 2
      %p51 = scmp.ne.s32.totalorder %s46, %s48
      %p52 = scmp.eq.s32.totalorder %s17, 0
      %p53 = por %p51, %p52
      %p54 = scmp.ne.s32.totalorder %s46, %s48
      %p55 = scmp.eq.s32.totalorder %s22, 2
      %p56 = por %p54, %p55
      %p57 = scmp.ne.s32.totalorder %s48, %s49
      %p58 = scmp.eq.s32.totalorder %s22, 0
      %p59 = por %p57, %p58
      %p60 = scmp.ne.s32.totalorder %s48, %s49
      %p61 = scmp.eq.s32.totalorder %s23, 2
      %p62 = por %p60, %p61
      %p64 = scmp.ne.s32.totalorder %s49, %s63
      %p65 = scmp.eq.s32.totalorder %s23, 0
      %p66 = por %p64, %p65
      %s67 = ssub.s32 %s17, %s24
      %p68 = scmp.eq.s32.totalorder %s67, 0
      %s70 = sadd.s32 %s69, 1
      %s71 = scalar_select %p68, %s69, %s70
      %p74 = pneg %p68
      %p75 = scmp.eq.s32.totalorder %s17, 2
      %p76 = por %p74, %p75
      %p77 = scmp.ne.s32.totalorder %s69, %s72
      %p78 = scmp.eq.s32.totalorder %s17, 0
      %p79 = por %p77, %p78
      %p80 = scmp.ne.s32.totalorder %s69, %s72
      %p81 = scmp.eq.s32.totalorder %s22, 2
      %p82 = por %p80, %p81
      %p83 = scmp.ne.s32.totalorder %s72, %s73
      %p84 = scmp.eq.s32.totalorder %s22, 0
      %p85 = por %p83, %p84
      %p86 = scmp.ne.s32.totalorder %s72, %s73
      %p87 = scmp.eq.s32.totalorder %s23, 2
      %p88 = por %p86, %p87
      %p90 = scmp.ne.s32.totalorder %s73, %s89
      %p91 = scmp.eq.s32.totalorder %s23, 0
      %p92 = por %p90, %p91
      %s93 = ssub.s32 %s17, %s24
      %p94 = scmp.eq.s32.totalorder %s93, 0
      %s96 = sadd.s32 %s95, 1
      %s97 = scalar_select %p94, %s95, %s96
      %p100 = pneg %p94
      %p101 = scmp.eq.s32.totalorder %s17, 2
      %p102 = por %p100, %p101
      %p103 = scmp.ne.s32.totalorder %s95, %s98
      %p104 = scmp.eq.s32.totalorder %s17, 0
      %p105 = por %p103, %p104
      %p106 = scmp.ne.s32.totalorder %s95, %s98
      %p107 = scmp.eq.s32.totalorder %s22, 2
      %p108 = por %p106, %p107
      %p109 = scmp.ne.s32.totalorder %s98, %s99
      %p110 = scmp.eq.s32.totalorder %s22, 0
      %p111 = por %p109, %p110
      %p112 = scmp.ne.s32.totalorder %s98, %s99
      %p113 = scmp.eq.s32.totalorder %s23, 2
      %p114 = por %p112, %p113
      %p116 = scmp.ne.s32.totalorder %s99, %s115
      %p117 = scmp.eq.s32.totalorder %s23, 0
      %p118 = por %p116, %p117
      %s120 = sadd.s32 %s119, 1
      %p123 = scmp.eq.s32.totalorder %s17, 2
      %p124 = scmp.ne.s32.totalorder %s119, %s121
      %p125 = scmp.eq.s32.totalorder %s17, 0
      %p126 = por %p124, %p125
      %p127 = scmp.ne.s32.totalorder %s119, %s121
      %p128 = scmp.eq.s32.totalorder %s22, 2
      %p129 = por %p127, %p128
      %p130 = scmp.ne.s32.totalorder %s121, %s122
      %p131 = scmp.eq.s32.totalorder %s22, 0
      %p132 = por %p130, %p131
      %p133 = scmp.ne.s32.totalorder %s121, %s122
      %p134 = scmp.eq.s32.totalorder %s23, 2
      %p135 = por %p133, %p134
      %p137 = scmp.ne.s32.totalorder %s122, %s136
      %p138 = scmp.eq.s32.totalorder %s23, 0
      %p139 = por %p137, %p138
      %s141 = sadd.s32 %s140, 1
      %p144 = scmp.eq.s32.totalorder %s17, 2
      %p145 = scmp.ne.s32.totalorder %s140, %s142
      %p146 = scmp.eq.s32.totalorder %s17, 0
      %p147 = por %p145, %p146
      %p148 = scmp.ne.s32.totalorder %s140, %s142
      %p149 = scmp.eq.s32.totalorder %s22, 2
      %p150 = por %p148, %p149
      %p151 = scmp.ne.s32.totalorder %s142, %s143
      %p152 = scmp.eq.s32.totalorder %s22, 0
      %p153 = por %p151, %p152
      %p154 = scmp.ne.s32.totalorder %s142, %s143
      %p155 = scmp.eq.s32.totalorder %s23, 2
      %p156 = por %p154, %p155
      %p158 = scmp.ne.s32.totalorder %s143, %s157
      %p159 = scmp.eq.s32.totalorder %s23, 0
      %p160 = por %p158, %p159
      %s162 = sadd.s32 %s161, 1
      %p165 = scmp.eq.s32.totalorder %s17, 2
      %p166 = scmp.ne.s32.totalorder %s161, %s163
      %p167 = scmp.eq.s32.totalorder %s17, 0
      %p168 = por %p166, %p167
      %p169 = scmp.ne.s32.totalorder %s161, %s163
      %p170 = scmp.eq.s32.totalorder %s22, 2
      %p171 = por %p169, %p170
      %p172 = scmp.ne.s32.totalorder %s163, %s164
      %p173 = scmp.eq.s32.totalorder %s22, 0
      %p174 = por %p172, %p173
      %p175 = scmp.ne.s32.totalorder %s163, %s164
      %p176 = scmp.eq.s32.totalorder %s23, 2
      %p177 = por %p175, %p176
      %p179 = scmp.ne.s32.totalorder %s164, %s178
      %p180 = scmp.eq.s32.totalorder %s23, 0
      %p181 = por %p179, %p180
      %p182 = scmp.le.s32.totalorder 1, %s17
      %p183 = scmp.lt.s32.totalorder %s17, 4
      %p184 = pnand %p182, %p183
      %p185 = pneg %p184
      // Predicated region
      $region9: #{net_forward.1} parent=5 // pred_check
        _
      $region10: #{net_forward.1} parent=5 // pred_check_branch
        %187 = sbr.rel (%p184) target = $region12
      $region11: #{net_forward.1} parent=5 // pred_region
        %s188 = ssub.s32 %s17, 1
        // Predicated region
        $region13: #{net_forward.1} parent=11 // pred_check
          %p189 = pneg %p38
        $region14: #{net_forward.1} parent=11 // pred_check_branch
          %191 = sbr.rel (%p189) target = $region16
        $region15: #{net_forward.1} parent=11 // pred_region
          _
        $region16: #{net_forward.1} parent=11 // pred_fallthru
          _
        // Predicated region
        $region17: #{net_forward.1} parent=11 // pred_check
          %p192 = pneg %p59
        $region18: #{net_forward.1} parent=11 // pred_check_branch
          %194 = sbr.rel (%p192) target = $region20
        $region19: #{net_forward.1} parent=11 // pred_region
          %s196 = ssub.s32 2048, 2048
          %197 = vsyncadd [#allocation8], %s196
          %s198 = sshll.u32 [#allocation7], 4
          %s199 = int_to_ptr.vmem [resolvable:$true] %s198
          %204 = dma.hbm_to_vmem [thread:$0]  %s1, 2048, %s199, [#allocation8], 128, 128, 8
        $region20: #{net_forward.1} parent=11 // pred_fallthru
          _
        // Predicated region
        $region21: #{net_forward.1} parent=11 // pred_check
          %p205 = pneg %p132
        $region22: #{net_forward.1} parent=11 // pred_check_branch
          %207 = sbr.rel (%p205) target = $region24
        $region23: #{net_forward.1} parent=11 // pred_region
          %s209 = ssub.s32 2048, 2048
          %210 = vsyncadd [#allocation13], %s209
          %s211 = sshll.u32 [#allocation12], 4
          %s212 = int_to_ptr.vmem [resolvable:$true] %s211
          %217 = dma.hbm_to_vmem [thread:$0]  %s4, 2048, %s212, [#allocation13], 64, 64, 4
        $region24: #{net_forward.1} parent=11 // pred_fallthru
          _
        // Predicated region
        $region25: #{net_forward.1} parent=11 // pred_check
          %p218 = pneg %p153
        $region26: #{net_forward.1} parent=11 // pred_check_branch
          %220 = sbr.rel (%p218) target = $region28
        $region27: #{net_forward.1} parent=11 // pred_region
          %s222 = ssub.s32 16, 16
          %223 = vsyncadd [#allocation13], %s222
          %s225 = sshll.u32 [#allocation14], 4
          %s226 = int_to_ptr.vmem [resolvable:$true] %s225
          %228 = dma.hbm_to_vmem [thread:$0]  %s5, 16, %s226, [#allocation13]
        $region28: #{net_forward.1} parent=11 // pred_fallthru
          _
      $region12: #{net_forward.1} parent=5 // pred_fallthru
        _
      %p229 = scmp.lt.s32.totalorder %s17, 3
      // Predicated region
      $region29: #{net_forward.1} parent=5 // pred_check
        %p230 = pneg %p229
      $region30: #{net_forward.1} parent=5 // pred_check_branch
        %232 = sbr.rel (%p230) target = $region32
      $region31: #{net_forward.1} parent=5 // pred_region
        // Predicated region
        $region33: #{net_forward.1} parent=31 // pred_check
          %p233 = pneg %p79
        $region34: #{net_forward.1} parent=31 // pred_check_branch
          %235 = sbr.rel (%p233) target = $region36
        $region35: #{net_forward.1} parent=31 // pred_region
          %s236 = sand.u32 %s17, 1
          %s237 = scalar_lea.sflag [#allocation10], %s236
          %s238 = sand.u32 %s69, 1
          %s239 = smul.addr %s238, 2048
          %s240 = scalar_lea.vmem [#allocation9], %s239
          %s242 = ssub.s32 32768, 32768
          %243 = vsyncadd %s237, %s242
          %s244 = smul.addr %s17, 512
          %s245 = smul.addr %s244, 64
          %s246 = scalar_lea.hbm %s2, %s245
          %s247 = sshll.u32 %s240, 4
          %s248 = int_to_ptr.vmem [resolvable:$true] %s247
          %253 = dma.hbm_to_vmem [thread:$0]  %s246, 32768, %s248, %s237, 512, 512, 32
        $region36: #{net_forward.1} parent=31 // pred_fallthru
          _
        // Predicated region
        $region37: #{net_forward.1} parent=31 // pred_check
          %p254 = pneg %p105
        $region38: #{net_forward.1} parent=31 // pred_check_branch
          %256 = sbr.rel (%p254) target = $region40
        $region39: #{net_forward.1} parent=31 // pred_region
          %s257 = sand.u32 %s17, 1
          %s258 = scalar_lea.sflag [#allocation10], %s257
          %s259 = sand.u32 %s95, 1
          %s260 = smul.addr %s259, 8
          %s261 = scalar_lea.vmem [#allocation11], %s260
          %s263 = ssub.s32 128, 128
          %264 = vsyncadd %s258, %s263
          %s265 = smul.addr %s17, 8
          %s266 = smul.addr %s265, 16
          %s267 = scalar_lea.hbm %s3, %s266
          %s269 = sshll.u32 %s261, 4
          %s270 = int_to_ptr.vmem [resolvable:$true] %s269
          %272 = dma.hbm_to_vmem [thread:$0]  %s267, 128, %s270, %s258
        $region40: #{net_forward.1} parent=31 // pred_fallthru
          _
      $region32: #{net_forward.1} parent=5 // pred_fallthru
        _
      %p273 = scmp.le.s32.totalorder 1, %s17
      %p274 = scmp.lt.s32.totalorder %s17, 4
      %p275 = pnand %p273, %p274
      %p276 = pneg %p275
      // Predicated region
      $region41: #{net_forward.1} parent=5 // pred_check
        _
      $region42: #{net_forward.1} parent=5 // pred_check_branch
        %278 = sbr.rel (%p275) target = $region44
      $region43: #{net_forward.1} parent=5 // pred_region
        %s279 = ssub.s32 %s17, 1
        // Predicated region
        $region45: #{net_forward.1} parent=43 // pred_check
          %p280 = pneg %p59
        $region46: #{net_forward.1} parent=43 // pred_check_branch
          %282 = sbr.rel (%p280) target = $region48
        $region47: #{net_forward.1} parent=43 // pred_region
          %283 = dma.done [#allocation8], 2048
        $region48: #{net_forward.1} parent=43 // pred_fallthru
          _
        %s284 = sand.u32 %s22, 1
        %s285 = scalar_lea.sflag [#allocation10], %s284
        %s286 = sand.u32 %s72, 1
        %s287 = smul.addr %s286, 2048
        %s288 = scalar_lea.vmem [#allocation9], %s287
        // Predicated region
        $region49: #{net_forward.1} parent=43 // pred_check
          %p289 = pneg %p85
        $region50: #{net_forward.1} parent=43 // pred_check_branch
          %291 = sbr.rel (%p289) target = $region52
        $region51: #{net_forward.1} parent=43 // pred_region
          %292 = dma.done %s285, 32768
        $region52: #{net_forward.1} parent=43 // pred_fallthru
          _
        %s293 = sand.u32 %s22, 1
        %s294 = scalar_lea.sflag [#allocation10], %s293
        %s295 = sand.u32 %s98, 1
        %s296 = smul.addr %s295, 8
        %s297 = scalar_lea.vmem [#allocation11], %s296
        // Predicated region
        $region53: #{net_forward.1} parent=43 // pred_check
          %p298 = pneg %p111
        $region54: #{net_forward.1} parent=43 // pred_check_branch
          %300 = sbr.rel (%p298) target = $region56
        $region55: #{net_forward.1} parent=43 // pred_region
          %301 = dma.done %s294, 128
        $region56: #{net_forward.1} parent=43 // pred_fallthru
          _
        // Predicated region
        $region57: #{net_forward.1} parent=43 // pred_check
          %p302 = pneg %p132
        $region58: #{net_forward.1} parent=43 // pred_check_branch
          %304 = sbr.rel (%p302) target = $region60
        $region59: #{net_forward.1} parent=43 // pred_region
          %305 = dma.done [#allocation13], 2048
        $region60: #{net_forward.1} parent=43 // pred_fallthru
          _
        // Predicated region
        $region61: #{net_forward.1} parent=43 // pred_check
          %p306 = pneg %p153
        $region62: #{net_forward.1} parent=43 // pred_check_branch
          %308 = sbr.rel (%p306) target = $region64
        $region63: #{net_forward.1} parent=43 // pred_region
          %309 = dma.done [#allocation13], 16
        $region64: #{net_forward.1} parent=43 // pred_fallthru
          _
        %p310 = pneg %p38
        %p311 = pneg %p35
        %p312 = pneg %p59
        %p313 = pneg %p56
        %s314 = sand.u32 %s22, 1
        %s315 = scalar_lea.sflag [#allocation10], %s314
        %s316 = sand.u32 %s72, 1
        %s317 = smul.addr %s316, 2048
        %s318 = scalar_lea.vmem [#allocation9], %s317
        %p319 = pneg %p85
        %p320 = pneg %p82
        %s321 = sand.u32 %s22, 1
        %s322 = scalar_lea.sflag [#allocation10], %s321
        %s323 = sand.u32 %s98, 1
        %s324 = smul.addr %s323, 8
        %s325 = scalar_lea.vmem [#allocation11], %s324
        %p326 = pneg %p111
        %p327 = pneg %p108
        %p328 = pneg %p132
        %p329 = pneg %p129
        %p330 = pneg %p153
        %p331 = pneg %p150
        %p332 = pneg %p174
        %p333 = pneg %p171
        %p335 = scmp.eq.s32.totalorder %s22, 0
        // Predicated region
        $region65: #{net_forward.1} parent=43 // pred_check
          %p336 = pneg %p335
        $region66: #{net_forward.1} parent=43 // pred_check_branch
          %338 = sbr.rel (%p336) target = $region68
        $region67: #{net_forward.1} parent=43 // pred_region
          %v339 = vld [vmem:[%s0] sm:$0xff]
          %v340 = vld [vmem:[%s0 + $0x8] sm:$0xff]
          %v341 = vld [vmem:[%s0 + $0x10] sm:$0xff]
          %v342 = vld [vmem:[%s0 + $0x18] sm:$0xff]
          %v343 = vld [vmem:[%s0 + $0x20] sm:$0xff]
          %v344 = vld [vmem:[%s0 + $0x28] sm:$0xff]
          %v345 = vld [vmem:[%s0 + $0x30] sm:$0xff]
          %v346 = vld [vmem:[%s0 + $0x38] sm:$0xff]
          %v347 = vld [vmem:[%s0 + $0x40] sm:$0xff]
          %v348 = vld [vmem:[%s0 + $0x48] sm:$0xff]
          %v349 = vld [vmem:[%s0 + $0x50] sm:$0xff]
          %v350 = vld [vmem:[%s0 + $0x58] sm:$0xff]
          %v351 = vld [vmem:[%s0 + $0x60] sm:$0xff]
          %v352 = vld [vmem:[%s0 + $0x68] sm:$0xff]
          %v353 = vld [vmem:[%s0 + $0x70] sm:$0xff]
          %v354 = vld [vmem:[%s0 + $0x78] sm:$0xff]
          %v355 = vlaneseq
          %v356 = vand.u32 %v355, 127
          %357 = vset.pattern.permute.xlu0 0
          %358 = vperm.xlu0 %357, %v339
          %v359 = vpop.permute.xlu0 %358
          %360 = vset.pattern.permute.xlu0 0
          %361 = vperm.xlu0 %360, %v340
          %v362 = vpop.permute.xlu0 %361
          %363 = vset.pattern.permute.xlu0 0
          %364 = vperm.xlu0 %363, %v341
          %v365 = vpop.permute.xlu0 %364
          %366 = vset.pattern.permute.xlu0 0
          %367 = vperm.xlu0 %366, %v342
          %v368 = vpop.permute.xlu0 %367
          %369 = vset.pattern.permute.xlu0 0
          %370 = vperm.xlu0 %369, %v343
          %v371 = vpop.permute.xlu0 %370
          %372 = vset.pattern.permute.xlu0 0
          %373 = vperm.xlu0 %372, %v344
          %v374 = vpop.permute.xlu0 %373
          %375 = vset.pattern.permute.xlu0 0
          %376 = vperm.xlu0 %375, %v345
          %v377 = vpop.permute.xlu0 %376
          %378 = vset.pattern.permute.xlu0 0
          %379 = vperm.xlu0 %378, %v346
          %v380 = vpop.permute.xlu0 %379
          %381 = vset.pattern.permute.xlu0 0
          %382 = vperm.xlu0 %381, %v347
          %v383 = vpop.permute.xlu0 %382
          %384 = vset.pattern.permute.xlu0 0
          %385 = vperm.xlu0 %384, %v348
          %v386 = vpop.permute.xlu0 %385
          %387 = vset.pattern.permute.xlu0 0
          %388 = vperm.xlu0 %387, %v349
          %v389 = vpop.permute.xlu0 %388
          %390 = vset.pattern.permute.xlu0 0
          %391 = vperm.xlu0 %390, %v350
          %v392 = vpop.permute.xlu0 %391
          %393 = vset.pattern.permute.xlu0 0
          %394 = vperm.xlu0 %393, %v351
          %v395 = vpop.permute.xlu0 %394
          %396 = vset.pattern.permute.xlu0 0
          %397 = vperm.xlu0 %396, %v352
          %v398 = vpop.permute.xlu0 %397
          %399 = vset.pattern.permute.xlu0 0
          %400 = vperm.xlu0 %399, %v353
          %v401 = vpop.permute.xlu0 %400
          %402 = vset.pattern.permute.xlu0 0
          %403 = vperm.xlu0 %402, %v354
          %v404 = vpop.permute.xlu0 %403
          %vm405 = vcmp.eq.s32.totalorder %v359, %v356
          %vm406 = vcmp.eq.s32.totalorder %v362, %v356
          %vm407 = vcmp.eq.s32.totalorder %v365, %v356
          %vm408 = vcmp.eq.s32.totalorder %v368, %v356
          %vm409 = vcmp.eq.s32.totalorder %v371, %v356
          %vm410 = vcmp.eq.s32.totalorder %v374, %v356
          %vm411 = vcmp.eq.s32.totalorder %v377, %v356
          %vm412 = vcmp.eq.s32.totalorder %v380, %v356
          %vm413 = vcmp.eq.s32.totalorder %v383, %v356
          %vm414 = vcmp.eq.s32.totalorder %v386, %v356
          %vm415 = vcmp.eq.s32.totalorder %v389, %v356
          %vm416 = vcmp.eq.s32.totalorder %v392, %v356
          %vm417 = vcmp.eq.s32.totalorder %v395, %v356
          %vm418 = vcmp.eq.s32.totalorder %v398, %v356
          %vm419 = vcmp.eq.s32.totalorder %v401, %v356
          %vm420 = vcmp.eq.s32.totalorder %v404, %v356
          %v421 = vsel %vm405, 1.0, 0.0
          %v422 = vsel %vm406, 1.0, 0.0
          %v423 = vsel %vm407, 1.0, 0.0
          %v424 = vsel %vm408, 1.0, 0.0
          %v425 = vsel %vm409, 1.0, 0.0
          %v426 = vsel %vm410, 1.0, 0.0
          %v427 = vsel %vm411, 1.0, 0.0
          %v428 = vsel %vm412, 1.0, 0.0
          %v429 = vsel %vm413, 1.0, 0.0
          %v430 = vsel %vm414, 1.0, 0.0
          %v431 = vsel %vm415, 1.0, 0.0
          %v432 = vsel %vm416, 1.0, 0.0
          %v433 = vsel %vm417, 1.0, 0.0
          %v434 = vsel %vm418, 1.0, 0.0
          %v435 = vsel %vm419, 1.0, 0.0
          %v436 = vsel %vm420, 1.0, 0.0
          %v437 = vpack.c.bf16 %v422, %v421
          %v438 = vpack.c.bf16 %v424, %v423
          %v439 = vpack.c.bf16 %v426, %v425
          %v440 = vpack.c.bf16 %v428, %v427
          %v441 = vpack.c.bf16 %v430, %v429
          %v442 = vpack.c.bf16 %v432, %v431
          %v443 = vpack.c.bf16 %v434, %v433
          %v444 = vpack.c.bf16 %v436, %v435
          %v445 = vld [vmem:[#allocation7] sm:$0xff]
          %v446 = vld [vmem:[#allocation7 + $0x8] sm:$0xff]
          %v447 = vld [vmem:[#allocation7 + $0x10] sm:$0xff]
          %v448 = vld [vmem:[#allocation7 + $0x18] sm:$0xff]
          %v449 = vld [vmem:[#allocation7 + $0x20] sm:$0xff]
          %v450 = vld [vmem:[#allocation7 + $0x28] sm:$0xff]
          %v451 = vld [vmem:[#allocation7 + $0x30] sm:$0xff]
          %v452 = vld [vmem:[#allocation7 + $0x38] sm:$0xff]
          %v453 = vld [vmem:[#allocation7 + $0x40] sm:$0xff]
          %v454 = vld [vmem:[#allocation7 + $0x48] sm:$0xff]
          %v455 = vld [vmem:[#allocation7 + $0x50] sm:$0xff]
          %v456 = vld [vmem:[#allocation7 + $0x58] sm:$0xff]
          %v457 = vld [vmem:[#allocation7 + $0x60] sm:$0xff]
          %v458 = vld [vmem:[#allocation7 + $0x68] sm:$0xff]
          %v459 = vld [vmem:[#allocation7 + $0x70] sm:$0xff]
          %v460 = vld [vmem:[#allocation7 + $0x78] sm:$0xff]
          %v477 = vunpack.c.l.b16 %v445
          %v478 = vunpack.c.h.b16 %v445
          %v479 = vunpack.c.l.b16 %v446
          %v480 = vunpack.c.h.b16 %v446
          %v481 = vunpack.c.l.b16 %v447
          %v482 = vunpack.c.h.b16 %v447
          %v483 = vunpack.c.l.b16 %v448
          %v484 = vunpack.c.h.b16 %v448
          %v485 = vunpack.c.l.b16 %v449
          %v486 = vunpack.c.h.b16 %v449
          %v487 = vunpack.c.l.b16 %v450
          %v488 = vunpack.c.h.b16 %v450
          %v489 = vunpack.c.l.b16 %v451
          %v490 = vunpack.c.h.b16 %v451
          %v491 = vunpack.c.l.b16 %v452
          %v492 = vunpack.c.h.b16 %v452
          %v493 = vunpack.c.l.b16 %v453
          %v494 = vunpack.c.h.b16 %v453
          %v495 = vunpack.c.l.b16 %v454
          %v496 = vunpack.c.h.b16 %v454
          %v497 = vunpack.c.l.b16 %v455
          %v498 = vunpack.c.h.b16 %v455
          %v499 = vunpack.c.l.b16 %v456
          %v500 = vunpack.c.h.b16 %v456
          %v501 = vunpack.c.l.b16 %v457
          %v502 = vunpack.c.h.b16 %v457
          %v503 = vunpack.c.l.b16 %v458
          %v504 = vunpack.c.h.b16 %v458
          %v505 = vunpack.c.l.b16 %v459
          %v506 = vunpack.c.h.b16 %v459
          %v507 = vunpack.c.l.b16 %v460
          %v508 = vunpack.c.h.b16 %v460
          %v509 = vpack.c.b16 %v479, %v477
          %v510 = vpack.c.b16 %v480, %v478
          %v511 = vpack.c.b16 %v483, %v481
          %v512 = vpack.c.b16 %v484, %v482
          %v513 = vpack.c.b16 %v487, %v485
          %v514 = vpack.c.b16 %v488, %v486
          %v515 = vpack.c.b16 %v491, %v489
          %v516 = vpack.c.b16 %v492, %v490
          %v517 = vpack.c.b16 %v495, %v493
          %v518 = vpack.c.b16 %v496, %v494
          %v519 = vpack.c.b16 %v499, %v497
          %v520 = vpack.c.b16 %v500, %v498
          %v521 = vpack.c.b16 %v503, %v501
          %v522 = vpack.c.b16 %v504, %v502
          %v523 = vpack.c.b16 %v507, %v505
          %v524 = vpack.c.b16 %v508, %v506
          %541 = vmatprep.subr.bf16.mxu0 %v510
          %542 = vmatpush1.bf16.msra.mxu0 %v509
          %543 = vmatprep.subr.bf16.mxu0 %v512
          %544 = vmatpush1.bf16.msra.mxu0 %v511
          %545 = vmatprep.subr.bf16.mxu0 %v514
          %546 = vmatpush1.bf16.msra.mxu0 %v513
          %547 = vmatprep.subr.bf16.mxu0 %v516
          %548 = vmatpush1.bf16.msra.mxu0 %v515
          %549 = vmatprep.subr.bf16.mxu0 %v518
          %550 = vmatpush1.bf16.msra.mxu0 %v517
          %551 = vmatprep.subr.bf16.mxu0 %v520
          %552 = vmatpush1.bf16.msra.mxu0 %v519
          %553 = vmatprep.subr.bf16.mxu0 %v522
          %554 = vmatpush1.bf16.msra.mxu0 %v521
          %555 = vmatprep.subr.bf16.mxu0 %v524
          %556 = vmatpush1.bf16.msra.mxu0 %v523
          %557 = vmatprep.subr.bf16.mxu0 0
          %558 = vmatpush1.bf16.msra.mxu0 0
          %559 = vmatprep.subr.bf16.mxu0 0
          %560 = vmatpush1.bf16.msra.mxu0 0
          %561 = vmatprep.subr.bf16.mxu0 0
          %562 = vmatpush1.bf16.msra.mxu0 0
          %563 = vmatprep.subr.bf16.mxu0 0
          %564 = vmatpush1.bf16.msra.mxu0 0
          %565 = vmatprep.subr.bf16.mxu0 0
          %566 = vmatpush1.bf16.msra.mxu0 0
          %567 = vmatprep.subr.bf16.mxu0 0
          %568 = vmatpush1.bf16.msra.mxu0 0
          %569 = vmatprep.subr.bf16.mxu0 0
          %570 = vmatpush1.bf16.msra.mxu0 0
          %571 = vmatprep.subr.bf16.mxu0 0
          %572 = vmatpush1.bf16.msra.mxu0 0
          %573 = vmatprep.mubr.bf16.mxu0 0
          %574 = vmatmul.mubr.bf16.gmra.mrb[0].mxu0 %v437
          %v575 = vpop.f32.mrb[0].mxu0
          %v576 = vadd.f32 0.0, %v575
          %v577 = vpop.f32.mrb[0].mxu0
          %v578 = vadd.f32 0.0, %v577
          %v579 = vpop.f32.mrb[0].mxu0
          %v580 = vadd.f32 0.0, %v579
          %v581 = vpop.f32.mrb[0].mxu0
          %v582 = vadd.f32 0.0, %v581
          %583 = vmatprep.mubr.bf16.mxu0 0
          %584 = vmatmul.mubr.bf16.gmra.mrb[0].mxu0 %v438
          %v585 = vpop.f32.mrb[0].mxu0
          %v586 = vadd.f32 0.0, %v585
          %v587 = vpop.f32.mrb[0].mxu0
          %v588 = vadd.f32 0.0, %v587
          %v589 = vpop.f32.mrb[0].mxu0
          %v590 = vadd.f32 0.0, %v589
          %v591 = vpop.f32.mrb[0].mxu0
          %v592 = vadd.f32 0.0, %v591
          %593 = vmatprep.mubr.bf16.mxu0 0
          %594 = vmatmul.mubr.bf16.gmra.mrb[0].mxu0 %v439
          %v595 = vpop.f32.mrb[0].mxu0
          %v596 = vadd.f32 0.0, %v595
          %v597 = vpop.f32.mrb[0].mxu0
          %v598 = vadd.f32 0.0, %v597
          %v599 = vpop.f32.mrb[0].mxu0
          %v600 = vadd.f32 0.0, %v599
          %v601 = vpop.f32.mrb[0].mxu0
          %v602 = vadd.f32 0.0, %v601
          %603 = vmatprep.mubr.bf16.mxu0 0
          %604 = vmatmul.mubr.bf16.gmra.mrb[0].mxu0 %v440
          %v605 = vpop.f32.mrb[0].mxu0
          %v606 = vadd.f32 0.0, %v605
          %v607 = vpop.f32.mrb[0].mxu0
          %v608 = vadd.f32 0.0, %v607
          %v609 = vpop.f32.mrb[0].mxu0
          %v610 = vadd.f32 0.0, %v609
          %v611 = vpop.f32.mrb[0].mxu0
          %v612 = vadd.f32 0.0, %v611
          %613 = vmatprep.mubr.bf16.mxu0 0
          %614 = vmatmul.mubr.bf16.gmra.mrb[0].mxu0 %v441
          %v615 = vpop.f32.mrb[0].mxu0
          %v616 = vadd.f32 0.0, %v615
          %v617 = vpop.f32.mrb[0].mxu0
          %v618 = vadd.f32 0.0, %v617
          %v619 = vpop.f32.mrb[0].mxu0
          %v620 = vadd.f32 0.0, %v619
          %v621 = vpop.f32.mrb[0].mxu0
          %v622 = vadd.f32 0.0, %v621
          %623 = vmatprep.mubr.bf16.mxu0 0
          %624 = vmatmul.mubr.bf16.gmra.mrb[0].mxu0 %v442
          %v625 = vpop.f32.mrb[0].mxu0
          %v626 = vadd.f32 0.0, %v625
          %v627 = vpop.f32.mrb[0].mxu0
          %v628 = vadd.f32 0.0, %v627
          %v629 = vpop.f32.mrb[0].mxu0
          %v630 = vadd.f32 0.0, %v629
          %v631 = vpop.f32.mrb[0].mxu0
          %v632 = vadd.f32 0.0, %v631
          %633 = vmatprep.mubr.bf16.mxu0 0
          %634 = vmatmul.mubr.bf16.gmra.mrb[0].mxu0 %v443
          %v635 = vpop.f32.mrb[0].mxu0
          %v636 = vadd.f32 0.0, %v635
          %v637 = vpop.f32.mrb[0].mxu0
          %v638 = vadd.f32 0.0, %v637
          %v639 = vpop.f32.mrb[0].mxu0
          %v640 = vadd.f32 0.0, %v639
          %v641 = vpop.f32.mrb[0].mxu0
          %v642 = vadd.f32 0.0, %v641
          %643 = vmatprep.mubr.bf16.mxu0 0
          %644 = vmatmul.mubr.bf16.gmra.mrb[0].mxu0 %v444
          %v645 = vpop.f32.mrb[0].mxu0
          %v646 = vadd.f32 0.0, %v645
          %v647 = vpop.f32.mrb[0].mxu0
          %v648 = vadd.f32 0.0, %v647
          %v649 = vpop.f32.mrb[0].mxu0
          %v650 = vadd.f32 0.0, %v649
          %v651 = vpop.f32.mrb[0].mxu0
          %v652 = vadd.f32 0.0, %v651
          %653 = vdwg.mxu0
          %v654 = vpack.c.bf16 %v580, %v576
          %v655 = vpack.c.bf16 %v582, %v578
          %v656 = vpack.c.bf16 0.0, 0.0
          %v657 = vpack.c.bf16 %v590, %v586
          %v658 = vpack.c.bf16 %v592, %v588
          %v659 = vpack.c.bf16 %v600, %v596
          %v660 = vpack.c.bf16 %v602, %v598
          %v661 = vpack.c.bf16 %v610, %v606
          %v662 = vpack.c.bf16 %v612, %v608
          %v663 = vpack.c.bf16 %v620, %v616
          %v664 = vpack.c.bf16 %v622, %v618
          %v665 = vpack.c.bf16 %v630, %v626
          %v666 = vpack.c.bf16 %v632, %v628
          %v667 = vpack.c.bf16 %v640, %v636
          %v668 = vpack.c.bf16 %v642, %v638
          %v669 = vpack.c.bf16 %v650, %v646
          %v670 = vpack.c.bf16 %v652, %v648
          %671 = vst [vmem:[#allocation2] sm:$0xff] %v654
          %672 = vst [vmem:[#allocation2 + $0x8] sm:$0xff] %v655
          %673 = vst [vmem:[#allocation2 + $0x10] sm:$0xff] %v656
          %674 = vst [vmem:[#allocation2 + $0x18] sm:$0xff] %v656
          %675 = vst [vmem:[#allocation2 + $0x20] sm:$0xff] %v657
          %676 = vst [vmem:[#allocation2 + $0x28] sm:$0xff] %v658
          %677 = vst [vmem:[#allocation2 + $0x30] sm:$0xff] %v654
          %678 = vst [vmem:[#allocation2 + $0x38] sm:$0xff] %v655
          %679 = vst [vmem:[#allocation2 + $0x40] sm:$0xff] %v659
          %680 = vst [vmem:[#allocation2 + $0x48] sm:$0xff] %v660
          %681 = vst [vmem:[#allocation2 + $0x50] sm:$0xff] %v657
          %682 = vst [vmem:[#allocation2 + $0x58] sm:$0xff] %v658
          %683 = vst [vmem:[#allocation2 + $0x60] sm:$0xff] %v661
          %684 = vst [vmem:[#allocation2 + $0x68] sm:$0xff] %v662
          %685 = vst [vmem:[#allocation2 + $0x70] sm:$0xff] %v659
          %686 = vst [vmem:[#allocation2 + $0x78] sm:$0xff] %v660
          %687 = vst [vmem:[#allocation2 + $0x80] sm:$0xff] %v663
          %688 = vst [vmem:[#allocation2 + $0x88] sm:$0xff] %v664
          %689 = vst [vmem:[#allocation2 + $0x90] sm:$0xff] %v661
          %690 = vst [vmem:[#allocation2 + $0x98] sm:$0xff] %v662
          %691 = vst [vmem:[#allocation2 + $0xa0] sm:$0xff] %v665
          %692 = vst [vmem:[#allocation2 + $0xa8] sm:$0xff] %v666
          %693 = vst [vmem:[#allocation2 + $0xb0] sm:$0xff] %v663
          %694 = vst [vmem:[#allocation2 + $0xb8] sm:$0xff] %v664
          %695 = vst [vmem:[#allocation2 + $0xc0] sm:$0xff] %v667
          %696 = vst [vmem:[#allocation2 + $0xc8] sm:$0xff] %v668
          %697 = vst [vmem:[#allocation2 + $0xd0] sm:$0xff] %v665
          %698 = vst [vmem:[#allocation2 + $0xd8] sm:$0xff] %v666
          %699 = vst [vmem:[#allocation2 + $0xe0] sm:$0xff] %v669
          %700 = vst [vmem:[#allocation2 + $0xe8] sm:$0xff] %v670
          %701 = vst [vmem:[#allocation2 + $0xf0] sm:$0xff] %v667
          %702 = vst [vmem:[#allocation2 + $0xf8] sm:$0xff] %v668
        $region68: #{net_forward.1} parent=43 // pred_fallthru
          _
        %v703 = vld [vmem:[#allocation2] sm:$0xff]
        %v704 = vld [vmem:[#allocation2 + $0x8] sm:$0xff]
        %v705 = vld [vmem:[#allocation2 + $0x10] sm:$0xff]
        %v706 = vld [vmem:[#allocation2 + $0x18] sm:$0xff]
        %v707 = vld [vmem:[#allocation2 + $0x20] sm:$0xff]
        %v708 = vld [vmem:[#allocation2 + $0x28] sm:$0xff]
        %v709 = vld [vmem:[#allocation2 + $0x30] sm:$0xff]
        %v710 = vld [vmem:[#allocation2 + $0x38] sm:$0xff]
        %v711 = vld [vmem:[#allocation2 + $0x40] sm:$0xff]
        %v712 = vld [vmem:[#allocation2 + $0x48] sm:$0xff]
        %v713 = vld [vmem:[#allocation2 + $0x50] sm:$0xff]
        %v714 = vld [vmem:[#allocation2 + $0x58] sm:$0xff]
        %v715 = vld [vmem:[#allocation2 + $0x60] sm:$0xff]
        %v716 = vld [vmem:[#allocation2 + $0x68] sm:$0xff]
        %v717 = vld [vmem:[#allocation2 + $0x70] sm:$0xff]
        %v718 = vld [vmem:[#allocation2 + $0x78] sm:$0xff]
        %v719 = vld [vmem:[#allocation2 + $0x80] sm:$0xff]
        %v720 = vld [vmem:[#allocation2 + $0x88] sm:$0xff]
        %v721 = vld [vmem:[#allocation2 + $0x90] sm:$0xff]
        %v722 = vld [vmem:[#allocation2 + $0x98] sm:$0xff]
        %v723 = vld [vmem:[#allocation2 + $0xa0] sm:$0xff]
        %v724 = vld [vmem:[#allocation2 + $0xa8] sm:$0xff]
        %v725 = vld [vmem:[#allocation2 + $0xb0] sm:$0xff]
        %v726 = vld [vmem:[#allocation2 + $0xb8] sm:$0xff]
        %v727 = vld [vmem:[#allocation2 + $0xc0] sm:$0xff]
        %v728 = vld [vmem:[#allocation2 + $0xc8] sm:$0xff]
        %v729 = vld [vmem:[#allocation2 + $0xd0] sm:$0xff]
        %v730 = vld [vmem:[#allocation2 + $0xd8] sm:$0xff]
        %v731 = vld [vmem:[#allocation2 + $0xe0] sm:$0xff]
        %v732 = vld [vmem:[#allocation2 + $0xe8] sm:$0xff]
        %v733 = vld [vmem:[#allocation2 + $0xf0] sm:$0xff]
        %v734 = vld [vmem:[#allocation2 + $0xf8] sm:$0xff]
        %v735 = vld [vmem:[%s288] sm:$0xff]
        %v736 = vld [vmem:[%s288 + $0x8] sm:$0xff]
        %v737 = vld [vmem:[%s288 + $0x10] sm:$0xff]
        %v738 = vld [vmem:[%s288 + $0x18] sm:$0xff]
        %v739 = vld [vmem:[%s288 + $0x20] sm:$0xff]
        %v740 = vld [vmem:[%s288 + $0x28] sm:$0xff]
        %v741 = vld [vmem:[%s288 + $0x30] sm:$0xff]
        %v742 = vld [vmem:[%s288 + $0x38] sm:$0xff]
        %v743 = vld [vmem:[%s288 + $0x40] sm:$0xff]
        %v744 = vld [vmem:[%s288 + $0x48] sm:$0xff]
        %v745 = vld [vmem:[%s288 + $0x50] sm:$0xff]
        %v746 = vld [vmem:[%s288 + $0x58] sm:$0xff]
        %v747 = vld [vmem:[%s288 + $0x60] sm:$0xff]
        %v748 = vld [vmem:[%s288 + $0x68] sm:$0xff]
        %v749 = vld [vmem:[%s288 + $0x70] sm:$0xff]
        %v750 = vld [vmem:[%s288 + $0x78] sm:$0xff]
        %v751 = vld [vmem:[%s288 + $0x80] sm:$0xff]
        %v752 = vld [vmem:[%s288 + $0x88] sm:$0xff]
        %v753 = vld [vmem:[%s288 + $0x90] sm:$0xff]
        %v754 = vld [vmem:[%s288 + $0x98] sm:$0xff]
        %v755 = vld [vmem:[%s288 + $0xa0] sm:$0xff]
        %v756 = vld [vmem:[%s288 + $0xa8] sm:$0xff]
        %v757 = vld [vmem:[%s288 + $0xb0] sm:$0xff]
        %v758 = vld [vmem:[%s288 + $0xb8] sm:$0xff]
        %v759 = vld [vmem:[%s288 + $0xc0] sm:$0xff]
        %v760 = vld [vmem:[%s288 + $0xc8] sm:$0xff]
        %v761 = vld [vmem:[%s288 + $0xd0] sm:$0xff]
        %v762 = vld [vmem:[%s288 + $0xd8] sm:$0xff]
        %v763 = vld [vmem:[%s288 + $0xe0] sm:$0xff]
        %v764 = vld [vmem:[%s288 + $0xe8] sm:$0xff]
        %v765 = vld [vmem:[%s288 + $0xf0] sm:$0xff]
        %v766 = vld [vmem:[%s288 + $0xf8] sm:$0xff]
        %v767 = vld [vmem:[%s288 + $0x100] sm:$0xff]
        %v768 = vld [vmem:[%s288 + $0x108] sm:$0xff]
        %v769 = vld [vmem:[%s288 + $0x110] sm:$0xff]
        %v770 = vld [vmem:[%s288 + $0x118] sm:$0xff]
        %v771 = vld [vmem:[%s288 + $0x120] sm:$0xff]
        %v772 = vld [vmem:[%s288 + $0x128] sm:$0xff]
        %v773 = vld [vmem:[%s288 + $0x130] sm:$0xff]
        %v774 = vld [vmem:[%s288 + $0x138] sm:$0xff]
        %v775 = vld [vmem:[%s288 + $0x140] sm:$0xff]
        %v776 = vld [vmem:[%s288 + $0x148] sm:$0xff]
        %v777 = vld [vmem:[%s288 + $0x150] sm:$0xff]
        %v778 = vld [vmem:[%s288 + $0x158] sm:$0xff]
        %v779 = vld [vmem:[%s288 + $0x160] sm:$0xff]
        %v780 = vld [vmem:[%s288 + $0x168] sm:$0xff]
        %v781 = vld [vmem:[%s288 + $0x170] sm:$0xff]
        %v782 = vld [vmem:[%s288 + $0x178] sm:$0xff]
        %v783 = vld [vmem:[%s288 + $0x180] sm:$0xff]
        %v784 = vld [vmem:[%s288 + $0x188] sm:$0xff]
        %v785 = vld [vmem:[%s288 + $0x190] sm:$0xff]
        %v786 = vld [vmem:[%s288 + $0x198] sm:$0xff]
        %v787 = vld [vmem:[%s288 + $0x1a0] sm:$0xff]
        %v788 = vld [vmem:[%s288 + $0x1a8] sm:$0xff]
        %v789 = vld [vmem:[%s288 + $0x1b0] sm:$0xff]
        %v790 = vld [vmem:[%s288 + $0x1b8] sm:$0xff]
        %v791 = vld [vmem:[%s288 + $0x1c0] sm:$0xff]
        %v792 = vld [vmem:[%s288 + $0x1c8] sm:$0xff]
        %v793 = vld [vmem:[%s288 + $0x1d0] sm:$0xff]
        %v794 = vld [vmem:[%s288 + $0x1d8] sm:$0xff]
        %v795 = vld [vmem:[%s288 + $0x1e0] sm:$0xff]
        %v796 = vld [vmem:[%s288 + $0x1e8] sm:$0xff]
        %v797 = vld [vmem:[%s288 + $0x1f0] sm:$0xff]
        %v798 = vld [vmem:[%s288 + $0x1f8] sm:$0xff]
        %v799 = vld [vmem:[%s288 + $0x200] sm:$0xff]
        %v800 = vld [vmem:[%s288 + $0x208] sm:$0xff]
        %v801 = vld [vmem:[%s288 + $0x210] sm:$0xff]
        %v802 = vld [vmem:[%s288 + $0x218] sm:$0xff]
        %v803 = vld [vmem:[%s288 + $0x220] sm:$0xff]
        %v804 = vld [vmem:[%s288 + $0x228] sm:$0xff]
        %v805 = vld [vmem:[%s288 + $0x230] sm:$0xff]
        %v806 = vld [vmem:[%s288 + $0x238] sm:$0xff]
        %v807 = vld [vmem:[%s288 + $0x240] sm:$0xff]
        %v808 = vld [vmem:[%s288 + $0x248] sm:$0xff]
        %v809 = vld [vmem:[%s288 + $0x250] sm:$0xff]
        %v810 = vld [vmem:[%s288 + $0x258] sm:$0xff]
        %v811 = vld [vmem:[%s288 + $0x260] sm:$0xff]
        %v812 = vld [vmem:[%s288 + $0x268] sm:$0xff]
        %v813 = vld [vmem:[%s288 + $0x270] sm:$0xff]
        %v814 = vld [vmem:[%s288 + $0x278] sm:$0xff]
        %v815 = vld [vmem:[%s288 + $0x280] sm:$0xff]
        %v816 = vld [vmem:[%s288 + $0x288] sm:$0xff]
        %v817 = vld [vmem:[%s288 + $0x290] sm:$0xff]
        %v818 = vld [vmem:[%s288 + $0x298] sm:$0xff]
        %v819 = vld [vmem:[%s288 + $0x2a0] sm:$0xff]
        %v820 = vld [vmem:[%s288 + $0x2a8] sm:$0xff]
        %v821 = vld [vmem:[%s288 + $0x2b0] sm:$0xff]
        %v822 = vld [vmem:[%s288 + $0x2b8] sm:$0xff]
        %v823 = vld [vmem:[%s288 + $0x2c0] sm:$0xff]
        %v824 = vld [vmem:[%s288 + $0x2c8] sm:$0xff]
        %v825 = vld [vmem:[%s288 + $0x2d0] sm:$0xff]
        %v826 = vld [vmem:[%s288 + $0x2d8] sm:$0xff]
        %v827 = vld [vmem:[%s288 + $0x2e0] sm:$0xff]
        %v828 = vld [vmem:[%s288 + $0x2e8] sm:$0xff]
        %v829 = vld [vmem:[%s288 + $0x2f0] sm:$0xff]
        %v830 = vld [vmem:[%s288 + $0x2f8] sm:$0xff]
        %v831 = vld [vmem:[%s288 + $0x300] sm:$0xff]
        %v832 = vld [vmem:[%s288 + $0x308] sm:$0xff]
        %v833 = vld [vmem:[%s288 + $0x310] sm:$0xff]
        %v834 = vld [vmem:[%s288 + $0x318] sm:$0xff]
        %v835 = vld [vmem:[%s288 + $0x320] sm:$0xff]
        %v836 = vld [vmem:[%s288 + $0x328] sm:$0xff]
        %v837 = vld [vmem:[%s288 + $0x330] sm:$0xff]
        %v838 = vld [vmem:[%s288 + $0x338] sm:$0xff]
        %v839 = vld [vmem:[%s288 + $0x340] sm:$0xff]
        %v840 = vld [vmem:[%s288 + $0x348] sm:$0xff]
        %v841 = vld [vmem:[%s288 + $0x350] sm:$0xff]
        %v842 = vld [vmem:[%s288 + $0x358] sm:$0xff]
        %v843 = vld [vmem:[%s288 + $0x360] sm:$0xff]
        %v844 = vld [vmem:[%s288 + $0x368] sm:$0xff]
        %v845 = vld [vmem:[%s288 + $0x370] sm:$0xff]
        %v846 = vld [vmem:[%s288 + $0x378] sm:$0xff]
        %v847 = vld [vmem:[%s288 + $0x380] sm:$0xff]
        %v848 = vld [vmem:[%s288 + $0x388] sm:$0xff]
        %v849 = vld [vmem:[%s288 + $0x390] sm:$0xff]
        %v850 = vld [vmem:[%s288 + $0x398] sm:$0xff]
        %v851 = vld [vmem:[%s288 + $0x3a0] sm:$0xff]
        %v852 = vld [vmem:[%s288 + $0x3a8] sm:$0xff]
        %v853 = vld [vmem:[%s288 + $0x3b0] sm:$0xff]
        %v854 = vld [vmem:[%s288 + $0x3b8] sm:$0xff]
        %v855 = vld [vmem:[%s288 + $0x3c0] sm:$0xff]
        %v856 = vld [vmem:[%s288 + $0x3c8] sm:$0xff]
        %v857 = vld [vmem:[%s288 + $0x3d0] sm:$0xff]
        %v858 = vld [vmem:[%s288 + $0x3d8] sm:$0xff]
        %v859 = vld [vmem:[%s288 + $0x3e0] sm:$0xff]
        %v860 = vld [vmem:[%s288 + $0x3e8] sm:$0xff]
        %v861 = vld [vmem:[%s288 + $0x3f0] sm:$0xff]
        %v862 = vld [vmem:[%s288 + $0x3f8] sm:$0xff]
        %v863 = vld [vmem:[%s288 + $0x400] sm:$0xff]
        %v864 = vld [vmem:[%s288 + $0x408] sm:$0xff]
        %v865 = vld [vmem:[%s288 + $0x410] sm:$0xff]
        %v866 = vld [vmem:[%s288 + $0x418] sm:$0xff]
        %v867 = vld [vmem:[%s288 + $0x420] sm:$0xff]
        %v868 = vld [vmem:[%s288 + $0x428] sm:$0xff]
        %v869 = vld [vmem:[%s288 + $0x430] sm:$0xff]
        %v870 = vld [vmem:[%s288 + $0x438] sm:$0xff]
        %v871 = vld [vmem:[%s288 + $0x440] sm:$0xff]
        %v872 = vld [vmem:[%s288 + $0x448] sm:$0xff]
        %v873 = vld [vmem:[%s288 + $0x450] sm:$0xff]
        %v874 = vld [vmem:[%s288 + $0x458] sm:$0xff]
        %v875 = vld [vmem:[%s288 + $0x460] sm:$0xff]
        %v876 = vld [vmem:[%s288 + $0x468] sm:$0xff]
        %v877 = vld [vmem:[%s288 + $0x470] sm:$0xff]
        %v878 = vld [vmem:[%s288 + $0x478] sm:$0xff]
        %v879 = vld [vmem:[%s288 + $0x480] sm:$0xff]
        %v880 = vld [vmem:[%s288 + $0x488] sm:$0xff]
        %v881 = vld [vmem:[%s288 + $0x490] sm:$0xff]
        %v882 = vld [vmem:[%s288 + $0x498] sm:$0xff]
        %v883 = vld [vmem:[%s288 + $0x4a0] sm:$0xff]
        %v884 = vld [vmem:[%s288 + $0x4a8] sm:$0xff]
        %v885 = vld [vmem:[%s288 + $0x4b0] sm:$0xff]
        %v886 = vld [vmem:[%s288 + $0x4b8] sm:$0xff]
        %v887 = vld [vmem:[%s288 + $0x4c0] sm:$0xff]
        %v888 = vld [vmem:[%s288 + $0x4c8] sm:$0xff]
        %v889 = vld [vmem:[%s288 + $0x4d0] sm:$0xff]
        %v890 = vld [vmem:[%s288 + $0x4d8] sm:$0xff]
        %v891 = vld [vmem:[%s288 + $0x4e0] sm:$0xff]
        %v892 = vld [vmem:[%s288 + $0x4e8] sm:$0xff]
        %v893 = vld [vmem:[%s288 + $0x4f0] sm:$0xff]
        %v894 = vld [vmem:[%s288 + $0x4f8] sm:$0xff]
        %v895 = vld [vmem:[%s288 + $0x500] sm:$0xff]
        %v896 = vld [vmem:[%s288 + $0x508] sm:$0xff]
        %v897 = vld [vmem:[%s288 + $0x510] sm:$0xff]
        %v898 = vld [vmem:[%s288 + $0x518] sm:$0xff]
        %v899 = vld [vmem:[%s288 + $0x520] sm:$0xff]
        %v900 = vld [vmem:[%s288 + $0x528] sm:$0xff]
        %v901 = vld [vmem:[%s288 + $0x530] sm:$0xff]
        %v902 = vld [vmem:[%s288 + $0x538] sm:$0xff]
        %v903 = vld [vmem:[%s288 + $0x540] sm:$0xff]
        %v904 = vld [vmem:[%s288 + $0x548] sm:$0xff]
        %v905 = vld [vmem:[%s288 + $0x550] sm:$0xff]
        %v906 = vld [vmem:[%s288 + $0x558] sm:$0xff]
        %v907 = vld [vmem:[%s288 + $0x560] sm:$0xff]
        %v908 = vld [vmem:[%s288 + $0x568] sm:$0xff]
        %v909 = vld [vmem:[%s288 + $0x570] sm:$0xff]
        %v910 = vld [vmem:[%s288 + $0x578] sm:$0xff]
        %v911 = vld [vmem:[%s288 + $0x580] sm:$0xff]
        %v912 = vld [vmem:[%s288 + $0x588] sm:$0xff]
        %v913 = vld [vmem:[%s288 + $0x590] sm:$0xff]
        %v914 = vld [vmem:[%s288 + $0x598] sm:$0xff]
        %v915 = vld [vmem:[%s288 + $0x5a0] sm:$0xff]
        %v916 = vld [vmem:[%s288 + $0x5a8] sm:$0xff]
        %v917 = vld [vmem:[%s288 + $0x5b0] sm:$0xff]
        %v918 = vld [vmem:[%s288 + $0x5b8] sm:$0xff]
        %v919 = vld [vmem:[%s288 + $0x5c0] sm:$0xff]
        %v920 = vld [vmem:[%s288 + $0x5c8] sm:$0xff]
        %v921 = vld [vmem:[%s288 + $0x5d0] sm:$0xff]
        %v922 = vld [vmem:[%s288 + $0x5d8] sm:$0xff]
        %v923 = vld [vmem:[%s288 + $0x5e0] sm:$0xff]
        %v924 = vld [vmem:[%s288 + $0x5e8] sm:$0xff]
        %v925 = vld [vmem:[%s288 + $0x5f0] sm:$0xff]
        %v926 = vld [vmem:[%s288 + $0x5f8] sm:$0xff]
        %v927 = vld [vmem:[%s288 + $0x600] sm:$0xff]
        %v928 = vld [vmem:[%s288 + $0x608] sm:$0xff]
        %v929 = vld [vmem:[%s288 + $0x610] sm:$0xff]
        %v930 = vld [vmem:[%s288 + $0x618] sm:$0xff]
        %v931 = vld [vmem:[%s288 + $0x620] sm:$0xff]
        %v932 = vld [vmem:[%s288 + $0x628] sm:$0xff]
        %v933 = vld [vmem:[%s288 + $0x630] sm:$0xff]
        %v934 = vld [vmem:[%s288 + $0x638] sm:$0xff]
        %v935 = vld [vmem:[%s288 + $0x640] sm:$0xff]
        %v936 = vld [vmem:[%s288 + $0x648] sm:$0xff]
        %v937 = vld [vmem:[%s288 + $0x650] sm:$0xff]
        %v938 = vld [vmem:[%s288 + $0x658] sm:$0xff]
        %v939 = vld [vmem:[%s288 + $0x660] sm:$0xff]
        %v940 = vld [vmem:[%s288 + $0x668] sm:$0xff]
        %v941 = vld [vmem:[%s288 + $0x670] sm:$0xff]
        %v942 = vld [vmem:[%s288 + $0x678] sm:$0xff]
        %v943 = vld [vmem:[%s288 + $0x680] sm:$0xff]
        %v944 = vld [vmem:[%s288 + $0x688] sm:$0xff]
        %v945 = vld [vmem:[%s288 + $0x690] sm:$0xff]
        %v946 = vld [vmem:[%s288 + $0x698] sm:$0xff]
        %v947 = vld [vmem:[%s288 + $0x6a0] sm:$0xff]
        %v948 = vld [vmem:[%s288 + $0x6a8] sm:$0xff]
        %v949 = vld [vmem:[%s288 + $0x6b0] sm:$0xff]
        %v950 = vld [vmem:[%s288 + $0x6b8] sm:$0xff]
        %v951 = vld [vmem:[%s288 + $0x6c0] sm:$0xff]
        %v952 = vld [vmem:[%s288 + $0x6c8] sm:$0xff]
        %v953 = vld [vmem:[%s288 + $0x6d0] sm:$0xff]
        %v954 = vld [vmem:[%s288 + $0x6d8] sm:$0xff]
        %v955 = vld [vmem:[%s288 + $0x6e0] sm:$0xff]
        %v956 = vld [vmem:[%s288 + $0x6e8] sm:$0xff]
        %v957 = vld [vmem:[%s288 + $0x6f0] sm:$0xff]
        %v958 = vld [vmem:[%s288 + $0x6f8] sm:$0xff]
        %v959 = vld [vmem:[%s288 + $0x700] sm:$0xff]
        %v960 = vld [vmem:[%s288 + $0x708] sm:$0xff]
        %v961 = vld [vmem:[%s288 + $0x710] sm:$0xff]
        %v962 = vld [vmem:[%s288 + $0x718] sm:$0xff]
        %v963 = vld [vmem:[%s288 + $0x720] sm:$0xff]
        %v964 = vld [vmem:[%s288 + $0x728] sm:$0xff]
        %v965 = vld [vmem:[%s288 + $0x730] sm:$0xff]
        %v966 = vld [vmem:[%s288 + $0x738] sm:$0xff]
        %v967 = vld [vmem:[%s288 + $0x740] sm:$0xff]
        %v968 = vld [vmem:[%s288 + $0x748] sm:$0xff]
        %v969 = vld [vmem:[%s288 + $0x750] sm:$0xff]
        %v970 = vld [vmem:[%s288 + $0x758] sm:$0xff]
        %v971 = vld [vmem:[%s288 + $0x760] sm:$0xff]
        %v972 = vld [vmem:[%s288 + $0x768] sm:$0xff]
        %v973 = vld [vmem:[%s288 + $0x770] sm:$0xff]
        %v974 = vld [vmem:[%s288 + $0x778] sm:$0xff]
        %v975 = vld [vmem:[%s288 + $0x780] sm:$0xff]
        %v976 = vld [vmem:[%s288 + $0x788] sm:$0xff]
        %v977 = vld [vmem:[%s288 + $0x790] sm:$0xff]
        %v978 = vld [vmem:[%s288 + $0x798] sm:$0xff]
        %v979 = vld [vmem:[%s288 + $0x7a0] sm:$0xff]
        %v980 = vld [vmem:[%s288 + $0x7a8] sm:$0xff]
        %v981 = vld [vmem:[%s288 + $0x7b0] sm:$0xff]
        %v982 = vld [vmem:[%s288 + $0x7b8] sm:$0xff]
        %v983 = vld [vmem:[%s288 + $0x7c0] sm:$0xff]
        %v984 = vld [vmem:[%s288 + $0x7c8] sm:$0xff]
        %v985 = vld [vmem:[%s288 + $0x7d0] sm:$0xff]
        %v986 = vld [vmem:[%s288 + $0x7d8] sm:$0xff]
        %v987 = vld [vmem:[%s288 + $0x7e0] sm:$0xff]
        %v988 = vld [vmem:[%s288 + $0x7e8] sm:$0xff]
        %v989 = vld [vmem:[%s288 + $0x7f0] sm:$0xff]
        %v990 = vld [vmem:[%s288 + $0x7f8] sm:$0xff]
        %v991 = vld [vmem:[%s297] sm:$0xff]
        %v993 = vlaneseq
        %v994 = vshrl.u32 %v993, 7
        %v995 = vsub.s32 0, %v994
        %v996 = vrot.slane %v991, %v995
        %v997 = vlaneseq
        %v998 = vshrl.u32 %v997, 7
        %v999 = vsub.s32 1, %v998
        %v1000 = vrot.slane %v991, %v999
        %v1001 = vlaneseq
        %v1002 = vshrl.u32 %v1001, 7
        %v1003 = vsub.s32 2, %v1002
        %v1004 = vrot.slane %v991, %v1003
        %v1005 = vlaneseq
        %v1006 = vshrl.u32 %v1005, 7
        %v1007 = vsub.s32 3, %v1006
        %v1008 = vrot.slane %v991, %v1007
        %v1009 = vlaneseq
        %v1010 = vshrl.u32 %v1009, 7
        %v1011 = vsub.s32 4, %v1010
        %v1012 = vrot.slane %v991, %v1011
        %v1013 = vlaneseq
        %v1014 = vshrl.u32 %v1013, 7
        %v1015 = vsub.s32 5, %v1014
        %v1016 = vrot.slane %v991, %v1015
        %v1017 = vlaneseq
        %v1018 = vshrl.u32 %v1017, 7
        %v1019 = vsub.s32 6, %v1018
        %v1020 = vrot.slane %v991, %v1019
        %v1021 = vlaneseq
        %v1022 = vshrl.u32 %v1021, 7
        %v1023 = vsub.s32 7, %v1022
        %v1024 = vrot.slane %v991, %v1023
        %v1289 = vunpack.c.l.b16 %v735
        %v1290 = vunpack.c.h.b16 %v735
        %v1291 = vunpack.c.l.b16 %v736
        %v1292 = vunpack.c.h.b16 %v736
        %v1293 = vunpack.c.l.b16 %v737
        %v1294 = vunpack.c.h.b16 %v737
        %v1295 = vunpack.c.l.b16 %v738
        %v1296 = vunpack.c.h.b16 %v738
        %v1297 = vunpack.c.l.b16 %v739
        %v1298 = vunpack.c.h.b16 %v739
        %v1299 = vunpack.c.l.b16 %v740
        %v1300 = vunpack.c.h.b16 %v740
        %v1301 = vunpack.c.l.b16 %v741
        %v1302 = vunpack.c.h.b16 %v741
        %v1303 = vunpack.c.l.b16 %v742
        %v1304 = vunpack.c.h.b16 %v742
        %v1305 = vunpack.c.l.b16 %v743
        %v1306 = vunpack.c.h.b16 %v743
        %v1307 = vunpack.c.l.b16 %v744
        %v1308 = vunpack.c.h.b16 %v744
        %v1309 = vunpack.c.l.b16 %v745
        %v1310 = vunpack.c.h.b16 %v745
        %v1311 = vunpack.c.l.b16 %v746
        %v1312 = vunpack.c.h.b16 %v746
        %v1313 = vunpack.c.l.b16 %v747
        %v1314 = vunpack.c.h.b16 %v747
        %v1315 = vunpack.c.l.b16 %v748
        %v1316 = vunpack.c.h.b16 %v748
        %v1317 = vunpack.c.l.b16 %v749
        %v1318 = vunpack.c.h.b16 %v749
        %v1319 = vunpack.c.l.b16 %v750
        %v1320 = vunpack.c.h.b16 %v750
        %v1321 = vunpack.c.l.b16 %v751
        %v1322 = vunpack.c.h.b16 %v751
        %v1323 = vunpack.c.l.b16 %v752
        %v1324 = vunpack.c.h.b16 %v752
        %v1325 = vunpack.c.l.b16 %v753
        %v1326 = vunpack.c.h.b16 %v753
        %v1327 = vunpack.c.l.b16 %v754
        %v1328 = vunpack.c.h.b16 %v754
        %v1329 = vunpack.c.l.b16 %v755
        %v1330 = vunpack.c.h.b16 %v755
        %v1331 = vunpack.c.l.b16 %v756
        %v1332 = vunpack.c.h.b16 %v756
        %v1333 = vunpack.c.l.b16 %v757
        %v1334 = vunpack.c.h.b16 %v757
        %v1335 = vunpack.c.l.b16 %v758
        %v1336 = vunpack.c.h.b16 %v758
        %v1337 = vunpack.c.l.b16 %v759
        %v1338 = vunpack.c.h.b16 %v759
        %v1339 = vunpack.c.l.b16 %v760
        %v1340 = vunpack.c.h.b16 %v760
        %v1341 = vunpack.c.l.b16 %v761
        %v1342 = vunpack.c.h.b16 %v761
        %v1343 = vunpack.c.l.b16 %v762
        %v1344 = vunpack.c.h.b16 %v762
        %v1345 = vunpack.c.l.b16 %v763
        %v1346 = vunpack.c.h.b16 %v763
        %v1347 = vunpack.c.l.b16 %v764
        %v1348 = vunpack.c.h.b16 %v764
        %v1349 = vunpack.c.l.b16 %v765
        %v1350 = vunpack.c.h.b16 %v765
        %v1351 = vunpack.c.l.b16 %v766
        %v1352 = vunpack.c.h.b16 %v766
        %v1353 = vunpack.c.l.b16 %v767
        %v1354 = vunpack.c.h.b16 %v767
        %v1355 = vunpack.c.l.b16 %v768
        %v1356 = vunpack.c.h.b16 %v768
        %v1357 = vunpack.c.l.b16 %v769
        %v1358 = vunpack.c.h.b16 %v769
        %v1359 = vunpack.c.l.b16 %v770
        %v1360 = vunpack.c.h.b16 %v770
        %v1361 = vunpack.c.l.b16 %v771
        %v1362 = vunpack.c.h.b16 %v771
        %v1363 = vunpack.c.l.b16 %v772
        %v1364 = vunpack.c.h.b16 %v772
        %v1365 = vunpack.c.l.b16 %v773
        %v1366 = vunpack.c.h.b16 %v773
        %v1367 = vunpack.c.l.b16 %v774
        %v1368 = vunpack.c.h.b16 %v774
        %v1369 = vunpack.c.l.b16 %v775
        %v1370 = vunpack.c.h.b16 %v775
        %v1371 = vunpack.c.l.b16 %v776
        %v1372 = vunpack.c.h.b16 %v776
        %v1373 = vunpack.c.l.b16 %v777
        %v1374 = vunpack.c.h.b16 %v777
        %v1375 = vunpack.c.l.b16 %v778
        %v1376 = vunpack.c.h.b16 %v778
        %v1377 = vunpack.c.l.b16 %v779
        %v1378 = vunpack.c.h.b16 %v779
        %v1379 = vunpack.c.l.b16 %v780
        %v1380 = vunpack.c.h.b16 %v780
        %v1381 = vunpack.c.l.b16 %v781
        %v1382 = vunpack.c.h.b16 %v781
        %v1383 = vunpack.c.l.b16 %v782
        %v1384 = vunpack.c.h.b16 %v782
        %v1385 = vunpack.c.l.b16 %v783
        %v1386 = vunpack.c.h.b16 %v783
        %v1387 = vunpack.c.l.b16 %v784
        %v1388 = vunpack.c.h.b16 %v784
        %v1389 = vunpack.c.l.b16 %v785
        %v1390 = vunpack.c.h.b16 %v785
        %v1391 = vunpack.c.l.b16 %v786
        %v1392 = vunpack.c.h.b16 %v786
        %v1393 = vunpack.c.l.b16 %v787
        %v1394 = vunpack.c.h.b16 %v787
        %v1395 = vunpack.c.l.b16 %v788
        %v1396 = vunpack.c.h.b16 %v788
        %v1397 = vunpack.c.l.b16 %v789
        %v1398 = vunpack.c.h.b16 %v789
        %v1399 = vunpack.c.l.b16 %v790
        %v1400 = vunpack.c.h.b16 %v790
        %v1401 = vunpack.c.l.b16 %v791
        %v1402 = vunpack.c.h.b16 %v791
        %v1403 = vunpack.c.l.b16 %v792
        %v1404 = vunpack.c.h.b16 %v792
        %v1405 = vunpack.c.l.b16 %v793
        %v1406 = vunpack.c.h.b16 %v793
        %v1407 = vunpack.c.l.b16 %v794
        %v1408 = vunpack.c.h.b16 %v794
        %v1409 = vunpack.c.l.b16 %v795
        %v1410 = vunpack.c.h.b16 %v795
        %v1411 = vunpack.c.l.b16 %v796
        %v1412 = vunpack.c.h.b16 %v796
        %v1413 = vunpack.c.l.b16 %v797
        %v1414 = vunpack.c.h.b16 %v797
        %v1415 = vunpack.c.l.b16 %v798
        %v1416 = vunpack.c.h.b16 %v798
        %v1417 = vunpack.c.l.b16 %v799
        %v1418 = vunpack.c.h.b16 %v799
        %v1419 = vunpack.c.l.b16 %v800
        %v1420 = vunpack.c.h.b16 %v800
        %v1421 = vunpack.c.l.b16 %v801
        %v1422 = vunpack.c.h.b16 %v801
        %v1423 = vunpack.c.l.b16 %v802
        %v1424 = vunpack.c.h.b16 %v802
        %v1425 = vunpack.c.l.b16 %v803
        %v1426 = vunpack.c.h.b16 %v803
        %v1427 = vunpack.c.l.b16 %v804
        %v1428 = vunpack.c.h.b16 %v804
        %v1429 = vunpack.c.l.b16 %v805
        %v1430 = vunpack.c.h.b16 %v805
        %v1431 = vunpack.c.l.b16 %v806
        %v1432 = vunpack.c.h.b16 %v806
        %v1433 = vunpack.c.l.b16 %v807
        %v1434 = vunpack.c.h.b16 %v807
        %v1435 = vunpack.c.l.b16 %v808
        %v1436 = vunpack.c.h.b16 %v808
        %v1437 = vunpack.c.l.b16 %v809
        %v1438 = vunpack.c.h.b16 %v809
        %v1439 = vunpack.c.l.b16 %v810
        %v1440 = vunpack.c.h.b16 %v810
        %v1441 = vunpack.c.l.b16 %v811
        %v1442 = vunpack.c.h.b16 %v811
        %v1443 = vunpack.c.l.b16 %v812
        %v1444 = vunpack.c.h.b16 %v812
        %v1445 = vunpack.c.l.b16 %v813
        %v1446 = vunpack.c.h.b16 %v813
        %v1447 = vunpack.c.l.b16 %v814
        %v1448 = vunpack.c.h.b16 %v814
        %v1449 = vunpack.c.l.b16 %v815
        %v1450 = vunpack.c.h.b16 %v815
        %v1451 = vunpack.c.l.b16 %v816
        %v1452 = vunpack.c.h.b16 %v816
        %v1453 = vunpack.c.l.b16 %v817
        %v1454 = vunpack.c.h.b16 %v817
        %v1455 = vunpack.c.l.b16 %v818
        %v1456 = vunpack.c.h.b16 %v818
        %v1457 = vunpack.c.l.b16 %v819
        %v1458 = vunpack.c.h.b16 %v819
        %v1459 = vunpack.c.l.b16 %v820
        %v1460 = vunpack.c.h.b16 %v820
        %v1461 = vunpack.c.l.b16 %v821
        %v1462 = vunpack.c.h.b16 %v821
        %v1463 = vunpack.c.l.b16 %v822
        %v1464 = vunpack.c.h.b16 %v822
        %v1465 = vunpack.c.l.b16 %v823
        %v1466 = vunpack.c.h.b16 %v823
        %v1467 = vunpack.c.l.b16 %v824
        %v1468 = vunpack.c.h.b16 %v824
        %v1469 = vunpack.c.l.b16 %v825
        %v1470 = vunpack.c.h.b16 %v825
        %v1471 = vunpack.c.l.b16 %v826
        %v1472 = vunpack.c.h.b16 %v826
        %v1473 = vunpack.c.l.b16 %v827
        %v1474 = vunpack.c.h.b16 %v827
        %v1475 = vunpack.c.l.b16 %v828
        %v1476 = vunpack.c.h.b16 %v828
        %v1477 = vunpack.c.l.b16 %v829
        %v1478 = vunpack.c.h.b16 %v829
        %v1479 = vunpack.c.l.b16 %v830
        %v1480 = vunpack.c.h.b16 %v830
        %v1481 = vunpack.c.l.b16 %v831
        %v1482 = vunpack.c.h.b16 %v831
        %v1483 = vunpack.c.l.b16 %v832
        %v1484 = vunpack.c.h.b16 %v832
        %v1485 = vunpack.c.l.b16 %v833
        %v1486 = vunpack.c.h.b16 %v833
        %v1487 = vunpack.c.l.b16 %v834
        %v1488 = vunpack.c.h.b16 %v834
        %v1489 = vunpack.c.l.b16 %v835
        %v1490 = vunpack.c.h.b16 %v835
        %v1491 = vunpack.c.l.b16 %v836
        %v1492 = vunpack.c.h.b16 %v836
        %v1493 = vunpack.c.l.b16 %v837
        %v1494 = vunpack.c.h.b16 %v837
        %v1495 = vunpack.c.l.b16 %v838
        %v1496 = vunpack.c.h.b16 %v838
        %v1497 = vunpack.c.l.b16 %v839
        %v1498 = vunpack.c.h.b16 %v839
        %v1499 = vunpack.c.l.b16 %v840
        %v1500 = vunpack.c.h.b16 %v840
        %v1501 = vunpack.c.l.b16 %v841
        %v1502 = vunpack.c.h.b16 %v841
        %v1503 = vunpack.c.l.b16 %v842
        %v1504 = vunpack.c.h.b16 %v842
        %v1505 = vunpack.c.l.b16 %v843
        %v1506 = vunpack.c.h.b16 %v843
        %v1507 = vunpack.c.l.b16 %v844
        %v1508 = vunpack.c.h.b16 %v844
        %v1509 = vunpack.c.l.b16 %v845
        %v1510 = vunpack.c.h.b16 %v845
        %v1511 = vunpack.c.l.b16 %v846
        %v1512 = vunpack.c.h.b16 %v846
        %v1513 = vunpack.c.l.b16 %v847
        %v1514 = vunpack.c.h.b16 %v847
        %v1515 = vunpack.c.l.b16 %v848
        %v1516 = vunpack.c.h.b16 %v848
        %v1517 = vunpack.c.l.b16 %v849
        %v1518 = vunpack.c.h.b16 %v849
        %v1519 = vunpack.c.l.b16 %v850
        %v1520 = vunpack.c.h.b16 %v850
        %v1521 = vunpack.c.l.b16 %v851
        %v1522 = vunpack.c.h.b16 %v851
        %v1523 = vunpack.c.l.b16 %v852
        %v1524 = vunpack.c.h.b16 %v852
        %v1525 = vunpack.c.l.b16 %v853
        %v1526 = vunpack.c.h.b16 %v853
        %v1527 = vunpack.c.l.b16 %v854
        %v1528 = vunpack.c.h.b16 %v854
        %v1529 = vunpack.c.l.b16 %v855
        %v1530 = vunpack.c.h.b16 %v855
        %v1531 = vunpack.c.l.b16 %v856
        %v1532 = vunpack.c.h.b16 %v856
        %v1533 = vunpack.c.l.b16 %v857
        %v1534 = vunpack.c.h.b16 %v857
        %v1535 = vunpack.c.l.b16 %v858
        %v1536 = vunpack.c.h.b16 %v858
        %v1537 = vunpack.c.l.b16 %v859
        %v1538 = vunpack.c.h.b16 %v859
        %v1539 = vunpack.c.l.b16 %v860
        %v1540 = vunpack.c.h.b16 %v860
        %v1541 = vunpack.c.l.b16 %v861
        %v1542 = vunpack.c.h.b16 %v861
        %v1543 = vunpack.c.l.b16 %v862
        %v1544 = vunpack.c.h.b16 %v862
        %v1545 = vunpack.c.l.b16 %v863
        %v1546 = vunpack.c.h.b16 %v863
        %v1547 = vunpack.c.l.b16 %v864
        %v1548 = vunpack.c.h.b16 %v864
        %v1549 = vunpack.c.l.b16 %v865
        %v1550 = vunpack.c.h.b16 %v865
        %v1551 = vunpack.c.l.b16 %v866
        %v1552 = vunpack.c.h.b16 %v866
        %v1553 = vunpack.c.l.b16 %v867
        %v1554 = vunpack.c.h.b16 %v867
        %v1555 = vunpack.c.l.b16 %v868
        %v1556 = vunpack.c.h.b16 %v868
        %v1557 = vunpack.c.l.b16 %v869
        %v1558 = vunpack.c.h.b16 %v869
        %v1559 = vunpack.c.l.b16 %v870
        %v1560 = vunpack.c.h.b16 %v870
        %v1561 = vunpack.c.l.b16 %v871
        %v1562 = vunpack.c.h.b16 %v871
        %v1563 = vunpack.c.l.b16 %v872
        %v1564 = vunpack.c.h.b16 %v872
        %v1565 = vunpack.c.l.b16 %v873
        %v1566 = vunpack.c.h.b16 %v873
        %v1567 = vunpack.c.l.b16 %v874
        %v1568 = vunpack.c.h.b16 %v874
        %v1569 = vunpack.c.l.b16 %v875
        %v1570 = vunpack.c.h.b16 %v875
        %v1571 = vunpack.c.l.b16 %v876
        %v1572 = vunpack.c.h.b16 %v876
        %v1573 = vunpack.c.l.b16 %v877
        %v1574 = vunpack.c.h.b16 %v877
        %v1575 = vunpack.c.l.b16 %v878
        %v1576 = vunpack.c.h.b16 %v878
        %v1577 = vunpack.c.l.b16 %v879
        %v1578 = vunpack.c.h.b16 %v879
        %v1579 = vunpack.c.l.b16 %v880
        %v1580 = vunpack.c.h.b16 %v880
        %v1581 = vunpack.c.l.b16 %v881
        %v1582 = vunpack.c.h.b16 %v881
        %v1583 = vunpack.c.l.b16 %v882
        %v1584 = vunpack.c.h.b16 %v882
        %v1585 = vunpack.c.l.b16 %v883
        %v1586 = vunpack.c.h.b16 %v883
        %v1587 = vunpack.c.l.b16 %v884
        %v1588 = vunpack.c.h.b16 %v884
        %v1589 = vunpack.c.l.b16 %v885
        %v1590 = vunpack.c.h.b16 %v885
        %v1591 = vunpack.c.l.b16 %v886
        %v1592 = vunpack.c.h.b16 %v886
        %v1593 = vunpack.c.l.b16 %v887
        %v1594 = vunpack.c.h.b16 %v887
        %v1595 = vunpack.c.l.b16 %v888
        %v1596 = vunpack.c.h.b16 %v888
        %v1597 = vunpack.c.l.b16 %v889
        %v1598 = vunpack.c.h.b16 %v889
        %v1599 = vunpack.c.l.b16 %v890
        %v1600 = vunpack.c.h.b16 %v890
        %v1601 = vunpack.c.l.b16 %v891
        %v1602 = vunpack.c.h.b16 %v891
        %v1603 = vunpack.c.l.b16 %v892
        %v1604 = vunpack.c.h.b16 %v892
        %v1605 = vunpack.c.l.b16 %v893
        %v1606 = vunpack.c.h.b16 %v893
        %v1607 = vunpack.c.l.b16 %v894
        %v1608 = vunpack.c.h.b16 %v894
        %v1609 = vunpack.c.l.b16 %v895
        %v1610 = vunpack.c.h.b16 %v895
        %v1611 = vunpack.c.l.b16 %v896
        %v1612 = vunpack.c.h.b16 %v896
        %v1613 = vunpack.c.l.b16 %v897
        %v1614 = vunpack.c.h.b16 %v897
        %v1615 = vunpack.c.l.b16 %v898
        %v1616 = vunpack.c.h.b16 %v898
        %v1617 = vunpack.c.l.b16 %v899
        %v1618 = vunpack.c.h.b16 %v899
        %v1619 = vunpack.c.l.b16 %v900
        %v1620 = vunpack.c.h.b16 %v900
        %v1621 = vunpack.c.l.b16 %v901
        %v1622 = vunpack.c.h.b16 %v901
        %v1623 = vunpack.c.l.b16 %v902
        %v1624 = vunpack.c.h.b16 %v902
        %v1625 = vunpack.c.l.b16 %v903
        %v1626 = vunpack.c.h.b16 %v903
        %v1627 = vunpack.c.l.b16 %v904
        %v1628 = vunpack.c.h.b16 %v904
        %v1629 = vunpack.c.l.b16 %v905
        %v1630 = vunpack.c.h.b16 %v905
        %v1631 = vunpack.c.l.b16 %v906
        %v1632 = vunpack.c.h.b16 %v906
        %v1633 = vunpack.c.l.b16 %v907
        %v1634 = vunpack.c.h.b16 %v907
        %v1635 = vunpack.c.l.b16 %v908
        %v1636 = vunpack.c.h.b16 %v908
        %v1637 = vunpack.c.l.b16 %v909
        %v1638 = vunpack.c.h.b16 %v909
        %v1639 = vunpack.c.l.b16 %v910
        %v1640 = vunpack.c.h.b16 %v910
        %v1641 = vunpack.c.l.b16 %v911
        %v1642 = vunpack.c.h.b16 %v911
        %v1643 = vunpack.c.l.b16 %v912
        %v1644 = vunpack.c.h.b16 %v912
        %v1645 = vunpack.c.l.b16 %v913
        %v1646 = vunpack.c.h.b16 %v913
        %v1647 = vunpack.c.l.b16 %v914
        %v1648 = vunpack.c.h.b16 %v914
        %v1649 = vunpack.c.l.b16 %v915
        %v1650 = vunpack.c.h.b16 %v915
        %v1651 = vunpack.c.l.b16 %v916
        %v1652 = vunpack.c.h.b16 %v916
        %v1653 = vunpack.c.l.b16 %v917
        %v1654 = vunpack.c.h.b16 %v917
        %v1655 = vunpack.c.l.b16 %v918
        %v1656 = vunpack.c.h.b16 %v918
        %v1657 = vunpack.c.l.b16 %v919
        %v1658 = vunpack.c.h.b16 %v919
        %v1659 = vunpack.c.l.b16 %v920
        %v1660 = vunpack.c.h.b16 %v920
        %v1661 = vunpack.c.l.b16 %v921
        %v1662 = vunpack.c.h.b16 %v921
        %v1663 = vunpack.c.l.b16 %v922
        %v1664 = vunpack.c.h.b16 %v922
        %v1665 = vunpack.c.l.b16 %v923
        %v1666 = vunpack.c.h.b16 %v923
        %v1667 = vunpack.c.l.b16 %v924
        %v1668 = vunpack.c.h.b16 %v924
        %v1669 = vunpack.c.l.b16 %v925
        %v1670 = vunpack.c.h.b16 %v925
        %v1671 = vunpack.c.l.b16 %v926
        %v1672 = vunpack.c.h.b16 %v926
        %v1673 = vunpack.c.l.b16 %v927
        %v1674 = vunpack.c.h.b16 %v927
        %v1675 = vunpack.c.l.b16 %v928
        %v1676 = vunpack.c.h.b16 %v928
        %v1677 = vunpack.c.l.b16 %v929
        %v1678 = vunpack.c.h.b16 %v929
        %v1679 = vunpack.c.l.b16 %v930
        %v1680 = vunpack.c.h.b16 %v930
        %v1681 = vunpack.c.l.b16 %v931
        %v1682 = vunpack.c.h.b16 %v931
        %v1683 = vunpack.c.l.b16 %v932
        %v1684 = vunpack.c.h.b16 %v932
        %v1685 = vunpack.c.l.b16 %v933
        %v1686 = vunpack.c.h.b16 %v933
        %v1687 = vunpack.c.l.b16 %v934
        %v1688 = vunpack.c.h.b16 %v934
        %v1689 = vunpack.c.l.b16 %v935
        %v1690 = vunpack.c.h.b16 %v935
        %v1691 = vunpack.c.l.b16 %v936
        %v1692 = vunpack.c.h.b16 %v936
        %v1693 = vunpack.c.l.b16 %v937
        %v1694 = vunpack.c.h.b16 %v937
        %v1695 = vunpack.c.l.b16 %v938
        %v1696 = vunpack.c.h.b16 %v938
        %v1697 = vunpack.c.l.b16 %v939
        %v1698 = vunpack.c.h.b16 %v939
        %v1699 = vunpack.c.l.b16 %v940
        %v1700 = vunpack.c.h.b16 %v940
        %v1701 = vunpack.c.l.b16 %v941
        %v1702 = vunpack.c.h.b16 %v941
        %v1703 = vunpack.c.l.b16 %v942
        %v1704 = vunpack.c.h.b16 %v942
        %v1705 = vunpack.c.l.b16 %v943
        %v1706 = vunpack.c.h.b16 %v943
        %v1707 = vunpack.c.l.b16 %v944
        %v1708 = vunpack.c.h.b16 %v944
        %v1709 = vunpack.c.l.b16 %v945
        %v1710 = vunpack.c.h.b16 %v945
        %v1711 = vunpack.c.l.b16 %v946
        %v1712 = vunpack.c.h.b16 %v946
        %v1713 = vunpack.c.l.b16 %v947
        %v1714 = vunpack.c.h.b16 %v947
        %v1715 = vunpack.c.l.b16 %v948
        %v1716 = vunpack.c.h.b16 %v948
        %v1717 = vunpack.c.l.b16 %v949
        %v1718 = vunpack.c.h.b16 %v949
        %v1719 = vunpack.c.l.b16 %v950
        %v1720 = vunpack.c.h.b16 %v950
        %v1721 = vunpack.c.l.b16 %v951
        %v1722 = vunpack.c.h.b16 %v951
        %v1723 = vunpack.c.l.b16 %v952
        %v1724 = vunpack.c.h.b16 %v952
        %v1725 = vunpack.c.l.b16 %v953
        %v1726 = vunpack.c.h.b16 %v953
        %v1727 = vunpack.c.l.b16 %v954
        %v1728 = vunpack.c.h.b16 %v954
        %v1729 = vunpack.c.l.b16 %v955
        %v1730 = vunpack.c.h.b16 %v955
        %v1731 = vunpack.c.l.b16 %v956
        %v1732 = vunpack.c.h.b16 %v956
        %v1733 = vunpack.c.l.b16 %v957
        %v1734 = vunpack.c.h.b16 %v957
        %v1735 = vunpack.c.l.b16 %v958
        %v1736 = vunpack.c.h.b16 %v958
        %v1737 = vunpack.c.l.b16 %v959
        %v1738 = vunpack.c.h.b16 %v959
        %v1739 = vunpack.c.l.b16 %v960
        %v1740 = vunpack.c.h.b16 %v960
        %v1741 = vunpack.c.l.b16 %v961
        %v1742 = vunpack.c.h.b16 %v961
        %v1743 = vunpack.c.l.b16 %v962
        %v1744 = vunpack.c.h.b16 %v962
        %v1745 = vunpack.c.l.b16 %v963
        %v1746 = vunpack.c.h.b16 %v963
        %v1747 = vunpack.c.l.b16 %v964
        %v1748 = vunpack.c.h.b16 %v964
        %v1749 = vunpack.c.l.b16 %v965
        %v1750 = vunpack.c.h.b16 %v965
        %v1751 = vunpack.c.l.b16 %v966
        %v1752 = vunpack.c.h.b16 %v966
        %v1753 = vunpack.c.l.b16 %v967
        %v1754 = vunpack.c.h.b16 %v967
        %v1755 = vunpack.c.l.b16 %v968
        %v1756 = vunpack.c.h.b16 %v968
        %v1757 = vunpack.c.l.b16 %v969
        %v1758 = vunpack.c.h.b16 %v969
        %v1759 = vunpack.c.l.b16 %v970
        %v1760 = vunpack.c.h.b16 %v970
        %v1761 = vunpack.c.l.b16 %v971
        %v1762 = vunpack.c.h.b16 %v971
        %v1763 = vunpack.c.l.b16 %v972
        %v1764 = vunpack.c.h.b16 %v972
        %v1765 = vunpack.c.l.b16 %v973
        %v1766 = vunpack.c.h.b16 %v973
        %v1767 = vunpack.c.l.b16 %v974
        %v1768 = vunpack.c.h.b16 %v974
        %v1769 = vunpack.c.l.b16 %v975
        %v1770 = vunpack.c.h.b16 %v975
        %v1771 = vunpack.c.l.b16 %v976
        %v1772 = vunpack.c.h.b16 %v976
        %v1773 = vunpack.c.l.b16 %v977
        %v1774 = vunpack.c.h.b16 %v977
        %v1775 = vunpack.c.l.b16 %v978
        %v1776 = vunpack.c.h.b16 %v978
        %v1777 = vunpack.c.l.b16 %v979
        %v1778 = vunpack.c.h.b16 %v979
        %v1779 = vunpack.c.l.b16 %v980
        %v1780 = vunpack.c.h.b16 %v980
        %v1781 = vunpack.c.l.b16 %v981
        %v1782 = vunpack.c.h.b16 %v981
        %v1783 = vunpack.c.l.b16 %v982
        %v1784 = vunpack.c.h.b16 %v982
        %v1785 = vunpack.c.l.b16 %v983
        %v1786 = vunpack.c.h.b16 %v983
        %v1787 = vunpack.c.l.b16 %v984
        %v1788 = vunpack.c.h.b16 %v984
        %v1789 = vunpack.c.l.b16 %v985
        %v1790 = vunpack.c.h.b16 %v985
        %v1791 = vunpack.c.l.b16 %v986
        %v1792 = vunpack.c.h.b16 %v986
        %v1793 = vunpack.c.l.b16 %v987
        %v1794 = vunpack.c.h.b16 %v987
        %v1795 = vunpack.c.l.b16 %v988
        %v1796 = vunpack.c.h.b16 %v988
        %v1797 = vunpack.c.l.b16 %v989
        %v1798 = vunpack.c.h.b16 %v989
        %v1799 = vunpack.c.l.b16 %v990
        %v1800 = vunpack.c.h.b16 %v990
        %v1801 = vpack.c.b16 %v1297, %v1289
        %v1802 = vpack.c.b16 %v1298, %v1290
        %v1803 = vpack.c.b16 %v1299, %v1291
        %v1804 = vpack.c.b16 %v1300, %v1292
        %v1805 = vpack.c.b16 %v1301, %v1293
        %v1806 = vpack.c.b16 %v1302, %v1294
        %v1807 = vpack.c.b16 %v1303, %v1295
        %v1808 = vpack.c.b16 %v1304, %v1296
        %v1809 = vpack.c.b16 %v1313, %v1305
        %v1810 = vpack.c.b16 %v1314, %v1306
        %v1811 = vpack.c.b16 %v1315, %v1307
        %v1812 = vpack.c.b16 %v1316, %v1308
        %v1813 = vpack.c.b16 %v1317, %v1309
        %v1814 = vpack.c.b16 %v1318, %v1310
        %v1815 = vpack.c.b16 %v1319, %v1311
        %v1816 = vpack.c.b16 %v1320, %v1312
        %v1817 = vpack.c.b16 %v1329, %v1321
        %v1818 = vpack.c.b16 %v1330, %v1322
        %v1819 = vpack.c.b16 %v1331, %v1323
        %v1820 = vpack.c.b16 %v1332, %v1324
        %v1821 = vpack.c.b16 %v1333, %v1325
        %v1822 = vpack.c.b16 %v1334, %v1326
        %v1823 = vpack.c.b16 %v1335, %v1327
        %v1824 = vpack.c.b16 %v1336, %v1328
        %v1825 = vpack.c.b16 %v1345, %v1337
        %v1826 = vpack.c.b16 %v1346, %v1338
        %v1827 = vpack.c.b16 %v1347, %v1339
        %v1828 = vpack.c.b16 %v1348, %v1340
        %v1829 = vpack.c.b16 %v1349, %v1341
        %v1830 = vpack.c.b16 %v1350, %v1342
        %v1831 = vpack.c.b16 %v1351, %v1343
        %v1832 = vpack.c.b16 %v1352, %v1344
        %v1833 = vpack.c.b16 %v1361, %v1353
        %v1834 = vpack.c.b16 %v1362, %v1354
        %v1835 = vpack.c.b16 %v1363, %v1355
        %v1836 = vpack.c.b16 %v1364, %v1356
        %v1837 = vpack.c.b16 %v1365, %v1357
        %v1838 = vpack.c.b16 %v1366, %v1358
        %v1839 = vpack.c.b16 %v1367, %v1359
        %v1840 = vpack.c.b16 %v1368, %v1360
        %v1841 = vpack.c.b16 %v1377, %v1369
        %v1842 = vpack.c.b16 %v1378, %v1370
        %v1843 = vpack.c.b16 %v1379, %v1371
        %v1844 = vpack.c.b16 %v1380, %v1372
        %v1845 = vpack.c.b16 %v1381, %v1373
        %v1846 = vpack.c.b16 %v1382, %v1374
        %v1847 = vpack.c.b16 %v1383, %v1375
        %v1848 = vpack.c.b16 %v1384, %v1376
        %v1849 = vpack.c.b16 %v1393, %v1385
        %v1850 = vpack.c.b16 %v1394, %v1386
        %v1851 = vpack.c.b16 %v1395, %v1387
        %v1852 = vpack.c.b16 %v1396, %v1388
        %v1853 = vpack.c.b16 %v1397, %v1389
        %v1854 = vpack.c.b16 %v1398, %v1390
        %v1855 = vpack.c.b16 %v1399, %v1391
        %v1856 = vpack.c.b16 %v1400, %v1392
        %v1857 = vpack.c.b16 %v1409, %v1401
        %v1858 = vpack.c.b16 %v1410, %v1402
        %v1859 = vpack.c.b16 %v1411, %v1403
        %v1860 = vpack.c.b16 %v1412, %v1404
        %v1861 = vpack.c.b16 %v1413, %v1405
        %v1862 = vpack.c.b16 %v1414, %v1406
        %v1863 = vpack.c.b16 %v1415, %v1407
        %v1864 = vpack.c.b16 %v1416, %v1408
        %v1865 = vpack.c.b16 %v1425, %v1417
        %v1866 = vpack.c.b16 %v1426, %v1418
        %v1867 = vpack.c.b16 %v1427, %v1419
        %v1868 = vpack.c.b16 %v1428, %v1420
        %v1869 = vpack.c.b16 %v1429, %v1421
        %v1870 = vpack.c.b16 %v1430, %v1422
        %v1871 = vpack.c.b16 %v1431, %v1423
        %v1872 = vpack.c.b16 %v1432, %v1424
        %v1873 = vpack.c.b16 %v1441, %v1433
        %v1874 = vpack.c.b16 %v1442, %v1434
        %v1875 = vpack.c.b16 %v1443, %v1435
        %v1876 = vpack.c.b16 %v1444, %v1436
        %v1877 = vpack.c.b16 %v1445, %v1437
        %v1878 = vpack.c.b16 %v1446, %v1438
        %v1879 = vpack.c.b16 %v1447, %v1439
        %v1880 = vpack.c.b16 %v1448, %v1440
        %v1881 = vpack.c.b16 %v1457, %v1449
        %v1882 = vpack.c.b16 %v1458, %v1450
        %v1883 = vpack.c.b16 %v1459, %v1451
        %v1884 = vpack.c.b16 %v1460, %v1452
        %v1885 = vpack.c.b16 %v1461, %v1453
        %v1886 = vpack.c.b16 %v1462, %v1454
        %v1887 = vpack.c.b16 %v1463, %v1455
        %v1888 = vpack.c.b16 %v1464, %v1456
        %v1889 = vpack.c.b16 %v1473, %v1465
        %v1890 = vpack.c.b16 %v1474, %v1466
        %v1891 = vpack.c.b16 %v1475, %v1467
        %v1892 = vpack.c.b16 %v1476, %v1468
        %v1893 = vpack.c.b16 %v1477, %v1469
        %v1894 = vpack.c.b16 %v1478, %v1470
        %v1895 = vpack.c.b16 %v1479, %v1471
        %v1896 = vpack.c.b16 %v1480, %v1472
        %v1897 = vpack.c.b16 %v1489, %v1481
        %v1898 = vpack.c.b16 %v1490, %v1482
        %v1899 = vpack.c.b16 %v1491, %v1483
        %v1900 = vpack.c.b16 %v1492, %v1484
        %v1901 = vpack.c.b16 %v1493, %v1485
        %v1902 = vpack.c.b16 %v1494, %v1486
        %v1903 = vpack.c.b16 %v1495, %v1487
        %v1904 = vpack.c.b16 %v1496, %v1488
        %v1905 = vpack.c.b16 %v1505, %v1497
        %v1906 = vpack.c.b16 %v1506, %v1498
        %v1907 = vpack.c.b16 %v1507, %v1499
        %v1908 = vpack.c.b16 %v1508, %v1500
        %v1909 = vpack.c.b16 %v1509, %v1501
        %v1910 = vpack.c.b16 %v1510, %v1502
        %v1911 = vpack.c.b16 %v1511, %v1503
        %v1912 = vpack.c.b16 %v1512, %v1504
        %v1913 = vpack.c.b16 %v1521, %v1513
        %v1914 = vpack.c.b16 %v1522, %v1514
        %v1915 = vpack.c.b16 %v1523, %v1515
        %v1916 = vpack.c.b16 %v1524, %v1516
        %v1917 = vpack.c.b16 %v1525, %v1517
        %v1918 = vpack.c.b16 %v1526, %v1518
        %v1919 = vpack.c.b16 %v1527, %v1519
        %v1920 = vpack.c.b16 %v1528, %v1520
        %v1921 = vpack.c.b16 %v1537, %v1529
        %v1922 = vpack.c.b16 %v1538, %v1530
        %v1923 = vpack.c.b16 %v1539, %v1531
        %v1924 = vpack.c.b16 %v1540, %v1532
        %v1925 = vpack.c.b16 %v1541, %v1533
        %v1926 = vpack.c.b16 %v1542, %v1534
        %v1927 = vpack.c.b16 %v1543, %v1535
        %v1928 = vpack.c.b16 %v1544, %v1536
        %v1929 = vpack.c.b16 %v1553, %v1545
        %v1930 = vpack.c.b16 %v1554, %v1546
        %v1931 = vpack.c.b16 %v1555, %v1547
        %v1932 = vpack.c.b16 %v1556, %v1548
        %v1933 = vpack.c.b16 %v1557, %v1549
        %v1934 = vpack.c.b16 %v1558, %v1550
        %v1935 = vpack.c.b16 %v1559, %v1551
        %v1936 = vpack.c.b16 %v1560, %v1552
        %v1937 = vpack.c.b16 %v1569, %v1561
        %v1938 = vpack.c.b16 %v1570, %v1562
        %v1939 = vpack.c.b16 %v1571, %v1563
        %v1940 = vpack.c.b16 %v1572, %v1564
        %v1941 = vpack.c.b16 %v1573, %v1565
        %v1942 = vpack.c.b16 %v1574, %v1566
        %v1943 = vpack.c.b16 %v1575, %v1567
        %v1944 = vpack.c.b16 %v1576, %v1568
        %v1945 = vpack.c.b16 %v1585, %v1577
        %v1946 = vpack.c.b16 %v1586, %v1578
        %v1947 = vpack.c.b16 %v1587, %v1579
        %v1948 = vpack.c.b16 %v1588, %v1580
        %v1949 = vpack.c.b16 %v1589, %v1581
        %v1950 = vpack.c.b16 %v1590, %v1582
        %v1951 = vpack.c.b16 %v1591, %v1583
        %v1952 = vpack.c.b16 %v1592, %v1584
        %v1953 = vpack.c.b16 %v1601, %v1593
        %v1954 = vpack.c.b16 %v1602, %v1594
        %v1955 = vpack.c.b16 %v1603, %v1595
        %v1956 = vpack.c.b16 %v1604, %v1596
        %v1957 = vpack.c.b16 %v1605, %v1597
        %v1958 = vpack.c.b16 %v1606, %v1598
        %v1959 = vpack.c.b16 %v1607, %v1599
        %v1960 = vpack.c.b16 %v1608, %v1600
        %v1961 = vpack.c.b16 %v1617, %v1609
        %v1962 = vpack.c.b16 %v1618, %v1610
        %v1963 = vpack.c.b16 %v1619, %v1611
        %v1964 = vpack.c.b16 %v1620, %v1612
        %v1965 = vpack.c.b16 %v1621, %v1613
        %v1966 = vpack.c.b16 %v1622, %v1614
        %v1967 = vpack.c.b16 %v1623, %v1615
        %v1968 = vpack.c.b16 %v1624, %v1616
        %v1969 = vpack.c.b16 %v1633, %v1625
        %v1970 = vpack.c.b16 %v1634, %v1626
        %v1971 = vpack.c.b16 %v1635, %v1627
        %v1972 = vpack.c.b16 %v1636, %v1628
        %v1973 = vpack.c.b16 %v1637, %v1629
        %v1974 = vpack.c.b16 %v1638, %v1630
        %v1975 = vpack.c.b16 %v1639, %v1631
        %v1976 = vpack.c.b16 %v1640, %v1632
        %v1977 = vpack.c.b16 %v1649, %v1641
        %v1978 = vpack.c.b16 %v1650, %v1642
        %v1979 = vpack.c.b16 %v1651, %v1643
        %v1980 = vpack.c.b16 %v1652, %v1644
        %v1981 = vpack.c.b16 %v1653, %v1645
        %v1982 = vpack.c.b16 %v1654, %v1646
        %v1983 = vpack.c.b16 %v1655, %v1647
        %v1984 = vpack.c.b16 %v1656, %v1648
        %v1985 = vpack.c.b16 %v1665, %v1657
        %v1986 = vpack.c.b16 %v1666, %v1658
        %v1987 = vpack.c.b16 %v1667, %v1659
        %v1988 = vpack.c.b16 %v1668, %v1660
        %v1989 = vpack.c.b16 %v1669, %v1661
        %v1990 = vpack.c.b16 %v1670, %v1662
        %v1991 = vpack.c.b16 %v1671, %v1663
        %v1992 = vpack.c.b16 %v1672, %v1664
        %v1993 = vpack.c.b16 %v1681, %v1673
        %v1994 = vpack.c.b16 %v1682, %v1674
        %v1995 = vpack.c.b16 %v1683, %v1675
        %v1996 = vpack.c.b16 %v1684, %v1676
        %v1997 = vpack.c.b16 %v1685, %v1677
        %v1998 = vpack.c.b16 %v1686, %v1678
        %v1999 = vpack.c.b16 %v1687, %v1679
        %v2000 = vpack.c.b16 %v1688, %v1680
        %v2001 = vpack.c.b16 %v1697, %v1689
        %v2002 = vpack.c.b16 %v1698, %v1690
        %v2003 = vpack.c.b16 %v1699, %v1691
        %v2004 = vpack.c.b16 %v1700, %v1692
        %v2005 = vpack.c.b16 %v1701, %v1693
        %v2006 = vpack.c.b16 %v1702, %v1694
        %v2007 = vpack.c.b16 %v1703, %v1695
        %v2008 = vpack.c.b16 %v1704, %v1696
        %v2009 = vpack.c.b16 %v1713, %v1705
        %v2010 = vpack.c.b16 %v1714, %v1706
        %v2011 = vpack.c.b16 %v1715, %v1707
        %v2012 = vpack.c.b16 %v1716, %v1708
        %v2013 = vpack.c.b16 %v1717, %v1709
        %v2014 = vpack.c.b16 %v1718, %v1710
        %v2015 = vpack.c.b16 %v1719, %v1711
        %v2016 = vpack.c.b16 %v1720, %v1712
        %v2017 = vpack.c.b16 %v1729, %v1721
        %v2018 = vpack.c.b16 %v1730, %v1722
        %v2019 = vpack.c.b16 %v1731, %v1723
        %v2020 = vpack.c.b16 %v1732, %v1724
        %v2021 = vpack.c.b16 %v1733, %v1725
        %v2022 = vpack.c.b16 %v1734, %v1726
        %v2023 = vpack.c.b16 %v1735, %v1727
        %v2024 = vpack.c.b16 %v1736, %v1728
        %v2025 = vpack.c.b16 %v1745, %v1737
        %v2026 = vpack.c.b16 %v1746, %v1738
        %v2027 = vpack.c.b16 %v1747, %v1739
        %v2028 = vpack.c.b16 %v1748, %v1740
        %v2029 = vpack.c.b16 %v1749, %v1741
        %v2030 = vpack.c.b16 %v1750, %v1742
        %v2031 = vpack.c.b16 %v1751, %v1743
        %v2032 = vpack.c.b16 %v1752, %v1744
        %v2033 = vpack.c.b16 %v1761, %v1753
        %v2034 = vpack.c.b16 %v1762, %v1754
        %v2035 = vpack.c.b16 %v1763, %v1755
        %v2036 = vpack.c.b16 %v1764, %v1756
        %v2037 = vpack.c.b16 %v1765, %v1757
        %v2038 = vpack.c.b16 %v1766, %v1758
        %v2039 = vpack.c.b16 %v1767, %v1759
        %v2040 = vpack.c.b16 %v1768, %v1760
        %v2041 = vpack.c.b16 %v1777, %v1769
        %v2042 = vpack.c.b16 %v1778, %v1770
        %v2043 = vpack.c.b16 %v1779, %v1771
        %v2044 = vpack.c.b16 %v1780, %v1772
        %v2045 = vpack.c.b16 %v1781, %v1773
        %v2046 = vpack.c.b16 %v1782, %v1774
        %v2047 = vpack.c.b16 %v1783, %v1775
        %v2048 = vpack.c.b16 %v1784, %v1776
        %v2049 = vpack.c.b16 %v1793, %v1785
        %v2050 = vpack.c.b16 %v1794, %v1786
        %v2051 = vpack.c.b16 %v1795, %v1787
        %v2052 = vpack.c.b16 %v1796, %v1788
        %v2053 = vpack.c.b16 %v1797, %v1789
        %v2054 = vpack.c.b16 %v1798, %v1790
        %v2055 = vpack.c.b16 %v1799, %v1791
        %v2056 = vpack.c.b16 %v1800, %v1792
        %2313 = vmatprep.subr.bf16.mxu0 %v1802
        %2314 = vmatpush1.bf16.msra.mxu0 %v1801
        %2315 = vmatprep.subr.bf16.mxu0 %v1810
        %2316 = vmatpush1.bf16.msra.mxu0 %v1809
        %2317 = vmatprep.subr.bf16.mxu0 %v1818
        %2318 = vmatpush1.bf16.msra.mxu0 %v1817
        %2319 = vmatprep.subr.bf16.mxu0 %v1826
        %2320 = vmatpush1.bf16.msra.mxu0 %v1825
        %2321 = vmatprep.subr.bf16.mxu0 %v1834
        %2322 = vmatpush1.bf16.msra.mxu0 %v1833
        %2323 = vmatprep.subr.bf16.mxu0 %v1842
        %2324 = vmatpush1.bf16.msra.mxu0 %v1841
        %2325 = vmatprep.subr.bf16.mxu0 %v1850
        %2326 = vmatpush1.bf16.msra.mxu0 %v1849
        %2327 = vmatprep.subr.bf16.mxu0 %v1858
        %2328 = vmatpush1.bf16.msra.mxu0 %v1857
        %2329 = vmatprep.subr.bf16.mxu0 %v1866
        %2330 = vmatpush1.bf16.msra.mxu0 %v1865
        %2331 = vmatprep.subr.bf16.mxu0 %v1874
        %2332 = vmatpush1.bf16.msra.mxu0 %v1873
        %2333 = vmatprep.subr.bf16.mxu0 %v1882
        %2334 = vmatpush1.bf16.msra.mxu0 %v1881
        %2335 = vmatprep.subr.bf16.mxu0 %v1890
        %2336 = vmatpush1.bf16.msra.mxu0 %v1889
        %2337 = vmatprep.subr.bf16.mxu0 %v1898
        %2338 = vmatpush1.bf16.msra.mxu0 %v1897
        %2339 = vmatprep.subr.bf16.mxu0 %v1906
        %2340 = vmatpush1.bf16.msra.mxu0 %v1905
        %2341 = vmatprep.subr.bf16.mxu0 %v1914
        %2342 = vmatpush1.bf16.msra.mxu0 %v1913
        %2343 = vmatprep.subr.bf16.mxu0 %v1922
        %2344 = vmatpush1.bf16.msra.mxu0 %v1921
        %2345 = vmatprep.mubr.bf16.mxu0 %v704
        %2346 = vmatmul.mubr.bf16.gmra.mrb[0].mxu0 %v703
        %v2347 = vpop.f32.mrb[0].mxu0
        %v2348 = vadd.f32 %v996, %v2347
        %v2349 = vpop.f32.mrb[0].mxu0
        %v2350 = vadd.f32 %v1000, %v2349
        %v2351 = vpop.f32.mrb[0].mxu0
        %v2352 = vadd.f32 %v996, %v2351
        %v2353 = vpop.f32.mrb[0].mxu0
        %v2354 = vadd.f32 %v1000, %v2353
        %2355 = vmatprep.mubr.bf16.mxu0 %v708
        %2356 = vmatmul.mubr.bf16.gmra.mrb[0].mxu0 %v707
        %v2357 = vpop.f32.mrb[0].mxu0
        %v2358 = vadd.f32 %v996, %v2357
        %v2359 = vpop.f32.mrb[0].mxu0
        %v2360 = vadd.f32 %v1000, %v2359
        %v2361 = vpop.f32.mrb[0].mxu0
        %v2362 = vadd.f32 %v996, %v2361
        %v2363 = vpop.f32.mrb[0].mxu0
        %v2364 = vadd.f32 %v1000, %v2363
        %2365 = vmatprep.mubr.bf16.mxu0 %v712
        %2366 = vmatmul.mubr.bf16.gmra.mrb[0].mxu0 %v711
        %v2367 = vpop.f32.mrb[0].mxu0
        %v2368 = vadd.f32 %v996, %v2367
        %v2369 = vpop.f32.mrb[0].mxu0
        %v2370 = vadd.f32 %v1000, %v2369
        %v2371 = vpop.f32.mrb[0].mxu0
        %v2372 = vadd.f32 %v996, %v2371
        %v2373 = vpop.f32.mrb[0].mxu0
        %v2374 = vadd.f32 %v1000, %v2373
        %2375 = vmatprep.mubr.bf16.mxu0 %v716
        %2376 = vmatmul.mubr.bf16.gmra.mrb[0].mxu0 %v715
        %v2377 = vpop.f32.mrb[0].mxu0
        %v2378 = vadd.f32 %v996, %v2377
        %v2379 = vpop.f32.mrb[0].mxu0
        %v2380 = vadd.f32 %v1000, %v2379
        %v2381 = vpop.f32.mrb[0].mxu0
        %v2382 = vadd.f32 %v996, %v2381
        %v2383 = vpop.f32.mrb[0].mxu0
        %v2384 = vadd.f32 %v1000, %v2383
        %2385 = vmatprep.mubr.bf16.mxu0 %v720
        %2386 = vmatmul.mubr.bf16.gmra.mrb[0].mxu0 %v719
        %v2387 = vpop.f32.mrb[0].mxu0
        %v2388 = vadd.f32 %v996, %v2387
        %v2389 = vpop.f32.mrb[0].mxu0
        %v2390 = vadd.f32 %v1000, %v2389
        %v2391 = vpop.f32.mrb[0].mxu0
        %v2392 = vadd.f32 %v996, %v2391
        %v2393 = vpop.f32.mrb[0].mxu0
        %v2394 = vadd.f32 %v1000, %v2393
        %2395 = vmatprep.mubr.bf16.mxu0 %v724
        %2396 = vmatmul.mubr.bf16.gmra.mrb[0].mxu0 %v723
        %v2397 = vpop.f32.mrb[0].mxu0
        %v2398 = vadd.f32 %v996, %v2397
        %v2399 = vpop.f32.mrb[0].mxu0
        %v2400 = vadd.f32 %v1000, %v2399
        %v2401 = vpop.f32.mrb[0].mxu0
        %v2402 = vadd.f32 %v996, %v2401
        %v2403 = vpop.f32.mrb[0].mxu0
        %v2404 = vadd.f32 %v1000, %v2403
        %2405 = vmatprep.mubr.bf16.mxu0 %v728
        %2406 = vmatmul.mubr.bf16.gmra.mrb[0].mxu0 %v727
        %v2407 = vpop.f32.mrb[0].mxu0
        %v2408 = vadd.f32 %v996, %v2407
        %v2409 = vpop.f32.mrb[0].mxu0
        %v2410 = vadd.f32 %v1000, %v2409
        %v2411 = vpop.f32.mrb[0].mxu0
        %v2412 = vadd.f32 %v996, %v2411
        %v2413 = vpop.f32.mrb[0].mxu0
        %v2414 = vadd.f32 %v1000, %v2413
        %2415 = vmatprep.mubr.bf16.mxu0 %v732
        %2416 = vmatmul.mubr.bf16.gmra.mrb[0].mxu0 %v731
        %v2417 = vpop.f32.mrb[0].mxu0
        %v2418 = vadd.f32 %v996, %v2417
        %v2419 = vpop.f32.mrb[0].mxu0
        %v2420 = vadd.f32 %v1000, %v2419
        %v2421 = vpop.f32.mrb[0].mxu0
        %v2422 = vadd.f32 %v996, %v2421
        %v2423 = vpop.f32.mrb[0].mxu0
        %v2424 = vadd.f32 %v1000, %v2423
        %2425 = vdwg.mxu0
        %2426 = vmatprep.subr.bf16.mxu0 %v1930
        %2427 = vmatpush1.bf16.msra.mxu0 %v1929
        %2428 = vmatprep.subr.bf16.mxu0 %v1938
        %2429 = vmatpush1.bf16.msra.mxu0 %v1937
        %2430 = vmatprep.subr.bf16.mxu0 %v1946
        %2431 = vmatpush1.bf16.msra.mxu0 %v1945
        %2432 = vmatprep.subr.bf16.mxu0 %v1954
        %2433 = vmatpush1.bf16.msra.mxu0 %v1953
        %2434 = vmatprep.subr.bf16.mxu0 %v1962
        %2435 = vmatpush1.bf16.msra.mxu0 %v1961
        %2436 = vmatprep.subr.bf16.mxu0 %v1970
        %2437 = vmatpush1.bf16.msra.mxu0 %v1969
        %2438 = vmatprep.subr.bf16.mxu0 %v1978
        %2439 = vmatpush1.bf16.msra.mxu0 %v1977
        %2440 = vmatprep.subr.bf16.mxu0 %v1986
        %2441 = vmatpush1.bf16.msra.mxu0 %v1985
        %2442 = vmatprep.subr.bf16.mxu0 %v1994
        %2443 = vmatpush1.bf16.msra.mxu0 %v1993
        %2444 = vmatprep.subr.bf16.mxu0 %v2002
        %2445 = vmatpush1.bf16.msra.mxu0 %v2001
        %2446 = vmatprep.subr.bf16.mxu0 %v2010
        %2447 = vmatpush1.bf16.msra.mxu0 %v2009
        %2448 = vmatprep.subr.bf16.mxu0 %v2018
        %2449 = vmatpush1.bf16.msra.mxu0 %v2017
        %2450 = vmatprep.subr.bf16.mxu0 %v2026
        %2451 = vmatpush1.bf16.msra.mxu0 %v2025
        %2452 = vmatprep.subr.bf16.mxu0 %v2034
        %2453 = vmatpush1.bf16.msra.mxu0 %v2033
        %2454 = vmatprep.subr.bf16.mxu0 %v2042
        %2455 = vmatpush1.bf16.msra.mxu0 %v2041
        %2456 = vmatprep.subr.bf16.mxu0 %v2050
        %2457 = vmatpush1.bf16.msra.mxu0 %v2049
        %2458 = vmatprep.mubr.bf16.mxu0 %v706
        %2459 = vmatmul.mubr.bf16.gmra.mrb[0].mxu0 %v705
        %v2460 = vpop.f32.mrb[0].mxu0
        %v2461 = vadd.f32 %v2348, %v2460
        %v2462 = vpop.f32.mrb[0].mxu0
        %v2463 = vadd.f32 %v2350, %v2462
        %v2464 = vpop.f32.mrb[0].mxu0
        %v2465 = vadd.f32 %v2352, %v2464
        %v2466 = vpop.f32.mrb[0].mxu0
        %v2467 = vadd.f32 %v2354, %v2466
        %2468 = vmatprep.mubr.bf16.mxu0 %v710
        %2469 = vmatmul.mubr.bf16.gmra.mrb[0].mxu0 %v709
        %v2470 = vpop.f32.mrb[0].mxu0
        %v2471 = vadd.f32 %v2358, %v2470
        %v2472 = vpop.f32.mrb[0].mxu0
        %v2473 = vadd.f32 %v2360, %v2472
        %v2474 = vpop.f32.mrb[0].mxu0
        %v2475 = vadd.f32 %v2362, %v2474
        %v2476 = vpop.f32.mrb[0].mxu0
        %v2477 = vadd.f32 %v2364, %v2476
        %2478 = vmatprep.mubr.bf16.mxu0 %v714
        %2479 = vmatmul.mubr.bf16.gmra.mrb[0].mxu0 %v713
        %v2480 = vpop.f32.mrb[0].mxu0
        %v2481 = vadd.f32 %v2368, %v2480
        %v2482 = vpop.f32.mrb[0].mxu0
        %v2483 = vadd.f32 %v2370, %v2482
        %v2484 = vpop.f32.mrb[0].mxu0
        %v2485 = vadd.f32 %v2372, %v2484
        %v2486 = vpop.f32.mrb[0].mxu0
        %v2487 = vadd.f32 %v2374, %v2486
        %2488 = vmatprep.mubr.bf16.mxu0 %v718
        %2489 = vmatmul.mubr.bf16.gmra.mrb[0].mxu0 %v717
        %v2490 = vpop.f32.mrb[0].mxu0
        %v2491 = vadd.f32 %v2378, %v2490
        %v2492 = vpop.f32.mrb[0].mxu0
        %v2493 = vadd.f32 %v2380, %v2492
        %v2494 = vpop.f32.mrb[0].mxu0
        %v2495 = vadd.f32 %v2382, %v2494
        %v2496 = vpop.f32.mrb[0].mxu0
        %v2497 = vadd.f32 %v2384, %v2496
        %2498 = vmatprep.mubr.bf16.mxu0 %v722
        %2499 = vmatmul.mubr.bf16.gmra.mrb[0].mxu0 %v721
        %v2500 = vpop.f32.mrb[0].mxu0
        %v2501 = vadd.f32 %v2388, %v2500
        %v2502 = vpop.f32.mrb[0].mxu0
        %v2503 = vadd.f32 %v2390, %v2502
        %v2504 = vpop.f32.mrb[0].mxu0
        %v2505 = vadd.f32 %v2392, %v2504
        %v2506 = vpop.f32.mrb[0].mxu0
        %v2507 = vadd.f32 %v2394, %v2506
        %2508 = vmatprep.mubr.bf16.mxu0 %v726
        %2509 = vmatmul.mubr.bf16.gmra.mrb[0].mxu0 %v725
        %v2510 = vpop.f32.mrb[0].mxu0
        %v2511 = vadd.f32 %v2398, %v2510
        %v2512 = vpop.f32.mrb[0].mxu0
        %v2513 = vadd.f32 %v2400, %v2512
        %v2514 = vpop.f32.mrb[0].mxu0
        %v2515 = vadd.f32 %v2402, %v2514
        %v2516 = vpop.f32.mrb[0].mxu0
        %v2517 = vadd.f32 %v2404, %v2516
        %2518 = vmatprep.mubr.bf16.mxu0 %v730
        %2519 = vmatmul.mubr.bf16.gmra.mrb[0].mxu0 %v729
        %v2520 = vpop.f32.mrb[0].mxu0
        %v2521 = vadd.f32 %v2408, %v2520
        %v2522 = vpop.f32.mrb[0].mxu0
        %v2523 = vadd.f32 %v2410, %v2522
        %v2524 = vpop.f32.mrb[0].mxu0
        %v2525 = vadd.f32 %v2412, %v2524
        %v2526 = vpop.f32.mrb[0].mxu0
        %v2527 = vadd.f32 %v2414, %v2526
        %2528 = vmatprep.mubr.bf16.mxu0 %v734
        %2529 = vmatmul.mubr.bf16.gmra.mrb[0].mxu0 %v733
        %v2530 = vpop.f32.mrb[0].mxu0
        %v2531 = vadd.f32 %v2418, %v2530
        %v2532 = vpop.f32.mrb[0].mxu0
        %v2533 = vadd.f32 %v2420, %v2532
        %v2534 = vpop.f32.mrb[0].mxu0
        %v2535 = vadd.f32 %v2422, %v2534
        %v2536 = vpop.f32.mrb[0].mxu0
        %v2537 = vadd.f32 %v2424, %v2536
        %2538 = vdwg.mxu0
        %2539 = vmatprep.subr.bf16.mxu0 %v1804
        %2540 = vmatpush1.bf16.msra.mxu0 %v1803
        %2541 = vmatprep.subr.bf16.mxu0 %v1812
        %2542 = vmatpush1.bf16.msra.mxu0 %v1811
        %2543 = vmatprep.subr.bf16.mxu0 %v1820
        %2544 = vmatpush1.bf16.msra.mxu0 %v1819
        %2545 = vmatprep.subr.bf16.mxu0 %v1828
        %2546 = vmatpush1.bf16.msra.mxu0 %v1827
        %2547 = vmatprep.subr.bf16.mxu0 %v1836
        %2548 = vmatpush1.bf16.msra.mxu0 %v1835
        %2549 = vmatprep.subr.bf16.mxu0 %v1844
        %2550 = vmatpush1.bf16.msra.mxu0 %v1843
        %2551 = vmatprep.subr.bf16.mxu0 %v1852
        %2552 = vmatpush1.bf16.msra.mxu0 %v1851
        %2553 = vmatprep.subr.bf16.mxu0 %v1860
        %2554 = vmatpush1.bf16.msra.mxu0 %v1859
        %2555 = vmatprep.subr.bf16.mxu0 %v1868
        %2556 = vmatpush1.bf16.msra.mxu0 %v1867
        %2557 = vmatprep.subr.bf16.mxu0 %v1876
        %2558 = vmatpush1.bf16.msra.mxu0 %v1875
        %2559 = vmatprep.subr.bf16.mxu0 %v1884
        %2560 = vmatpush1.bf16.msra.mxu0 %v1883
        %2561 = vmatprep.subr.bf16.mxu0 %v1892
        %2562 = vmatpush1.bf16.msra.mxu0 %v1891
        %2563 = vmatprep.subr.bf16.mxu0 %v1900
        %2564 = vmatpush1.bf16.msra.mxu0 %v1899
        %2565 = vmatprep.subr.bf16.mxu0 %v1908
        %2566 = vmatpush1.bf16.msra.mxu0 %v1907
        %2567 = vmatprep.subr.bf16.mxu0 %v1916
        %2568 = vmatpush1.bf16.msra.mxu0 %v1915
        %2569 = vmatprep.subr.bf16.mxu0 %v1924
        %2570 = vmatpush1.bf16.msra.mxu0 %v1923
        %2571 = vmatprep.mubr.bf16.mxu0 %v704
        %2572 = vmatmul.mubr.bf16.gmra.mrb[0].mxu0 %v703
        %v2573 = vpop.f32.mrb[0].mxu0
        %v2574 = vadd.f32 %v1004, %v2573
        %v2575 = vpop.f32.mrb[0].mxu0
        %v2576 = vadd.f32 %v1008, %v2575
        %v2577 = vpop.f32.mrb[0].mxu0
        %v2578 = vadd.f32 %v1004, %v2577
        %v2579 = vpop.f32.mrb[0].mxu0
        %v2580 = vadd.f32 %v1008, %v2579
        %2581 = vmatprep.mubr.bf16.mxu0 %v708
        %2582 = vmatmul.mubr.bf16.gmra.mrb[0].mxu0 %v707
        %v2583 = vpop.f32.mrb[0].mxu0
        %v2584 = vadd.f32 %v1004, %v2583
        %v2585 = vpop.f32.mrb[0].mxu0
        %v2586 = vadd.f32 %v1008, %v2585
        %v2587 = vpop.f32.mrb[0].mxu0
        %v2588 = vadd.f32 %v1004, %v2587
        %v2589 = vpop.f32.mrb[0].mxu0
        %v2590 = vadd.f32 %v1008, %v2589
        %2591 = vmatprep.mubr.bf16.mxu0 %v712
        %2592 = vmatmul.mubr.bf16.gmra.mrb[0].mxu0 %v711
        %v2593 = vpop.f32.mrb[0].mxu0
        %v2594 = vadd.f32 %v1004, %v2593
        %v2595 = vpop.f32.mrb[0].mxu0
        %v2596 = vadd.f32 %v1008, %v2595
        %v2597 = vpop.f32.mrb[0].mxu0
        %v2598 = vadd.f32 %v1004, %v2597
        %v2599 = vpop.f32.mrb[0].mxu0
        %v2600 = vadd.f32 %v1008, %v2599
        %2601 = vmatprep.mubr.bf16.mxu0 %v716
        %2602 = vmatmul.mubr.bf16.gmra.mrb[0].mxu0 %v715
        %v2603 = vpop.f32.mrb[0].mxu0
        %v2604 = vadd.f32 %v1004, %v2603
        %v2605 = vpop.f32.mrb[0].mxu0
        %v2606 = vadd.f32 %v1008, %v2605
        %v2607 = vpop.f32.mrb[0].mxu0
        %v2608 = vadd.f32 %v1004, %v2607
        %v2609 = vpop.f32.mrb[0].mxu0
        %v2610 = vadd.f32 %v1008, %v2609
        %2611 = vmatprep.mubr.bf16.mxu0 %v720
        %2612 = vmatmul.mubr.bf16.gmra.mrb[0].mxu0 %v719
        %v2613 = vpop.f32.mrb[0].mxu0
        %v2614 = vadd.f32 %v1004, %v2613
        %v2615 = vpop.f32.mrb[0].mxu0
        %v2616 = vadd.f32 %v1008, %v2615
        %v2617 = vpop.f32.mrb[0].mxu0
        %v2618 = vadd.f32 %v1004, %v2617
        %v2619 = vpop.f32.mrb[0].mxu0
        %v2620 = vadd.f32 %v1008, %v2619
        %2621 = vmatprep.mubr.bf16.mxu0 %v724
        %2622 = vmatmul.mubr.bf16.gmra.mrb[0].mxu0 %v723
        %v2623 = vpop.f32.mrb[0].mxu0
        %v2624 = vadd.f32 %v1004, %v2623
        %v2625 = vpop.f32.mrb[0].mxu0
        %v2626 = vadd.f32 %v1008, %v2625
        %v2627 = vpop.f32.mrb[0].mxu0
        %v2628 = vadd.f32 %v1004, %v2627
        %v2629 = vpop.f32.mrb[0].mxu0
        %v2630 = vadd.f32 %v1008, %v2629
        %2631 = vmatprep.mubr.bf16.mxu0 %v728
        %2632 = vmatmul.mubr.bf16.gmra.mrb[0].mxu0 %v727
        %v2633 = vpop.f32.mrb[0].mxu0
        %v2634 = vadd.f32 %v1004, %v2633
        %v2635 = vpop.f32.mrb[0].mxu0
        %v2636 = vadd.f32 %v1008, %v2635
        %v2637 = vpop.f32.mrb[0].mxu0
        %v2638 = vadd.f32 %v1004, %v2637
        %v2639 = vpop.f32.mrb[0].mxu0
        %v2640 = vadd.f32 %v1008, %v2639
        %2641 = vmatprep.mubr.bf16.mxu0 %v732
        %2642 = vmatmul.mubr.bf16.gmra.mrb[0].mxu0 %v731
        %v2643 = vpop.f32.mrb[0].mxu0
        %v2644 = vadd.f32 %v1004, %v2643
        %v2645 = vpop.f32.mrb[0].mxu0
        %v2646 = vadd.f32 %v1008, %v2645
        %v2647 = vpop.f32.mrb[0].mxu0
        %v2648 = vadd.f32 %v1004, %v2647
        %v2649 = vpop.f32.mrb[0].mxu0
        %v2650 = vadd.f32 %v1008, %v2649
        %2651 = vdwg.mxu0
        %2652 = vmatprep.subr.bf16.mxu0 %v1932
        %2653 = vmatpush1.bf16.msra.mxu0 %v1931
        %2654 = vmatprep.subr.bf16.mxu0 %v1940
        %2655 = vmatpush1.bf16.msra.mxu0 %v1939
        %2656 = vmatprep.subr.bf16.mxu0 %v1948
        %2657 = vmatpush1.bf16.msra.mxu0 %v1947
        %2658 = vmatprep.subr.bf16.mxu0 %v1956
        %2659 = vmatpush1.bf16.msra.mxu0 %v1955
        %2660 = vmatprep.subr.bf16.mxu0 %v1964
        %2661 = vmatpush1.bf16.msra.mxu0 %v1963
        %2662 = vmatprep.subr.bf16.mxu0 %v1972
        %2663 = vmatpush1.bf16.msra.mxu0 %v1971
        %2664 = vmatprep.subr.bf16.mxu0 %v1980
        %2665 = vmatpush1.bf16.msra.mxu0 %v1979
        %2666 = vmatprep.subr.bf16.mxu0 %v1988
        %2667 = vmatpush1.bf16.msra.mxu0 %v1987
        %2668 = vmatprep.subr.bf16.mxu0 %v1996
        %2669 = vmatpush1.bf16.msra.mxu0 %v1995
        %2670 = vmatprep.subr.bf16.mxu0 %v2004
        %2671 = vmatpush1.bf16.msra.mxu0 %v2003
        %2672 = vmatprep.subr.bf16.mxu0 %v2012
        %2673 = vmatpush1.bf16.msra.mxu0 %v2011
        %2674 = vmatprep.subr.bf16.mxu0 %v2020
        %2675 = vmatpush1.bf16.msra.mxu0 %v2019
        %2676 = vmatprep.subr.bf16.mxu0 %v2028
        %2677 = vmatpush1.bf16.msra.mxu0 %v2027
        %2678 = vmatprep.subr.bf16.mxu0 %v2036
        %2679 = vmatpush1.bf16.msra.mxu0 %v2035
        %2680 = vmatprep.subr.bf16.mxu0 %v2044
        %2681 = vmatpush1.bf16.msra.mxu0 %v2043
        %2682 = vmatprep.subr.bf16.mxu0 %v2052
        %2683 = vmatpush1.bf16.msra.mxu0 %v2051
        %2684 = vmatprep.mubr.bf16.mxu0 %v706
        %2685 = vmatmul.mubr.bf16.gmra.mrb[0].mxu0 %v705
        %v2686 = vpop.f32.mrb[0].mxu0
        %v2687 = vadd.f32 %v2574, %v2686
        %v2688 = vpop.f32.mrb[0].mxu0
        %v2689 = vadd.f32 %v2576, %v2688
        %v2690 = vpop.f32.mrb[0].mxu0
        %v2691 = vadd.f32 %v2578, %v2690
        %v2692 = vpop.f32.mrb[0].mxu0
        %v2693 = vadd.f32 %v2580, %v2692
        %2694 = vmatprep.mubr.bf16.mxu0 %v710
        %2695 = vmatmul.mubr.bf16.gmra.mrb[0].mxu0 %v709
        %v2696 = vpop.f32.mrb[0].mxu0
        %v2697 = vadd.f32 %v2584, %v2696
        %v2698 = vpop.f32.mrb[0].mxu0
        %v2699 = vadd.f32 %v2586, %v2698
        %v2700 = vpop.f32.mrb[0].mxu0
        %v2701 = vadd.f32 %v2588, %v2700
        %v2702 = vpop.f32.mrb[0].mxu0
        %v2703 = vadd.f32 %v2590, %v2702
        %2704 = vmatprep.mubr.bf16.mxu0 %v714
        %2705 = vmatmul.mubr.bf16.gmra.mrb[0].mxu0 %v713
        %v2706 = vpop.f32.mrb[0].mxu0
        %v2707 = vadd.f32 %v2594, %v2706
        %v2708 = vpop.f32.mrb[0].mxu0
        %v2709 = vadd.f32 %v2596, %v2708
        %v2710 = vpop.f32.mrb[0].mxu0
        %v2711 = vadd.f32 %v2598, %v2710
        %v2712 = vpop.f32.mrb[0].mxu0
        %v2713 = vadd.f32 %v2600, %v2712
        %2714 = vmatprep.mubr.bf16.mxu0 %v718
        %2715 = vmatmul.mubr.bf16.gmra.mrb[0].mxu0 %v717
        %v2716 = vpop.f32.mrb[0].mxu0
        %v2717 = vadd.f32 %v2604, %v2716
        %v2718 = vpop.f32.mrb[0].mxu0
        %v2719 = vadd.f32 %v2606, %v2718
        %v2720 = vpop.f32.mrb[0].mxu0
        %v2721 = vadd.f32 %v2608, %v2720
        %v2722 = vpop.f32.mrb[0].mxu0
        %v2723 = vadd.f32 %v2610, %v2722
        %2724 = vmatprep.mubr.bf16.mxu0 %v722
        %2725 = vmatmul.mubr.bf16.gmra.mrb[0].mxu0 %v721
        %v2726 = vpop.f32.mrb[0].mxu0
        %v2727 = vadd.f32 %v2614, %v2726
        %v2728 = vpop.f32.mrb[0].mxu0
        %v2729 = vadd.f32 %v2616, %v2728
        %v2730 = vpop.f32.mrb[0].mxu0
        %v2731 = vadd.f32 %v2618, %v2730
        %v2732 = vpop.f32.mrb[0].mxu0
        %v2733 = vadd.f32 %v2620, %v2732
        %2734 = vmatprep.mubr.bf16.mxu0 %v726
        %2735 = vmatmul.mubr.bf16.gmra.mrb[0].mxu0 %v725
        %v2736 = vpop.f32.mrb[0].mxu0
        %v2737 = vadd.f32 %v2624, %v2736
        %v2738 = vpop.f32.mrb[0].mxu0
        %v2739 = vadd.f32 %v2626, %v2738
        %v2740 = vpop.f32.mrb[0].mxu0
        %v2741 = vadd.f32 %v2628, %v2740
        %v2742 = vpop.f32.mrb[0].mxu0
        %v2743 = vadd.f32 %v2630, %v2742
        %2744 = vmatprep.mubr.bf16.mxu0 %v730
        %2745 = vmatmul.mubr.bf16.gmra.mrb[0].mxu0 %v729
        %v2746 = vpop.f32.mrb[0].mxu0
        %v2747 = vadd.f32 %v2634, %v2746
        %v2748 = vpop.f32.mrb[0].mxu0
        %v2749 = vadd.f32 %v2636, %v2748
        %v2750 = vpop.f32.mrb[0].mxu0
        %v2751 = vadd.f32 %v2638, %v2750
        %v2752 = vpop.f32.mrb[0].mxu0
        %v2753 = vadd.f32 %v2640, %v2752
        %2754 = vmatprep.mubr.bf16.mxu0 %v734
        %2755 = vmatmul.mubr.bf16.gmra.mrb[0].mxu0 %v733
        %v2756 = vpop.f32.mrb[0].mxu0
        %v2757 = vadd.f32 %v2644, %v2756
        %v2758 = vpop.f32.mrb[0].mxu0
        %v2759 = vadd.f32 %v2646, %v2758
        %v2760 = vpop.f32.mrb[0].mxu0
        %v2761 = vadd.f32 %v2648, %v2760
        %v2762 = vpop.f32.mrb[0].mxu0
        %v2763 = vadd.f32 %v2650, %v2762
        %2764 = vdwg.mxu0
        %2765 = vmatprep.subr.bf16.mxu0 %v1806
        %2766 = vmatpush1.bf16.msra.mxu0 %v1805
        %2767 = vmatprep.subr.bf16.mxu0 %v1814
        %2768 = vmatpush1.bf16.msra.mxu0 %v1813
        %2769 = vmatprep.subr.bf16.mxu0 %v1822
        %2770 = vmatpush1.bf16.msra.mxu0 %v1821
        %2771 = vmatprep.subr.bf16.mxu0 %v1830
        %2772 = vmatpush1.bf16.msra.mxu0 %v1829
        %2773 = vmatprep.subr.bf16.mxu0 %v1838
        %2774 = vmatpush1.bf16.msra.mxu0 %v1837
        %2775 = vmatprep.subr.bf16.mxu0 %v1846
        %2776 = vmatpush1.bf16.msra.mxu0 %v1845
        %2777 = vmatprep.subr.bf16.mxu0 %v1854
        %2778 = vmatpush1.bf16.msra.mxu0 %v1853
        %2779 = vmatprep.subr.bf16.mxu0 %v1862
        %2780 = vmatpush1.bf16.msra.mxu0 %v1861
        %2781 = vmatprep.subr.bf16.mxu0 %v1870
        %2782 = vmatpush1.bf16.msra.mxu0 %v1869
        %2783 = vmatprep.subr.bf16.mxu0 %v1878
        %2784 = vmatpush1.bf16.msra.mxu0 %v1877
        %2785 = vmatprep.subr.bf16.mxu0 %v1886
        %2786 = vmatpush1.bf16.msra.mxu0 %v1885
        %2787 = vmatprep.subr.bf16.mxu0 %v1894
        %2788 = vmatpush1.bf16.msra.mxu0 %v1893
        %2789 = vmatprep.subr.bf16.mxu0 %v1902
        %2790 = vmatpush1.bf16.msra.mxu0 %v1901
        %2791 = vmatprep.subr.bf16.mxu0 %v1910
        %2792 = vmatpush1.bf16.msra.mxu0 %v1909
        %2793 = vmatprep.subr.bf16.mxu0 %v1918
        %2794 = vmatpush1.bf16.msra.mxu0 %v1917
        %2795 = vmatprep.subr.bf16.mxu0 %v1926
        %2796 = vmatpush1.bf16.msra.mxu0 %v1925
        %2797 = vmatprep.mubr.bf16.mxu0 %v704
        %2798 = vmatmul.mubr.bf16.gmra.mrb[0].mxu0 %v703
        %v2799 = vpop.f32.mrb[0].mxu0
        %v2800 = vadd.f32 %v1012, %v2799
        %v2801 = vpop.f32.mrb[0].mxu0
        %v2802 = vadd.f32 %v1016, %v2801
        %v2803 = vpop.f32.mrb[0].mxu0
        %v2804 = vadd.f32 %v1012, %v2803
        %v2805 = vpop.f32.mrb[0].mxu0
        %v2806 = vadd.f32 %v1016, %v2805
        %2807 = vmatprep.mubr.bf16.mxu0 %v708
        %2808 = vmatmul.mubr.bf16.gmra.mrb[0].mxu0 %v707
        %v2809 = vpop.f32.mrb[0].mxu0
        %v2810 = vadd.f32 %v1012, %v2809
        %v2811 = vpop.f32.mrb[0].mxu0
        %v2812 = vadd.f32 %v1016, %v2811
        %v2813 = vpop.f32.mrb[0].mxu0
        %v2814 = vadd.f32 %v1012, %v2813
        %v2815 = vpop.f32.mrb[0].mxu0
        %v2816 = vadd.f32 %v1016, %v2815
        %2817 = vmatprep.mubr.bf16.mxu0 %v712
        %2818 = vmatmul.mubr.bf16.gmra.mrb[0].mxu0 %v711
        %v2819 = vpop.f32.mrb[0].mxu0
        %v2820 = vadd.f32 %v1012, %v2819
        %v2821 = vpop.f32.mrb[0].mxu0
        %v2822 = vadd.f32 %v1016, %v2821
        %v2823 = vpop.f32.mrb[0].mxu0
        %v2824 = vadd.f32 %v1012, %v2823
        %v2825 = vpop.f32.mrb[0].mxu0
        %v2826 = vadd.f32 %v1016, %v2825
        %2827 = vmatprep.mubr.bf16.mxu0 %v716
        %2828 = vmatmul.mubr.bf16.gmra.mrb[0].mxu0 %v715
        %v2829 = vpop.f32.mrb[0].mxu0
        %v2830 = vadd.f32 %v1012, %v2829
        %v2831 = vpop.f32.mrb[0].mxu0
        %v2832 = vadd.f32 %v1016, %v2831
        %v2833 = vpop.f32.mrb[0].mxu0
        %v2834 = vadd.f32 %v1012, %v2833
        %v2835 = vpop.f32.mrb[0].mxu0
        %v2836 = vadd.f32 %v1016, %v2835
        %2837 = vmatprep.mubr.bf16.mxu0 %v720
        %2838 = vmatmul.mubr.bf16.gmra.mrb[0].mxu0 %v719
        %v2839 = vpop.f32.mrb[0].mxu0
        %v2840 = vadd.f32 %v1012, %v2839
        %v2841 = vpop.f32.mrb[0].mxu0
        %v2842 = vadd.f32 %v1016, %v2841
        %v2843 = vpop.f32.mrb[0].mxu0
        %v2844 = vadd.f32 %v1012, %v2843
        %v2845 = vpop.f32.mrb[0].mxu0
        %v2846 = vadd.f32 %v1016, %v2845
        %2847 = vmatprep.mubr.bf16.mxu0 %v724
        %2848 = vmatmul.mubr.bf16.gmra.mrb[0].mxu0 %v723
        %v2849 = vpop.f32.mrb[0].mxu0
        %v2850 = vadd.f32 %v1012, %v2849
        %v2851 = vpop.f32.mrb[0].mxu0
        %v2852 = vadd.f32 %v1016, %v2851
        %v2853 = vpop.f32.mrb[0].mxu0
        %v2854 = vadd.f32 %v1012, %v2853
        %v2855 = vpop.f32.mrb[0].mxu0
        %v2856 = vadd.f32 %v1016, %v2855
        %2857 = vmatprep.mubr.bf16.mxu0 %v728
        %2858 = vmatmul.mubr.bf16.gmra.mrb[0].mxu0 %v727
        %v2859 = vpop.f32.mrb[0].mxu0
        %v2860 = vadd.f32 %v1012, %v2859
        %v2861 = vpop.f32.mrb[0].mxu0
        %v2862 = vadd.f32 %v1016, %v2861
        %v2863 = vpop.f32.mrb[0].mxu0
        %v2864 = vadd.f32 %v1012, %v2863
        %v2865 = vpop.f32.mrb[0].mxu0
        %v2866 = vadd.f32 %v1016, %v2865
        %2867 = vmatprep.mubr.bf16.mxu0 %v732
        %2868 = vmatmul.mubr.bf16.gmra.mrb[0].mxu0 %v731
        %v2869 = vpop.f32.mrb[0].mxu0
        %v2870 = vadd.f32 %v1012, %v2869
        %v2871 = vpop.f32.mrb[0].mxu0
        %v2872 = vadd.f32 %v1016, %v2871
        %v2873 = vpop.f32.mrb[0].mxu0
        %v2874 = vadd.f32 %v1012, %v2873
        %v2875 = vpop.f32.mrb[0].mxu0
        %v2876 = vadd.f32 %v1016, %v2875
        %2877 = vdwg.mxu0
        %2878 = vmatprep.subr.bf16.mxu0 %v1934
        %2879 = vmatpush1.bf16.msra.mxu0 %v1933
        %2880 = vmatprep.subr.bf16.mxu0 %v1942
        %2881 = vmatpush1.bf16.msra.mxu0 %v1941
        %2882 = vmatprep.subr.bf16.mxu0 %v1950
        %2883 = vmatpush1.bf16.msra.mxu0 %v1949
        %2884 = vmatprep.subr.bf16.mxu0 %v1958
        %2885 = vmatpush1.bf16.msra.mxu0 %v1957
        %2886 = vmatprep.subr.bf16.mxu0 %v1966
        %2887 = vmatpush1.bf16.msra.mxu0 %v1965
        %2888 = vmatprep.subr.bf16.mxu0 %v1974
        %2889 = vmatpush1.bf16.msra.mxu0 %v1973
        %2890 = vmatprep.subr.bf16.mxu0 %v1982
        %2891 = vmatpush1.bf16.msra.mxu0 %v1981
        %2892 = vmatprep.subr.bf16.mxu0 %v1990
        %2893 = vmatpush1.bf16.msra.mxu0 %v1989
        %2894 = vmatprep.subr.bf16.mxu0 %v1998
        %2895 = vmatpush1.bf16.msra.mxu0 %v1997
        %2896 = vmatprep.subr.bf16.mxu0 %v2006
        %2897 = vmatpush1.bf16.msra.mxu0 %v2005
        %2898 = vmatprep.subr.bf16.mxu0 %v2014
        %2899 = vmatpush1.bf16.msra.mxu0 %v2013
        %2900 = vmatprep.subr.bf16.mxu0 %v2022
        %2901 = vmatpush1.bf16.msra.mxu0 %v2021
        %2902 = vmatprep.subr.bf16.mxu0 %v2030
        %2903 = vmatpush1.bf16.msra.mxu0 %v2029
        %2904 = vmatprep.subr.bf16.mxu0 %v2038
        %2905 = vmatpush1.bf16.msra.mxu0 %v2037
        %2906 = vmatprep.subr.bf16.mxu0 %v2046
        %2907 = vmatpush1.bf16.msra.mxu0 %v2045
        %2908 = vmatprep.subr.bf16.mxu0 %v2054
        %2909 = vmatpush1.bf16.msra.mxu0 %v2053
        %2910 = vmatprep.mubr.bf16.mxu0 %v706
        %2911 = vmatmul.mubr.bf16.gmra.mrb[0].mxu0 %v705
        %v2912 = vpop.f32.mrb[0].mxu0
        %v2913 = vadd.f32 %v2800, %v2912
        %v2914 = vpop.f32.mrb[0].mxu0
        %v2915 = vadd.f32 %v2802, %v2914
        %v2916 = vpop.f32.mrb[0].mxu0
        %v2917 = vadd.f32 %v2804, %v2916
        %v2918 = vpop.f32.mrb[0].mxu0
        %v2919 = vadd.f32 %v2806, %v2918
        %2920 = vmatprep.mubr.bf16.mxu0 %v710
        %2921 = vmatmul.mubr.bf16.gmra.mrb[0].mxu0 %v709
        %v2922 = vpop.f32.mrb[0].mxu0
        %v2923 = vadd.f32 %v2810, %v2922
        %v2924 = vpop.f32.mrb[0].mxu0
        %v2925 = vadd.f32 %v2812, %v2924
        %v2926 = vpop.f32.mrb[0].mxu0
        %v2927 = vadd.f32 %v2814, %v2926
        %v2928 = vpop.f32.mrb[0].mxu0
        %v2929 = vadd.f32 %v2816, %v2928
        %2930 = vmatprep.mubr.bf16.mxu0 %v714
        %2931 = vmatmul.mubr.bf16.gmra.mrb[0].mxu0 %v713
        %v2932 = vpop.f32.mrb[0].mxu0
        %v2933 = vadd.f32 %v2820, %v2932
        %v2934 = vpop.f32.mrb[0].mxu0
        %v2935 = vadd.f32 %v2822, %v2934
        %v2936 = vpop.f32.mrb[0].mxu0
        %v2937 = vadd.f32 %v2824, %v2936
        %v2938 = vpop.f32.mrb[0].mxu0
        %v2939 = vadd.f32 %v2826, %v2938
        %2940 = vmatprep.mubr.bf16.mxu0 %v718
        %2941 = vmatmul.mubr.bf16.gmra.mrb[0].mxu0 %v717
        %v2942 = vpop.f32.mrb[0].mxu0
        %v2943 = vadd.f32 %v2830, %v2942
        %v2944 = vpop.f32.mrb[0].mxu0
        %v2945 = vadd.f32 %v2832, %v2944
        %v2946 = vpop.f32.mrb[0].mxu0
        %v2947 = vadd.f32 %v2834, %v2946
        %v2948 = vpop.f32.mrb[0].mxu0
        %v2949 = vadd.f32 %v2836, %v2948
        %2950 = vmatprep.mubr.bf16.mxu0 %v722
        %2951 = vmatmul.mubr.bf16.gmra.mrb[0].mxu0 %v721
        %v2952 = vpop.f32.mrb[0].mxu0
        %v2953 = vadd.f32 %v2840, %v2952
        %v2954 = vpop.f32.mrb[0].mxu0
        %v2955 = vadd.f32 %v2842, %v2954
        %v2956 = vpop.f32.mrb[0].mxu0
        %v2957 = vadd.f32 %v2844, %v2956
        %v2958 = vpop.f32.mrb[0].mxu0
        %v2959 = vadd.f32 %v2846, %v2958
        %2960 = vmatprep.mubr.bf16.mxu0 %v726
        %2961 = vmatmul.mubr.bf16.gmra.mrb[0].mxu0 %v725
        %v2962 = vpop.f32.mrb[0].mxu0
        %v2963 = vadd.f32 %v2850, %v2962
        %v2964 = vpop.f32.mrb[0].mxu0
        %v2965 = vadd.f32 %v2852, %v2964
        %v2966 = vpop.f32.mrb[0].mxu0
        %v2967 = vadd.f32 %v2854, %v2966
        %v2968 = vpop.f32.mrb[0].mxu0
        %v2969 = vadd.f32 %v2856, %v2968
        %2970 = vmatprep.mubr.bf16.mxu0 %v730
        %2971 = vmatmul.mubr.bf16.gmra.mrb[0].mxu0 %v729
        %v2972 = vpop.f32.mrb[0].mxu0
        %v2973 = vadd.f32 %v2860, %v2972
        %v2974 = vpop.f32.mrb[0].mxu0
        %v2975 = vadd.f32 %v2862, %v2974
        %v2976 = vpop.f32.mrb[0].mxu0
        %v2977 = vadd.f32 %v2864, %v2976
        %v2978 = vpop.f32.mrb[0].mxu0
        %v2979 = vadd.f32 %v2866, %v2978
        %2980 = vmatprep.mubr.bf16.mxu0 %v734
        %2981 = vmatmul.mubr.bf16.gmra.mrb[0].mxu0 %v733
        %v2982 = vpop.f32.mrb[0].mxu0
        %v2983 = vadd.f32 %v2870, %v2982
        %v2984 = vpop.f32.mrb[0].mxu0
        %v2985 = vadd.f32 %v2872, %v2984
        %v2986 = vpop.f32.mrb[0].mxu0
        %v2987 = vadd.f32 %v2874, %v2986
        %v2988 = vpop.f32.mrb[0].mxu0
        %v2989 = vadd.f32 %v2876, %v2988
        %2990 = vdwg.mxu0
        %2991 = vmatprep.subr.bf16.mxu0 %v1808
        %2992 = vmatpush1.bf16.msra.mxu0 %v1807
        %2993 = vmatprep.subr.bf16.mxu0 %v1816
        %2994 = vmatpush1.bf16.msra.mxu0 %v1815
        %2995 = vmatprep.subr.bf16.mxu0 %v1824
        %2996 = vmatpush1.bf16.msra.mxu0 %v1823
        %2997 = vmatprep.subr.bf16.mxu0 %v1832
        %2998 = vmatpush1.bf16.msra.mxu0 %v1831
        %2999 = vmatprep.subr.bf16.mxu0 %v1840
        %3000 = vmatpush1.bf16.msra.mxu0 %v1839
        %3001 = vmatprep.subr.bf16.mxu0 %v1848
        %3002 = vmatpush1.bf16.msra.mxu0 %v1847
        %3003 = vmatprep.subr.bf16.mxu0 %v1856
        %3004 = vmatpush1.bf16.msra.mxu0 %v1855
        %3005 = vmatprep.subr.bf16.mxu0 %v1864
        %3006 = vmatpush1.bf16.msra.mxu0 %v1863
        %3007 = vmatprep.subr.bf16.mxu0 %v1872
        %3008 = vmatpush1.bf16.msra.mxu0 %v1871
        %3009 = vmatprep.subr.bf16.mxu0 %v1880
        %3010 = vmatpush1.bf16.msra.mxu0 %v1879
        %3011 = vmatprep.subr.bf16.mxu0 %v1888
        %3012 = vmatpush1.bf16.msra.mxu0 %v1887
        %3013 = vmatprep.subr.bf16.mxu0 %v1896
        %3014 = vmatpush1.bf16.msra.mxu0 %v1895
        %3015 = vmatprep.subr.bf16.mxu0 %v1904
        %3016 = vmatpush1.bf16.msra.mxu0 %v1903
        %3017 = vmatprep.subr.bf16.mxu0 %v1912
        %3018 = vmatpush1.bf16.msra.mxu0 %v1911
        %3019 = vmatprep.subr.bf16.mxu0 %v1920
        %3020 = vmatpush1.bf16.msra.mxu0 %v1919
        %3021 = vmatprep.subr.bf16.mxu0 %v1928
        %3022 = vmatpush1.bf16.msra.mxu0 %v1927
        %3023 = vmatprep.mubr.bf16.mxu0 %v704
        %3024 = vmatmul.mubr.bf16.gmra.mrb[0].mxu0 %v703
        %v3025 = vpop.f32.mrb[0].mxu0
        %v3026 = vadd.f32 %v1020, %v3025
        %v3027 = vpop.f32.mrb[0].mxu0
        %v3028 = vadd.f32 %v1024, %v3027
        %v3029 = vpop.f32.mrb[0].mxu0
        %v3030 = vadd.f32 %v1020, %v3029
        %v3031 = vpop.f32.mrb[0].mxu0
        %v3032 = vadd.f32 %v1024, %v3031
        %3033 = vmatprep.mubr.bf16.mxu0 %v708
        %3034 = vmatmul.mubr.bf16.gmra.mrb[0].mxu0 %v707
        %v3035 = vpop.f32.mrb[0].mxu0
        %v3036 = vadd.f32 %v1020, %v3035
        %v3037 = vpop.f32.mrb[0].mxu0
        %v3038 = vadd.f32 %v1024, %v3037
        %v3039 = vpop.f32.mrb[0].mxu0
        %v3040 = vadd.f32 %v1020, %v3039
        %v3041 = vpop.f32.mrb[0].mxu0
        %v3042 = vadd.f32 %v1024, %v3041
        %3043 = vmatprep.mubr.bf16.mxu0 %v712
        %3044 = vmatmul.mubr.bf16.gmra.mrb[0].mxu0 %v711
        %v3045 = vpop.f32.mrb[0].mxu0
        %v3046 = vadd.f32 %v1020, %v3045
        %v3047 = vpop.f32.mrb[0].mxu0
        %v3048 = vadd.f32 %v1024, %v3047
        %v3049 = vpop.f32.mrb[0].mxu0
        %v3050 = vadd.f32 %v1020, %v3049
        %v3051 = vpop.f32.mrb[0].mxu0
        %v3052 = vadd.f32 %v1024, %v3051
        %3053 = vmatprep.mubr.bf16.mxu0 %v716
        %3054 = vmatmul.mubr.bf16.gmra.mrb[0].mxu0 %v715
        %v3055 = vpop.f32.mrb[0].mxu0
        %v3056 = vadd.f32 %v1020, %v3055
        %v3057 = vpop.f32.mrb[0].mxu0
        %v3058 = vadd.f32 %v1024, %v3057
        %v3059 = vpop.f32.mrb[0].mxu0
        %v3060 = vadd.f32 %v1020, %v3059
        %v3061 = vpop.f32.mrb[0].mxu0
        %v3062 = vadd.f32 %v1024, %v3061
        %3063 = vmatprep.mubr.bf16.mxu0 %v720
        %3064 = vmatmul.mubr.bf16.gmra.mrb[0].mxu0 %v719
        %v3065 = vpop.f32.mrb[0].mxu0
        %v3066 = vadd.f32 %v1020, %v3065
        %v3067 = vpop.f32.mrb[0].mxu0
        %v3068 = vadd.f32 %v1024, %v3067
        %v3069 = vpop.f32.mrb[0].mxu0
        %v3070 = vadd.f32 %v1020, %v3069
        %v3071 = vpop.f32.mrb[0].mxu0
        %v3072 = vadd.f32 %v1024, %v3071
        %3073 = vmatprep.mubr.bf16.mxu0 %v724
        %3074 = vmatmul.mubr.bf16.gmra.mrb[0].mxu0 %v723
        %v3075 = vpop.f32.mrb[0].mxu0
        %v3076 = vadd.f32 %v1020, %v3075
        %v3077 = vpop.f32.mrb[0].mxu0
        %v3078 = vadd.f32 %v1024, %v3077
        %v3079 = vpop.f32.mrb[0].mxu0
        %v3080 = vadd.f32 %v1020, %v3079
        %v3081 = vpop.f32.mrb[0].mxu0
        %v3082 = vadd.f32 %v1024, %v3081
        %3083 = vmatprep.mubr.bf16.mxu0 %v728
        %3084 = vmatmul.mubr.bf16.gmra.mrb[0].mxu0 %v727
        %v3085 = vpop.f32.mrb[0].mxu0
        %v3086 = vadd.f32 %v1020, %v3085
        %v3087 = vpop.f32.mrb[0].mxu0
        %v3088 = vadd.f32 %v1024, %v3087
        %v3089 = vpop.f32.mrb[0].mxu0
        %v3090 = vadd.f32 %v1020, %v3089
        %v3091 = vpop.f32.mrb[0].mxu0
        %v3092 = vadd.f32 %v1024, %v3091
        %3093 = vmatprep.mubr.bf16.mxu0 %v732
        %3094 = vmatmul.mubr.bf16.gmra.mrb[0].mxu0 %v731
        %v3095 = vpop.f32.mrb[0].mxu0
        %v3096 = vadd.f32 %v1020, %v3095
        %v3097 = vpop.f32.mrb[0].mxu0
        %v3098 = vadd.f32 %v1024, %v3097
        %v3099 = vpop.f32.mrb[0].mxu0
        %v3100 = vadd.f32 %v1020, %v3099
        %v3101 = vpop.f32.mrb[0].mxu0
        %v3102 = vadd.f32 %v1024, %v3101
        %3103 = vdwg.mxu0
        %3104 = vmatprep.subr.bf16.mxu0 %v1936
        %3105 = vmatpush1.bf16.msra.mxu0 %v1935
        %3106 = vmatprep.subr.bf16.mxu0 %v1944
        %3107 = vmatpush1.bf16.msra.mxu0 %v1943
        %3108 = vmatprep.subr.bf16.mxu0 %v1952
        %3109 = vmatpush1.bf16.msra.mxu0 %v1951
        %3110 = vmatprep.subr.bf16.mxu0 %v1960
        %3111 = vmatpush1.bf16.msra.mxu0 %v1959
        %3112 = vmatprep.subr.bf16.mxu0 %v1968
        %3113 = vmatpush1.bf16.msra.mxu0 %v1967
        %3114 = vmatprep.subr.bf16.mxu0 %v1976
        %3115 = vmatpush1.bf16.msra.mxu0 %v1975
        %3116 = vmatprep.subr.bf16.mxu0 %v1984
        %3117 = vmatpush1.bf16.msra.mxu0 %v1983
        %3118 = vmatprep.subr.bf16.mxu0 %v1992
        %3119 = vmatpush1.bf16.msra.mxu0 %v1991
        %3120 = vmatprep.subr.bf16.mxu0 %v2000
        %3121 = vmatpush1.bf16.msra.mxu0 %v1999
        %3122 = vmatprep.subr.bf16.mxu0 %v2008
        %3123 = vmatpush1.bf16.msra.mxu0 %v2007
        %3124 = vmatprep.subr.bf16.mxu0 %v2016
        %3125 = vmatpush1.bf16.msra.mxu0 %v2015
        %3126 = vmatprep.subr.bf16.mxu0 %v2024
        %3127 = vmatpush1.bf16.msra.mxu0 %v2023
        %3128 = vmatprep.subr.bf16.mxu0 %v2032
        %3129 = vmatpush1.bf16.msra.mxu0 %v2031
        %3130 = vmatprep.subr.bf16.mxu0 %v2040
        %3131 = vmatpush1.bf16.msra.mxu0 %v2039
        %3132 = vmatprep.subr.bf16.mxu0 %v2048
        %3133 = vmatpush1.bf16.msra.mxu0 %v2047
        %3134 = vmatprep.subr.bf16.mxu0 %v2056
        %3135 = vmatpush1.bf16.msra.mxu0 %v2055
        %3136 = vmatprep.mubr.bf16.mxu0 %v706
        %3137 = vmatmul.mubr.bf16.gmra.mrb[0].mxu0 %v705
        %v3138 = vpop.f32.mrb[0].mxu0
        %v3139 = vadd.f32 %v3026, %v3138
        %v3140 = vpop.f32.mrb[0].mxu0
        %v3141 = vadd.f32 %v3028, %v3140
        %v3142 = vpop.f32.mrb[0].mxu0
        %v3143 = vadd.f32 %v3030, %v3142
        %v3144 = vpop.f32.mrb[0].mxu0
        %v3145 = vadd.f32 %v3032, %v3144
        %3146 = vmatprep.mubr.bf16.mxu0 %v710
        %3147 = vmatmul.mubr.bf16.gmra.mrb[0].mxu0 %v709
        %v3148 = vpop.f32.mrb[0].mxu0
        %v3149 = vadd.f32 %v3036, %v3148
        %v3150 = vpop.f32.mrb[0].mxu0
        %v3151 = vadd.f32 %v3038, %v3150
        %v3152 = vpop.f32.mrb[0].mxu0
        %v3153 = vadd.f32 %v3040, %v3152
        %v3154 = vpop.f32.mrb[0].mxu0
        %v3155 = vadd.f32 %v3042, %v3154
        %3156 = vmatprep.mubr.bf16.mxu0 %v714
        %3157 = vmatmul.mubr.bf16.gmra.mrb[0].mxu0 %v713
        %v3158 = vpop.f32.mrb[0].mxu0
        %v3159 = vadd.f32 %v3046, %v3158
        %v3160 = vpop.f32.mrb[0].mxu0
        %v3161 = vadd.f32 %v3048, %v3160
        %v3162 = vpop.f32.mrb[0].mxu0
        %v3163 = vadd.f32 %v3050, %v3162
        %v3164 = vpop.f32.mrb[0].mxu0
        %v3165 = vadd.f32 %v3052, %v3164
        %3166 = vmatprep.mubr.bf16.mxu0 %v718
        %3167 = vmatmul.mubr.bf16.gmra.mrb[0].mxu0 %v717
        %v3168 = vpop.f32.mrb[0].mxu0
        %v3169 = vadd.f32 %v3056, %v3168
        %v3170 = vpop.f32.mrb[0].mxu0
        %v3171 = vadd.f32 %v3058, %v3170
        %v3172 = vpop.f32.mrb[0].mxu0
        %v3173 = vadd.f32 %v3060, %v3172
        %v3174 = vpop.f32.mrb[0].mxu0
        %v3175 = vadd.f32 %v3062, %v3174
        %3176 = vmatprep.mubr.bf16.mxu0 %v722
        %3177 = vmatmul.mubr.bf16.gmra.mrb[0].mxu0 %v721
        %v3178 = vpop.f32.mrb[0].mxu0
        %v3179 = vadd.f32 %v3066, %v3178
        %v3180 = vpop.f32.mrb[0].mxu0
        %v3181 = vadd.f32 %v3068, %v3180
        %v3182 = vpop.f32.mrb[0].mxu0
        %v3183 = vadd.f32 %v3070, %v3182
        %v3184 = vpop.f32.mrb[0].mxu0
        %v3185 = vadd.f32 %v3072, %v3184
        %3186 = vmatprep.mubr.bf16.mxu0 %v726
        %3187 = vmatmul.mubr.bf16.gmra.mrb[0].mxu0 %v725
        %v3188 = vpop.f32.mrb[0].mxu0
        %v3189 = vadd.f32 %v3076, %v3188
        %v3190 = vpop.f32.mrb[0].mxu0
        %v3191 = vadd.f32 %v3078, %v3190
        %v3192 = vpop.f32.mrb[0].mxu0
        %v3193 = vadd.f32 %v3080, %v3192
        %v3194 = vpop.f32.mrb[0].mxu0
        %v3195 = vadd.f32 %v3082, %v3194
        %3196 = vmatprep.mubr.bf16.mxu0 %v730
        %3197 = vmatmul.mubr.bf16.gmra.mrb[0].mxu0 %v729
        %v3198 = vpop.f32.mrb[0].mxu0
        %v3199 = vadd.f32 %v3086, %v3198
        %v3200 = vpop.f32.mrb[0].mxu0
        %v3201 = vadd.f32 %v3088, %v3200
        %v3202 = vpop.f32.mrb[0].mxu0
        %v3203 = vadd.f32 %v3090, %v3202
        %v3204 = vpop.f32.mrb[0].mxu0
        %v3205 = vadd.f32 %v3092, %v3204
        %3206 = vmatprep.mubr.bf16.mxu0 %v734
        %3207 = vmatmul.mubr.bf16.gmra.mrb[0].mxu0 %v733
        %v3208 = vpop.f32.mrb[0].mxu0
        %v3209 = vadd.f32 %v3096, %v3208
        %v3210 = vpop.f32.mrb[0].mxu0
        %v3211 = vadd.f32 %v3098, %v3210
        %v3212 = vpop.f32.mrb[0].mxu0
        %v3213 = vadd.f32 %v3100, %v3212
        %v3214 = vpop.f32.mrb[0].mxu0
        %v3215 = vadd.f32 %v3102, %v3214
        %3216 = vdwg.mxu0
        %v3217 = vtanh.pop %v2461
        %v3218 = vtanh.pop %v2463
        %v3219 = vtanh.pop %v2465
        %v3220 = vtanh.pop %v2467
        %v3221 = vtanh.pop %v2471
        %v3222 = vtanh.pop %v2473
        %v3223 = vtanh.pop %v2475
        %v3224 = vtanh.pop %v2477
        %v3225 = vtanh.pop %v2481
        %v3226 = vtanh.pop %v2483
        %v3227 = vtanh.pop %v2485
        %v3228 = vtanh.pop %v2487
        %v3229 = vtanh.pop %v2491
        %v3230 = vtanh.pop %v2493
        %v3231 = vtanh.pop %v2495
        %v3232 = vtanh.pop %v2497
        %v3233 = vtanh.pop %v2501
        %v3234 = vtanh.pop %v2503
        %v3235 = vtanh.pop %v2505
        %v3236 = vtanh.pop %v2507
        %v3237 = vtanh.pop %v2511
        %v3238 = vtanh.pop %v2513
        %v3239 = vtanh.pop %v2515
        %v3240 = vtanh.pop %v2517
        %v3241 = vtanh.pop %v2521
        %v3242 = vtanh.pop %v2523
        %v3243 = vtanh.pop %v2525
        %v3244 = vtanh.pop %v2527
        %v3245 = vtanh.pop %v2531
        %v3246 = vtanh.pop %v2533
        %v3247 = vtanh.pop %v2535
        %v3248 = vtanh.pop %v2537
        %v3249 = vmul.f32 %v3139, 0.5
        %v3250 = vmul.f32 %v3141, 0.5
        %v3251 = vmul.f32 %v3143, 0.5
        %v3252 = vmul.f32 %v3145, 0.5
        %v3253 = vmul.f32 %v3149, 0.5
        %v3254 = vmul.f32 %v3151, 0.5
        %v3255 = vmul.f32 %v3153, 0.5
        %v3256 = vmul.f32 %v3155, 0.5
        %v3257 = vmul.f32 %v3159, 0.5
        %v3258 = vmul.f32 %v3161, 0.5
        %v3259 = vmul.f32 %v3163, 0.5
        %v3260 = vmul.f32 %v3165, 0.5
        %v3261 = vmul.f32 %v3169, 0.5
        %v3262 = vmul.f32 %v3171, 0.5
        %v3263 = vmul.f32 %v3173, 0.5
        %v3264 = vmul.f32 %v3175, 0.5
        %v3265 = vmul.f32 %v3179, 0.5
        %v3266 = vmul.f32 %v3181, 0.5
        %v3267 = vmul.f32 %v3183, 0.5
        %v3268 = vmul.f32 %v3185, 0.5
        %v3269 = vmul.f32 %v3189, 0.5
        %v3270 = vmul.f32 %v3191, 0.5
        %v3271 = vmul.f32 %v3193, 0.5
        %v3272 = vmul.f32 %v3195, 0.5
        %v3273 = vmul.f32 %v3199, 0.5
        %v3274 = vmul.f32 %v3201, 0.5
        %v3275 = vmul.f32 %v3203, 0.5
        %v3276 = vmul.f32 %v3205, 0.5
        %v3277 = vmul.f32 %v3209, 0.5
        %v3278 = vmul.f32 %v3211, 0.5
        %v3279 = vmul.f32 %v3213, 0.5
        %v3280 = vmul.f32 %v3215, 0.5
        %v3281 = vtanh.pop %v3249
        %v3282 = vtanh.pop %v3250
        %v3283 = vtanh.pop %v3251
        %v3284 = vtanh.pop %v3252
        %v3285 = vtanh.pop %v3253
        %v3286 = vtanh.pop %v3254
        %v3287 = vtanh.pop %v3255
        %v3288 = vtanh.pop %v3256
        %v3289 = vtanh.pop %v3257
        %v3290 = vtanh.pop %v3258
        %v3291 = vtanh.pop %v3259
        %v3292 = vtanh.pop %v3260
        %v3293 = vtanh.pop %v3261
        %v3294 = vtanh.pop %v3262
        %v3295 = vtanh.pop %v3263
        %v3296 = vtanh.pop %v3264
        %v3297 = vtanh.pop %v3265
        %v3298 = vtanh.pop %v3266
        %v3299 = vtanh.pop %v3267
        %v3300 = vtanh.pop %v3268
        %v3301 = vtanh.pop %v3269
        %v3302 = vtanh.pop %v3270
        %v3303 = vtanh.pop %v3271
        %v3304 = vtanh.pop %v3272
        %v3305 = vtanh.pop %v3273
        %v3306 = vtanh.pop %v3274
        %v3307 = vtanh.pop %v3275
        %v3308 = vtanh.pop %v3276
        %v3309 = vtanh.pop %v3277
        %v3310 = vtanh.pop %v3278
        %v3311 = vtanh.pop %v3279
        %v3312 = vtanh.pop %v3280
        %v3313 = vmul.f32 %v3281, 0.5
        %v3314 = vmul.f32 %v3282, 0.5
        %v3315 = vmul.f32 %v3283, 0.5
        %v3316 = vmul.f32 %v3284, 0.5
        %v3317 = vmul.f32 %v3285, 0.5
        %v3318 = vmul.f32 %v3286, 0.5
        %v3319 = vmul.f32 %v3287, 0.5
        %v3320 = vmul.f32 %v3288, 0.5
        %v3321 = vmul.f32 %v3289, 0.5
        %v3322 = vmul.f32 %v3290, 0.5
        %v3323 = vmul.f32 %v3291, 0.5
        %v3324 = vmul.f32 %v3292, 0.5
        %v3325 = vmul.f32 %v3293, 0.5
        %v3326 = vmul.f32 %v3294, 0.5
        %v3327 = vmul.f32 %v3295, 0.5
        %v3328 = vmul.f32 %v3296, 0.5
        %v3329 = vmul.f32 %v3297, 0.5
        %v3330 = vmul.f32 %v3298, 0.5
        %v3331 = vmul.f32 %v3299, 0.5
        %v3332 = vmul.f32 %v3300, 0.5
        %v3333 = vmul.f32 %v3301, 0.5
        %v3334 = vmul.f32 %v3302, 0.5
        %v3335 = vmul.f32 %v3303, 0.5
        %v3336 = vmul.f32 %v3304, 0.5
        %v3337 = vmul.f32 %v3305, 0.5
        %v3338 = vmul.f32 %v3306, 0.5
        %v3339 = vmul.f32 %v3307, 0.5
        %v3340 = vmul.f32 %v3308, 0.5
        %v3341 = vmul.f32 %v3309, 0.5
        %v3342 = vmul.f32 %v3310, 0.5
        %v3343 = vmul.f32 %v3311, 0.5
        %v3344 = vmul.f32 %v3312, 0.5
        %v3345 = vadd.f32 %v3313, 0.5
        %v3346 = vadd.f32 %v3314, 0.5
        %v3347 = vadd.f32 %v3315, 0.5
        %v3348 = vadd.f32 %v3316, 0.5
        %v3349 = vadd.f32 %v3317, 0.5
        %v3350 = vadd.f32 %v3318, 0.5
        %v3351 = vadd.f32 %v3319, 0.5
        %v3352 = vadd.f32 %v3320, 0.5
        %v3353 = vadd.f32 %v3321, 0.5
        %v3354 = vadd.f32 %v3322, 0.5
        %v3355 = vadd.f32 %v3323, 0.5
        %v3356 = vadd.f32 %v3324, 0.5
        %v3357 = vadd.f32 %v3325, 0.5
        %v3358 = vadd.f32 %v3326, 0.5
        %v3359 = vadd.f32 %v3327, 0.5
        %v3360 = vadd.f32 %v3328, 0.5
        %v3361 = vadd.f32 %v3329, 0.5
        %v3362 = vadd.f32 %v3330, 0.5
        %v3363 = vadd.f32 %v3331, 0.5
        %v3364 = vadd.f32 %v3332, 0.5
        %v3365 = vadd.f32 %v3333, 0.5
        %v3366 = vadd.f32 %v3334, 0.5
        %v3367 = vadd.f32 %v3335, 0.5
        %v3368 = vadd.f32 %v3336, 0.5
        %v3369 = vadd.f32 %v3337, 0.5
        %v3370 = vadd.f32 %v3338, 0.5
        %v3371 = vadd.f32 %v3339, 0.5
        %v3372 = vadd.f32 %v3340, 0.5
        %v3373 = vadd.f32 %v3341, 0.5
        %v3374 = vadd.f32 %v3342, 0.5
        %v3375 = vadd.f32 %v3343, 0.5
        %v3376 = vadd.f32 %v3344, 0.5
        %v3377 = vmul.f32 %v3345, %v3217
        %v3378 = vmul.f32 %v3346, %v3218
        %v3379 = vmul.f32 %v3347, %v3219
        %v3380 = vmul.f32 %v3348, %v3220
        %v3381 = vmul.f32 %v3349, %v3221
        %v3382 = vmul.f32 %v3350, %v3222
        %v3383 = vmul.f32 %v3351, %v3223
        %v3384 = vmul.f32 %v3352, %v3224
        %v3385 = vmul.f32 %v3353, %v3225
        %v3386 = vmul.f32 %v3354, %v3226
        %v3387 = vmul.f32 %v3355, %v3227
        %v3388 = vmul.f32 %v3356, %v3228
        %v3389 = vmul.f32 %v3357, %v3229
        %v3390 = vmul.f32 %v3358, %v3230
        %v3391 = vmul.f32 %v3359, %v3231
        %v3392 = vmul.f32 %v3360, %v3232
        %v3393 = vmul.f32 %v3361, %v3233
        %v3394 = vmul.f32 %v3362, %v3234
        %v3395 = vmul.f32 %v3363, %v3235
        %v3396 = vmul.f32 %v3364, %v3236
        %v3397 = vmul.f32 %v3365, %v3237
        %v3398 = vmul.f32 %v3366, %v3238
        %v3399 = vmul.f32 %v3367, %v3239
        %v3400 = vmul.f32 %v3368, %v3240
        %v3401 = vmul.f32 %v3369, %v3241
        %v3402 = vmul.f32 %v3370, %v3242
        %v3403 = vmul.f32 %v3371, %v3243
        %v3404 = vmul.f32 %v3372, %v3244
        %v3405 = vmul.f32 %v3373, %v3245
        %v3406 = vmul.f32 %v3374, %v3246
        %v3407 = vmul.f32 %v3375, %v3247
        %v3408 = vmul.f32 %v3376, %v3248
        %3409 = vst [vmem:[#allocation4] sm:$0xff] %v3377
        %3410 = vst [vmem:[#allocation4 + $0x8] sm:$0xff] %v3378
        %3411 = vst [vmem:[#allocation4 + $0x10] sm:$0xff] %v3379
        %3412 = vst [vmem:[#allocation4 + $0x18] sm:$0xff] %v3380
        %3413 = vst [vmem:[#allocation4 + $0x20] sm:$0xff] %v3381
        %3414 = vst [vmem:[#allocation4 + $0x28] sm:$0xff] %v3382
        %3415 = vst [vmem:[#allocation4 + $0x30] sm:$0xff] %v3383
        %3416 = vst [vmem:[#allocation4 + $0x38] sm:$0xff] %v3384
        %3417 = vst [vmem:[#allocation4 + $0x40] sm:$0xff] %v3385
        %3418 = vst [vmem:[#allocation4 + $0x48] sm:$0xff] %v3386
        %3419 = vst [vmem:[#allocation4 + $0x50] sm:$0xff] %v3387
        %3420 = vst [vmem:[#allocation4 + $0x58] sm:$0xff] %v3388
        %3421 = vst [vmem:[#allocation4 + $0x60] sm:$0xff] %v3389
        %3422 = vst [vmem:[#allocation4 + $0x68] sm:$0xff] %v3390
        %3423 = vst [vmem:[#allocation4 + $0x70] sm:$0xff] %v3391
        %3424 = vst [vmem:[#allocation4 + $0x78] sm:$0xff] %v3392
        %3425 = vst [vmem:[#allocation4 + $0x80] sm:$0xff] %v3393
        %3426 = vst [vmem:[#allocation4 + $0x88] sm:$0xff] %v3394
        %3427 = vst [vmem:[#allocation4 + $0x90] sm:$0xff] %v3395
        %3428 = vst [vmem:[#allocation4 + $0x98] sm:$0xff] %v3396
        %3429 = vst [vmem:[#allocation4 + $0xa0] sm:$0xff] %v3397
        %3430 = vst [vmem:[#allocation4 + $0xa8] sm:$0xff] %v3398
        %3431 = vst [vmem:[#allocation4 + $0xb0] sm:$0xff] %v3399
        %3432 = vst [vmem:[#allocation4 + $0xb8] sm:$0xff] %v3400
        %3433 = vst [vmem:[#allocation4 + $0xc0] sm:$0xff] %v3401
        %3434 = vst [vmem:[#allocation4 + $0xc8] sm:$0xff] %v3402
        %3435 = vst [vmem:[#allocation4 + $0xd0] sm:$0xff] %v3403
        %3436 = vst [vmem:[#allocation4 + $0xd8] sm:$0xff] %v3404
        %3437 = vst [vmem:[#allocation4 + $0xe0] sm:$0xff] %v3405
        %3438 = vst [vmem:[#allocation4 + $0xe8] sm:$0xff] %v3406
        %3439 = vst [vmem:[#allocation4 + $0xf0] sm:$0xff] %v3407
        %3440 = vst [vmem:[#allocation4 + $0xf8] sm:$0xff] %v3408
        %v3441 = vmul.f32 %v2687, 0.5
        %v3442 = vmul.f32 %v2689, 0.5
        %v3443 = vmul.f32 %v2691, 0.5
        %v3444 = vmul.f32 %v2693, 0.5
        %v3445 = vmul.f32 %v2697, 0.5
        %v3446 = vmul.f32 %v2699, 0.5
        %v3447 = vmul.f32 %v2701, 0.5
        %v3448 = vmul.f32 %v2703, 0.5
        %v3449 = vmul.f32 %v2707, 0.5
        %v3450 = vmul.f32 %v2709, 0.5
        %v3451 = vmul.f32 %v2711, 0.5
        %v3452 = vmul.f32 %v2713, 0.5
        %v3453 = vmul.f32 %v2717, 0.5
        %v3454 = vmul.f32 %v2719, 0.5
        %v3455 = vmul.f32 %v2721, 0.5
        %v3456 = vmul.f32 %v2723, 0.5
        %v3457 = vmul.f32 %v2727, 0.5
        %v3458 = vmul.f32 %v2729, 0.5
        %v3459 = vmul.f32 %v2731, 0.5
        %v3460 = vmul.f32 %v2733, 0.5
        %v3461 = vmul.f32 %v2737, 0.5
        %v3462 = vmul.f32 %v2739, 0.5
        %v3463 = vmul.f32 %v2741, 0.5
        %v3464 = vmul.f32 %v2743, 0.5
        %v3465 = vmul.f32 %v2747, 0.5
        %v3466 = vmul.f32 %v2749, 0.5
        %v3467 = vmul.f32 %v2751, 0.5
        %v3468 = vmul.f32 %v2753, 0.5
        %v3469 = vmul.f32 %v2757, 0.5
        %v3470 = vmul.f32 %v2759, 0.5
        %v3471 = vmul.f32 %v2761, 0.5
        %v3472 = vmul.f32 %v2763, 0.5
        %v3473 = vtanh.pop %v3441
        %v3474 = vtanh.pop %v3442
        %v3475 = vtanh.pop %v3443
        %v3476 = vtanh.pop %v3444
        %v3477 = vtanh.pop %v3445
        %v3478 = vtanh.pop %v3446
        %v3479 = vtanh.pop %v3447
        %v3480 = vtanh.pop %v3448
        %v3481 = vtanh.pop %v3449
        %v3482 = vtanh.pop %v3450
        %v3483 = vtanh.pop %v3451
        %v3484 = vtanh.pop %v3452
        %v3485 = vtanh.pop %v3453
        %v3486 = vtanh.pop %v3454
        %v3487 = vtanh.pop %v3455
        %v3488 = vtanh.pop %v3456
        %v3489 = vtanh.pop %v3457
        %v3490 = vtanh.pop %v3458
        %v3491 = vtanh.pop %v3459
        %v3492 = vtanh.pop %v3460
        %v3493 = vtanh.pop %v3461
        %v3494 = vtanh.pop %v3462
        %v3495 = vtanh.pop %v3463
        %v3496 = vtanh.pop %v3464
        %v3497 = vtanh.pop %v3465
        %v3498 = vtanh.pop %v3466
        %v3499 = vtanh.pop %v3467
        %v3500 = vtanh.pop %v3468
        %v3501 = vtanh.pop %v3469
        %v3502 = vtanh.pop %v3470
        %v3503 = vtanh.pop %v3471
        %v3504 = vtanh.pop %v3472
        %v3505 = vmul.f32 %v3473, 0.5
        %v3506 = vmul.f32 %v3474, 0.5
        %v3507 = vmul.f32 %v3475, 0.5
        %v3508 = vmul.f32 %v3476, 0.5
        %v3509 = vmul.f32 %v3477, 0.5
        %v3510 = vmul.f32 %v3478, 0.5
        %v3511 = vmul.f32 %v3479, 0.5
        %v3512 = vmul.f32 %v3480, 0.5
        %v3513 = vmul.f32 %v3481, 0.5
        %v3514 = vmul.f32 %v3482, 0.5
        %v3515 = vmul.f32 %v3483, 0.5
        %v3516 = vmul.f32 %v3484, 0.5
        %v3517 = vmul.f32 %v3485, 0.5
        %v3518 = vmul.f32 %v3486, 0.5
        %v3519 = vmul.f32 %v3487, 0.5
        %v3520 = vmul.f32 %v3488, 0.5
        %v3521 = vmul.f32 %v3489, 0.5
        %v3522 = vmul.f32 %v3490, 0.5
        %v3523 = vmul.f32 %v3491, 0.5
        %v3524 = vmul.f32 %v3492, 0.5
        %v3525 = vmul.f32 %v3493, 0.5
        %v3526 = vmul.f32 %v3494, 0.5
        %v3527 = vmul.f32 %v3495, 0.5
        %v3528 = vmul.f32 %v3496, 0.5
        %v3529 = vmul.f32 %v3497, 0.5
        %v3530 = vmul.f32 %v3498, 0.5
        %v3531 = vmul.f32 %v3499, 0.5
        %v3532 = vmul.f32 %v3500, 0.5
        %v3533 = vmul.f32 %v3501, 0.5
        %v3534 = vmul.f32 %v3502, 0.5
        %v3535 = vmul.f32 %v3503, 0.5
        %v3536 = vmul.f32 %v3504, 0.5
        %v3537 = vadd.f32 %v3505, 0.5
        %v3538 = vadd.f32 %v3506, 0.5
        %v3539 = vadd.f32 %v3507, 0.5
        %v3540 = vadd.f32 %v3508, 0.5
        %v3541 = vadd.f32 %v3509, 0.5
        %v3542 = vadd.f32 %v3510, 0.5
        %v3543 = vadd.f32 %v3511, 0.5
        %v3544 = vadd.f32 %v3512, 0.5
        %v3545 = vadd.f32 %v3513, 0.5
        %v3546 = vadd.f32 %v3514, 0.5
        %v3547 = vadd.f32 %v3515, 0.5
        %v3548 = vadd.f32 %v3516, 0.5
        %v3549 = vadd.f32 %v3517, 0.5
        %v3550 = vadd.f32 %v3518, 0.5
        %v3551 = vadd.f32 %v3519, 0.5
        %v3552 = vadd.f32 %v3520, 0.5
        %v3553 = vadd.f32 %v3521, 0.5
        %v3554 = vadd.f32 %v3522, 0.5
        %v3555 = vadd.f32 %v3523, 0.5
        %v3556 = vadd.f32 %v3524, 0.5
        %v3557 = vadd.f32 %v3525, 0.5
        %v3558 = vadd.f32 %v3526, 0.5
        %v3559 = vadd.f32 %v3527, 0.5
        %v3560 = vadd.f32 %v3528, 0.5
        %v3561 = vadd.f32 %v3529, 0.5
        %v3562 = vadd.f32 %v3530, 0.5
        %v3563 = vadd.f32 %v3531, 0.5
        %v3564 = vadd.f32 %v3532, 0.5
        %v3565 = vadd.f32 %v3533, 0.5
        %v3566 = vadd.f32 %v3534, 0.5
        %v3567 = vadd.f32 %v3535, 0.5
        %v3568 = vadd.f32 %v3536, 0.5
        %3569 = vst [vmem:[#allocation5] sm:$0xff] %v3537
        %3570 = vst [vmem:[#allocation5 + $0x8] sm:$0xff] %v3538
        %3571 = vst [vmem:[#allocation5 + $0x10] sm:$0xff] %v3539
        %3572 = vst [vmem:[#allocation5 + $0x18] sm:$0xff] %v3540
        %3573 = vst [vmem:[#allocation5 + $0x20] sm:$0xff] %v3541
        %3574 = vst [vmem:[#allocation5 + $0x28] sm:$0xff] %v3542
        %3575 = vst [vmem:[#allocation5 + $0x30] sm:$0xff] %v3543
        %3576 = vst [vmem:[#allocation5 + $0x38] sm:$0xff] %v3544
        %3577 = vst [vmem:[#allocation5 + $0x40] sm:$0xff] %v3545
        %3578 = vst [vmem:[#allocation5 + $0x48] sm:$0xff] %v3546
        %3579 = vst [vmem:[#allocation5 + $0x50] sm:$0xff] %v3547
        %3580 = vst [vmem:[#allocation5 + $0x58] sm:$0xff] %v3548
        %3581 = vst [vmem:[#allocation5 + $0x60] sm:$0xff] %v3549
        %3582 = vst [vmem:[#allocation5 + $0x68] sm:$0xff] %v3550
        %3583 = vst [vmem:[#allocation5 + $0x70] sm:$0xff] %v3551
        %3584 = vst [vmem:[#allocation5 + $0x78] sm:$0xff] %v3552
        %3585 = vst [vmem:[#allocation5 + $0x80] sm:$0xff] %v3553
        %3586 = vst [vmem:[#allocation5 + $0x88] sm:$0xff] %v3554
        %3587 = vst [vmem:[#allocation5 + $0x90] sm:$0xff] %v3555
        %3588 = vst [vmem:[#allocation5 + $0x98] sm:$0xff] %v3556
        %3589 = vst [vmem:[#allocation5 + $0xa0] sm:$0xff] %v3557
        %3590 = vst [vmem:[#allocation5 + $0xa8] sm:$0xff] %v3558
        %3591 = vst [vmem:[#allocation5 + $0xb0] sm:$0xff] %v3559
        %3592 = vst [vmem:[#allocation5 + $0xb8] sm:$0xff] %v3560
        %3593 = vst [vmem:[#allocation5 + $0xc0] sm:$0xff] %v3561
        %3594 = vst [vmem:[#allocation5 + $0xc8] sm:$0xff] %v3562
        %3595 = vst [vmem:[#allocation5 + $0xd0] sm:$0xff] %v3563
        %3596 = vst [vmem:[#allocation5 + $0xd8] sm:$0xff] %v3564
        %3597 = vst [vmem:[#allocation5 + $0xe0] sm:$0xff] %v3565
        %3598 = vst [vmem:[#allocation5 + $0xe8] sm:$0xff] %v3566
        %3599 = vst [vmem:[#allocation5 + $0xf0] sm:$0xff] %v3567
        %3600 = vst [vmem:[#allocation5 + $0xf8] sm:$0xff] %v3568
        %v3601 = vmul.f32 %v2913, 0.5
        %v3602 = vmul.f32 %v2915, 0.5
        %v3603 = vmul.f32 %v2917, 0.5
        %v3604 = vmul.f32 %v2919, 0.5
        %v3605 = vmul.f32 %v2923, 0.5
        %v3606 = vmul.f32 %v2925, 0.5
        %v3607 = vmul.f32 %v2927, 0.5
        %v3608 = vmul.f32 %v2929, 0.5
        %v3609 = vmul.f32 %v2933, 0.5
        %v3610 = vmul.f32 %v2935, 0.5
        %v3611 = vmul.f32 %v2937, 0.5
        %v3612 = vmul.f32 %v2939, 0.5
        %v3613 = vmul.f32 %v2943, 0.5
        %v3614 = vmul.f32 %v2945, 0.5
        %v3615 = vmul.f32 %v2947, 0.5
        %v3616 = vmul.f32 %v2949, 0.5
        %v3617 = vmul.f32 %v2953, 0.5
        %v3618 = vmul.f32 %v2955, 0.5
        %v3619 = vmul.f32 %v2957, 0.5
        %v3620 = vmul.f32 %v2959, 0.5
        %v3621 = vmul.f32 %v2963, 0.5
        %v3622 = vmul.f32 %v2965, 0.5
        %v3623 = vmul.f32 %v2967, 0.5
        %v3624 = vmul.f32 %v2969, 0.5
        %v3625 = vmul.f32 %v2973, 0.5
        %v3626 = vmul.f32 %v2975, 0.5
        %v3627 = vmul.f32 %v2977, 0.5
        %v3628 = vmul.f32 %v2979, 0.5
        %v3629 = vmul.f32 %v2983, 0.5
        %v3630 = vmul.f32 %v2985, 0.5
        %v3631 = vmul.f32 %v2987, 0.5
        %v3632 = vmul.f32 %v2989, 0.5
        %v3633 = vtanh.pop %v3601
        %v3634 = vtanh.pop %v3602
        %v3635 = vtanh.pop %v3603
        %v3636 = vtanh.pop %v3604
        %v3637 = vtanh.pop %v3605
        %v3638 = vtanh.pop %v3606
        %v3639 = vtanh.pop %v3607
        %v3640 = vtanh.pop %v3608
        %v3641 = vtanh.pop %v3609
        %v3642 = vtanh.pop %v3610
        %v3643 = vtanh.pop %v3611
        %v3644 = vtanh.pop %v3612
        %v3645 = vtanh.pop %v3613
        %v3646 = vtanh.pop %v3614
        %v3647 = vtanh.pop %v3615
        %v3648 = vtanh.pop %v3616
        %v3649 = vtanh.pop %v3617
        %v3650 = vtanh.pop %v3618
        %v3651 = vtanh.pop %v3619
        %v3652 = vtanh.pop %v3620
        %v3653 = vtanh.pop %v3621
        %v3654 = vtanh.pop %v3622
        %v3655 = vtanh.pop %v3623
        %v3656 = vtanh.pop %v3624
        %v3657 = vtanh.pop %v3625
        %v3658 = vtanh.pop %v3626
        %v3659 = vtanh.pop %v3627
        %v3660 = vtanh.pop %v3628
        %v3661 = vtanh.pop %v3629
        %v3662 = vtanh.pop %v3630
        %v3663 = vtanh.pop %v3631
        %v3664 = vtanh.pop %v3632
        %v3665 = vmul.f32 %v3633, 0.5
        %v3666 = vmul.f32 %v3634, 0.5
        %v3667 = vmul.f32 %v3635, 0.5
        %v3668 = vmul.f32 %v3636, 0.5
        %v3669 = vmul.f32 %v3637, 0.5
        %v3670 = vmul.f32 %v3638, 0.5
        %v3671 = vmul.f32 %v3639, 0.5
        %v3672 = vmul.f32 %v3640, 0.5
        %v3673 = vmul.f32 %v3641, 0.5
        %v3674 = vmul.f32 %v3642, 0.5
        %v3675 = vmul.f32 %v3643, 0.5
        %v3676 = vmul.f32 %v3644, 0.5
        %v3677 = vmul.f32 %v3645, 0.5
        %v3678 = vmul.f32 %v3646, 0.5
        %v3679 = vmul.f32 %v3647, 0.5
        %v3680 = vmul.f32 %v3648, 0.5
        %v3681 = vmul.f32 %v3649, 0.5
        %v3682 = vmul.f32 %v3650, 0.5
        %v3683 = vmul.f32 %v3651, 0.5
        %v3684 = vmul.f32 %v3652, 0.5
        %v3685 = vmul.f32 %v3653, 0.5
        %v3686 = vmul.f32 %v3654, 0.5
        %v3687 = vmul.f32 %v3655, 0.5
        %v3688 = vmul.f32 %v3656, 0.5
        %v3689 = vmul.f32 %v3657, 0.5
        %v3690 = vmul.f32 %v3658, 0.5
        %v3691 = vmul.f32 %v3659, 0.5
        %v3692 = vmul.f32 %v3660, 0.5
        %v3693 = vmul.f32 %v3661, 0.5
        %v3694 = vmul.f32 %v3662, 0.5
        %v3695 = vmul.f32 %v3663, 0.5
        %v3696 = vmul.f32 %v3664, 0.5
        %v3697 = vadd.f32 %v3665, 0.5
        %v3698 = vadd.f32 %v3666, 0.5
        %v3699 = vadd.f32 %v3667, 0.5
        %v3700 = vadd.f32 %v3668, 0.5
        %v3701 = vadd.f32 %v3669, 0.5
        %v3702 = vadd.f32 %v3670, 0.5
        %v3703 = vadd.f32 %v3671, 0.5
        %v3704 = vadd.f32 %v3672, 0.5
        %v3705 = vadd.f32 %v3673, 0.5
        %v3706 = vadd.f32 %v3674, 0.5
        %v3707 = vadd.f32 %v3675, 0.5
        %v3708 = vadd.f32 %v3676, 0.5
        %v3709 = vadd.f32 %v3677, 0.5
        %v3710 = vadd.f32 %v3678, 0.5
        %v3711 = vadd.f32 %v3679, 0.5
        %v3712 = vadd.f32 %v3680, 0.5
        %v3713 = vadd.f32 %v3681, 0.5
        %v3714 = vadd.f32 %v3682, 0.5
        %v3715 = vadd.f32 %v3683, 0.5
        %v3716 = vadd.f32 %v3684, 0.5
        %v3717 = vadd.f32 %v3685, 0.5
        %v3718 = vadd.f32 %v3686, 0.5
        %v3719 = vadd.f32 %v3687, 0.5
        %v3720 = vadd.f32 %v3688, 0.5
        %v3721 = vadd.f32 %v3689, 0.5
        %v3722 = vadd.f32 %v3690, 0.5
        %v3723 = vadd.f32 %v3691, 0.5
        %v3724 = vadd.f32 %v3692, 0.5
        %v3725 = vadd.f32 %v3693, 0.5
        %v3726 = vadd.f32 %v3694, 0.5
        %v3727 = vadd.f32 %v3695, 0.5
        %v3728 = vadd.f32 %v3696, 0.5
        %3729 = vst [vmem:[#allocation6] sm:$0xff] %v3697
        %3730 = vst [vmem:[#allocation6 + $0x8] sm:$0xff] %v3698
        %3731 = vst [vmem:[#allocation6 + $0x10] sm:$0xff] %v3699
        %3732 = vst [vmem:[#allocation6 + $0x18] sm:$0xff] %v3700
        %3733 = vst [vmem:[#allocation6 + $0x20] sm:$0xff] %v3701
        %3734 = vst [vmem:[#allocation6 + $0x28] sm:$0xff] %v3702
        %3735 = vst [vmem:[#allocation6 + $0x30] sm:$0xff] %v3703
        %3736 = vst [vmem:[#allocation6 + $0x38] sm:$0xff] %v3704
        %3737 = vst [vmem:[#allocation6 + $0x40] sm:$0xff] %v3705
        %3738 = vst [vmem:[#allocation6 + $0x48] sm:$0xff] %v3706
        %3739 = vst [vmem:[#allocation6 + $0x50] sm:$0xff] %v3707
        %3740 = vst [vmem:[#allocation6 + $0x58] sm:$0xff] %v3708
        %3741 = vst [vmem:[#allocation6 + $0x60] sm:$0xff] %v3709
        %3742 = vst [vmem:[#allocation6 + $0x68] sm:$0xff] %v3710
        %3743 = vst [vmem:[#allocation6 + $0x70] sm:$0xff] %v3711
        %3744 = vst [vmem:[#allocation6 + $0x78] sm:$0xff] %v3712
        %3745 = vst [vmem:[#allocation6 + $0x80] sm:$0xff] %v3713
        %3746 = vst [vmem:[#allocation6 + $0x88] sm:$0xff] %v3714
        %3747 = vst [vmem:[#allocation6 + $0x90] sm:$0xff] %v3715
        %3748 = vst [vmem:[#allocation6 + $0x98] sm:$0xff] %v3716
        %3749 = vst [vmem:[#allocation6 + $0xa0] sm:$0xff] %v3717
        %3750 = vst [vmem:[#allocation6 + $0xa8] sm:$0xff] %v3718
        %3751 = vst [vmem:[#allocation6 + $0xb0] sm:$0xff] %v3719
        %3752 = vst [vmem:[#allocation6 + $0xb8] sm:$0xff] %v3720
        %3753 = vst [vmem:[#allocation6 + $0xc0] sm:$0xff] %v3721
        %3754 = vst [vmem:[#allocation6 + $0xc8] sm:$0xff] %v3722
        %3755 = vst [vmem:[#allocation6 + $0xd0] sm:$0xff] %v3723
        %3756 = vst [vmem:[#allocation6 + $0xd8] sm:$0xff] %v3724
        %3757 = vst [vmem:[#allocation6 + $0xe0] sm:$0xff] %v3725
        %3758 = vst [vmem:[#allocation6 + $0xe8] sm:$0xff] %v3726
        %3759 = vst [vmem:[#allocation6 + $0xf0] sm:$0xff] %v3727
        %3760 = vst [vmem:[#allocation6 + $0xf8] sm:$0xff] %v3728
        %v3761 = vld [vmem:[#allocation5] sm:$0xff]
        %v3762 = vld [vmem:[#allocation5 + $0x8] sm:$0xff]
        %v3763 = vld [vmem:[#allocation5 + $0x10] sm:$0xff]
        %v3764 = vld [vmem:[#allocation5 + $0x18] sm:$0xff]
        %v3765 = vmul.f32 %v3761, 0.0
        %v3766 = vmul.f32 %v3762, 0.0
        %v3767 = vmul.f32 %v3763, 0.0
        %v3768 = vmul.f32 %v3764, 0.0
        %v3769 = vld [vmem:[#allocation4] sm:$0xff]
        %v3770 = vld [vmem:[#allocation4 + $0x8] sm:$0xff]
        %v3771 = vld [vmem:[#allocation4 + $0x10] sm:$0xff]
        %v3772 = vld [vmem:[#allocation4 + $0x18] sm:$0xff]
        %v3773 = vadd.f32 %v3765, %v3769
        %v3774 = vadd.f32 %v3766, %v3770
        %v3775 = vadd.f32 %v3767, %v3771
        %v3776 = vadd.f32 %v3768, %v3772
        %v3777 = vld [vmem:[#allocation6] sm:$0xff]
        %v3778 = vld [vmem:[#allocation6 + $0x8] sm:$0xff]
        %v3779 = vld [vmem:[#allocation6 + $0x10] sm:$0xff]
        %v3780 = vld [vmem:[#allocation6 + $0x18] sm:$0xff]
        %v3781 = vmul.f32 %v3777, %v3773
        %v3782 = vmul.f32 %v3778, %v3774
        %v3783 = vmul.f32 %v3779, %v3775
        %v3784 = vmul.f32 %v3780, %v3776
        %3785 = vst [vmem:[#allocation3] sm:$0xff] %v3781
        %3786 = vst [vmem:[#allocation3 + $0x8] sm:$0xff] %v3782
        %3787 = vst [vmem:[#allocation3 + $0x10] sm:$0xff] %v3783
        %3788 = vst [vmem:[#allocation3 + $0x18] sm:$0xff] %v3784
        %v3789 = vld [vmem:[#allocation5 + $0x20] sm:$0xff]
        %v3790 = vld [vmem:[#allocation5 + $0x28] sm:$0xff]
        %v3791 = vld [vmem:[#allocation5 + $0x30] sm:$0xff]
        %v3792 = vld [vmem:[#allocation5 + $0x38] sm:$0xff]
        %v3793 = vmul.f32 %v3789, %v3773
        %v3794 = vmul.f32 %v3790, %v3774
        %v3795 = vmul.f32 %v3791, %v3775
        %v3796 = vmul.f32 %v3792, %v3776
        %v3797 = vld [vmem:[#allocation4 + $0x20] sm:$0xff]
        %v3798 = vld [vmem:[#allocation4 + $0x28] sm:$0xff]
        %v3799 = vld [vmem:[#allocation4 + $0x30] sm:$0xff]
        %v3800 = vld [vmem:[#allocation4 + $0x38] sm:$0xff]
        %v3801 = vadd.f32 %v3793, %v3797
        %v3802 = vadd.f32 %v3794, %v3798
        %v3803 = vadd.f32 %v3795, %v3799
        %v3804 = vadd.f32 %v3796, %v3800
        %v3805 = vld [vmem:[#allocation6 + $0x20] sm:$0xff]
        %v3806 = vld [vmem:[#allocation6 + $0x28] sm:$0xff]
        %v3807 = vld [vmem:[#allocation6 + $0x30] sm:$0xff]
        %v3808 = vld [vmem:[#allocation6 + $0x38] sm:$0xff]
        %v3809 = vmul.f32 %v3805, %v3801
        %v3810 = vmul.f32 %v3806, %v3802
        %v3811 = vmul.f32 %v3807, %v3803
        %v3812 = vmul.f32 %v3808, %v3804
        %3813 = vst [vmem:[#allocation3 + $0x20] sm:$0xff] %v3809
        %3814 = vst [vmem:[#allocation3 + $0x28] sm:$0xff] %v3810
        %3815 = vst [vmem:[#allocation3 + $0x30] sm:$0xff] %v3811
        %3816 = vst [vmem:[#allocation3 + $0x38] sm:$0xff] %v3812
        %v3817 = vld [vmem:[#allocation5 + $0x40] sm:$0xff]
        %v3818 = vld [vmem:[#allocation5 + $0x48] sm:$0xff]
        %v3819 = vld [vmem:[#allocation5 + $0x50] sm:$0xff]
        %v3820 = vld [vmem:[#allocation5 + $0x58] sm:$0xff]
        %v3821 = vmul.f32 %v3817, %v3801
        %v3822 = vmul.f32 %v3818, %v3802
        %v3823 = vmul.f32 %v3819, %v3803
        %v3824 = vmul.f32 %v3820, %v3804
        %v3825 = vld [vmem:[#allocation4 + $0x40] sm:$0xff]
        %v3826 = vld [vmem:[#allocation4 + $0x48] sm:$0xff]
        %v3827 = vld [vmem:[#allocation4 + $0x50] sm:$0xff]
        %v3828 = vld [vmem:[#allocation4 + $0x58] sm:$0xff]
        %v3829 = vadd.f32 %v3821, %v3825
        %v3830 = vadd.f32 %v3822, %v3826
        %v3831 = vadd.f32 %v3823, %v3827
        %v3832 = vadd.f32 %v3824, %v3828
        %v3833 = vld [vmem:[#allocation6 + $0x40] sm:$0xff]
        %v3834 = vld [vmem:[#allocation6 + $0x48] sm:$0xff]
        %v3835 = vld [vmem:[#allocation6 + $0x50] sm:$0xff]
        %v3836 = vld [vmem:[#allocation6 + $0x58] sm:$0xff]
        %v3837 = vmul.f32 %v3833, %v3829
        %v3838 = vmul.f32 %v3834, %v3830
        %v3839 = vmul.f32 %v3835, %v3831
        %v3840 = vmul.f32 %v3836, %v3832
        %3841 = vst [vmem:[#allocation3 + $0x40] sm:$0xff] %v3837
        %3842 = vst [vmem:[#allocation3 + $0x48] sm:$0xff] %v3838
        %3843 = vst [vmem:[#allocation3 + $0x50] sm:$0xff] %v3839
        %3844 = vst [vmem:[#allocation3 + $0x58] sm:$0xff] %v3840
        %v3845 = vld [vmem:[#allocation5 + $0x60] sm:$0xff]
        %v3846 = vld [vmem:[#allocation5 + $0x68] sm:$0xff]
        %v3847 = vld [vmem:[#allocation5 + $0x70] sm:$0xff]
        %v3848 = vld [vmem:[#allocation5 + $0x78] sm:$0xff]
        %v3849 = vmul.f32 %v3845, %v3829
        %v3850 = vmul.f32 %v3846, %v3830
        %v3851 = vmul.f32 %v3847, %v3831
        %v3852 = vmul.f32 %v3848, %v3832
        %v3853 = vld [vmem:[#allocation4 + $0x60] sm:$0xff]
        %v3854 = vld [vmem:[#allocation4 + $0x68] sm:$0xff]
        %v3855 = vld [vmem:[#allocation4 + $0x70] sm:$0xff]
        %v3856 = vld [vmem:[#allocation4 + $0x78] sm:$0xff]
        %v3857 = vadd.f32 %v3849, %v3853
        %v3858 = vadd.f32 %v3850, %v3854
        %v3859 = vadd.f32 %v3851, %v3855
        %v3860 = vadd.f32 %v3852, %v3856
        %v3861 = vld [vmem:[#allocation6 + $0x60] sm:$0xff]
        %v3862 = vld [vmem:[#allocation6 + $0x68] sm:$0xff]
        %v3863 = vld [vmem:[#allocation6 + $0x70] sm:$0xff]
        %v3864 = vld [vmem:[#allocation6 + $0x78] sm:$0xff]
        %v3865 = vmul.f32 %v3861, %v3857
        %v3866 = vmul.f32 %v3862, %v3858
        %v3867 = vmul.f32 %v3863, %v3859
        %v3868 = vmul.f32 %v3864, %v3860
        %3869 = vst [vmem:[#allocation3 + $0x60] sm:$0xff] %v3865
        %3870 = vst [vmem:[#allocation3 + $0x68] sm:$0xff] %v3866
        %3871 = vst [vmem:[#allocation3 + $0x70] sm:$0xff] %v3867
        %3872 = vst [vmem:[#allocation3 + $0x78] sm:$0xff] %v3868
        %v3873 = vld [vmem:[#allocation5 + $0x80] sm:$0xff]
        %v3874 = vld [vmem:[#allocation5 + $0x88] sm:$0xff]
        %v3875 = vld [vmem:[#allocation5 + $0x90] sm:$0xff]
        %v3876 = vld [vmem:[#allocation5 + $0x98] sm:$0xff]
        %v3877 = vmul.f32 %v3873, %v3857
        %v3878 = vmul.f32 %v3874, %v3858
        %v3879 = vmul.f32 %v3875, %v3859
        %v3880 = vmul.f32 %v3876, %v3860
        %v3881 = vld [vmem:[#allocation4 + $0x80] sm:$0xff]
        %v3882 = vld [vmem:[#allocation4 + $0x88] sm:$0xff]
        %v3883 = vld [vmem:[#allocation4 + $0x90] sm:$0xff]
        %v3884 = vld [vmem:[#allocation4 + $0x98] sm:$0xff]
        %v3885 = vadd.f32 %v3877, %v3881
        %v3886 = vadd.f32 %v3878, %v3882
        %v3887 = vadd.f32 %v3879, %v3883
        %v3888 = vadd.f32 %v3880, %v3884
        %v3889 = vld [vmem:[#allocation6 + $0x80] sm:$0xff]
        %v3890 = vld [vmem:[#allocation6 + $0x88] sm:$0xff]
        %v3891 = vld [vmem:[#allocation6 + $0x90] sm:$0xff]
        %v3892 = vld [vmem:[#allocation6 + $0x98] sm:$0xff]
        %v3893 = vmul.f32 %v3889, %v3885
        %v3894 = vmul.f32 %v3890, %v3886
        %v3895 = vmul.f32 %v3891, %v3887
        %v3896 = vmul.f32 %v3892, %v3888
        %3897 = vst [vmem:[#allocation3 + $0x80] sm:$0xff] %v3893
        %3898 = vst [vmem:[#allocation3 + $0x88] sm:$0xff] %v3894
        %3899 = vst [vmem:[#allocation3 + $0x90] sm:$0xff] %v3895
        %3900 = vst [vmem:[#allocation3 + $0x98] sm:$0xff] %v3896
        %v3901 = vld [vmem:[#allocation5 + $0xa0] sm:$0xff]
        %v3902 = vld [vmem:[#allocation5 + $0xa8] sm:$0xff]
        %v3903 = vld [vmem:[#allocation5 + $0xb0] sm:$0xff]
        %v3904 = vld [vmem:[#allocation5 + $0xb8] sm:$0xff]
        %v3905 = vmul.f32 %v3901, %v3885
        %v3906 = vmul.f32 %v3902, %v3886
        %v3907 = vmul.f32 %v3903, %v3887
        %v3908 = vmul.f32 %v3904, %v3888
        %v3909 = vld [vmem:[#allocation4 + $0xa0] sm:$0xff]
        %v3910 = vld [vmem:[#allocation4 + $0xa8] sm:$0xff]
        %v3911 = vld [vmem:[#allocation4 + $0xb0] sm:$0xff]
        %v3912 = vld [vmem:[#allocation4 + $0xb8] sm:$0xff]
        %v3913 = vadd.f32 %v3905, %v3909
        %v3914 = vadd.f32 %v3906, %v3910
        %v3915 = vadd.f32 %v3907, %v3911
        %v3916 = vadd.f32 %v3908, %v3912
        %v3917 = vld [vmem:[#allocation6 + $0xa0] sm:$0xff]
        %v3918 = vld [vmem:[#allocation6 + $0xa8] sm:$0xff]
        %v3919 = vld [vmem:[#allocation6 + $0xb0] sm:$0xff]
        %v3920 = vld [vmem:[#allocation6 + $0xb8] sm:$0xff]
        %v3921 = vmul.f32 %v3917, %v3913
        %v3922 = vmul.f32 %v3918, %v3914
        %v3923 = vmul.f32 %v3919, %v3915
        %v3924 = vmul.f32 %v3920, %v3916
        %3925 = vst [vmem:[#allocation3 + $0xa0] sm:$0xff] %v3921
        %3926 = vst [vmem:[#allocation3 + $0xa8] sm:$0xff] %v3922
        %3927 = vst [vmem:[#allocation3 + $0xb0] sm:$0xff] %v3923
        %3928 = vst [vmem:[#allocation3 + $0xb8] sm:$0xff] %v3924
        %v3929 = vld [vmem:[#allocation5 + $0xc0] sm:$0xff]
        %v3930 = vld [vmem:[#allocation5 + $0xc8] sm:$0xff]
        %v3931 = vld [vmem:[#allocation5 + $0xd0] sm:$0xff]
        %v3932 = vld [vmem:[#allocation5 + $0xd8] sm:$0xff]
        %v3933 = vmul.f32 %v3929, %v3913
        %v3934 = vmul.f32 %v3930, %v3914
        %v3935 = vmul.f32 %v3931, %v3915
        %v3936 = vmul.f32 %v3932, %v3916
        %v3937 = vld [vmem:[#allocation4 + $0xc0] sm:$0xff]
        %v3938 = vld [vmem:[#allocation4 + $0xc8] sm:$0xff]
        %v3939 = vld [vmem:[#allocation4 + $0xd0] sm:$0xff]
        %v3940 = vld [vmem:[#allocation4 + $0xd8] sm:$0xff]
        %v3941 = vadd.f32 %v3933, %v3937
        %v3942 = vadd.f32 %v3934, %v3938
        %v3943 = vadd.f32 %v3935, %v3939
        %v3944 = vadd.f32 %v3936, %v3940
        %v3945 = vld [vmem:[#allocation6 + $0xc0] sm:$0xff]
        %v3946 = vld [vmem:[#allocation6 + $0xc8] sm:$0xff]
        %v3947 = vld [vmem:[#allocation6 + $0xd0] sm:$0xff]
        %v3948 = vld [vmem:[#allocation6 + $0xd8] sm:$0xff]
        %v3949 = vmul.f32 %v3945, %v3941
        %v3950 = vmul.f32 %v3946, %v3942
        %v3951 = vmul.f32 %v3947, %v3943
        %v3952 = vmul.f32 %v3948, %v3944
        %3953 = vst [vmem:[#allocation3 + $0xc0] sm:$0xff] %v3949
        %3954 = vst [vmem:[#allocation3 + $0xc8] sm:$0xff] %v3950
        %3955 = vst [vmem:[#allocation3 + $0xd0] sm:$0xff] %v3951
        %3956 = vst [vmem:[#allocation3 + $0xd8] sm:$0xff] %v3952
        %v3957 = vld [vmem:[#allocation5 + $0xe0] sm:$0xff]
        %v3958 = vld [vmem:[#allocation5 + $0xe8] sm:$0xff]
        %v3959 = vld [vmem:[#allocation5 + $0xf0] sm:$0xff]
        %v3960 = vld [vmem:[#allocation5 + $0xf8] sm:$0xff]
        %v3961 = vmul.f32 %v3957, %v3941
        %v3962 = vmul.f32 %v3958, %v3942
        %v3963 = vmul.f32 %v3959, %v3943
        %v3964 = vmul.f32 %v3960, %v3944
        %v3965 = vld [vmem:[#allocation4 + $0xe0] sm:$0xff]
        %v3966 = vld [vmem:[#allocation4 + $0xe8] sm:$0xff]
        %v3967 = vld [vmem:[#allocation4 + $0xf0] sm:$0xff]
        %v3968 = vld [vmem:[#allocation4 + $0xf8] sm:$0xff]
        %v3969 = vadd.f32 %v3961, %v3965
        %v3970 = vadd.f32 %v3962, %v3966
        %v3971 = vadd.f32 %v3963, %v3967
        %v3972 = vadd.f32 %v3964, %v3968
        %v3973 = vld [vmem:[#allocation6 + $0xe0] sm:$0xff]
        %v3974 = vld [vmem:[#allocation6 + $0xe8] sm:$0xff]
        %v3975 = vld [vmem:[#allocation6 + $0xf0] sm:$0xff]
        %v3976 = vld [vmem:[#allocation6 + $0xf8] sm:$0xff]
        %v3977 = vmul.f32 %v3973, %v3969
        %v3978 = vmul.f32 %v3974, %v3970
        %v3979 = vmul.f32 %v3975, %v3971
        %v3980 = vmul.f32 %v3976, %v3972
        %3981 = vst [vmem:[#allocation3 + $0xe0] sm:$0xff] %v3977
        %3982 = vst [vmem:[#allocation3 + $0xe8] sm:$0xff] %v3978
        %3983 = vst [vmem:[#allocation3 + $0xf0] sm:$0xff] %v3979
        %3984 = vst [vmem:[#allocation3 + $0xf8] sm:$0xff] %v3980
        %v3985 = vld [vmem:[#allocation3] sm:$0xff]
        %v3986 = vld [vmem:[#allocation3 + $0x8] sm:$0xff]
        %v3987 = vld [vmem:[#allocation3 + $0x10] sm:$0xff]
        %v3988 = vld [vmem:[#allocation3 + $0x18] sm:$0xff]
        %v3989 = vld [vmem:[#allocation3 + $0x20] sm:$0xff]
        %v3990 = vld [vmem:[#allocation3 + $0x28] sm:$0xff]
        %v3991 = vld [vmem:[#allocation3 + $0x30] sm:$0xff]
        %v3992 = vld [vmem:[#allocation3 + $0x38] sm:$0xff]
        %v3993 = vld [vmem:[#allocation3 + $0x40] sm:$0xff]
        %v3994 = vld [vmem:[#allocation3 + $0x48] sm:$0xff]
        %v3995 = vld [vmem:[#allocation3 + $0x50] sm:$0xff]
        %v3996 = vld [vmem:[#allocation3 + $0x58] sm:$0xff]
        %v3997 = vld [vmem:[#allocation3 + $0x60] sm:$0xff]
        %v3998 = vld [vmem:[#allocation3 + $0x68] sm:$0xff]
        %v3999 = vld [vmem:[#allocation3 + $0x70] sm:$0xff]
        %v4000 = vld [vmem:[#allocation3 + $0x78] sm:$0xff]
        %v4001 = vld [vmem:[#allocation3 + $0x80] sm:$0xff]
        %v4002 = vld [vmem:[#allocation3 + $0x88] sm:$0xff]
        %v4003 = vld [vmem:[#allocation3 + $0x90] sm:$0xff]
        %v4004 = vld [vmem:[#allocation3 + $0x98] sm:$0xff]
        %v4005 = vld [vmem:[#allocation3 + $0xa0] sm:$0xff]
        %v4006 = vld [vmem:[#allocation3 + $0xa8] sm:$0xff]
        %v4007 = vld [vmem:[#allocation3 + $0xb0] sm:$0xff]
        %v4008 = vld [vmem:[#allocation3 + $0xb8] sm:$0xff]
        %v4009 = vld [vmem:[#allocation3 + $0xc0] sm:$0xff]
        %v4010 = vld [vmem:[#allocation3 + $0xc8] sm:$0xff]
        %v4011 = vld [vmem:[#allocation3 + $0xd0] sm:$0xff]
        %v4012 = vld [vmem:[#allocation3 + $0xd8] sm:$0xff]
        %v4013 = vld [vmem:[#allocation3 + $0xe0] sm:$0xff]
        %v4014 = vld [vmem:[#allocation3 + $0xe8] sm:$0xff]
        %v4015 = vld [vmem:[#allocation3 + $0xf0] sm:$0xff]
        %v4016 = vld [vmem:[#allocation3 + $0xf8] sm:$0xff]
        %p4017 = scmp.lt.s32.totalorder %s22, 2
        // Predicated region
        $region69: #{net_forward.1} parent=43 // pred_check
          %p4018 = pneg %p4017
        $region70: #{net_forward.1} parent=43 // pred_check_branch
          %4020 = sbr.rel (%p4018) target = $region72
        $region71: #{net_forward.1} parent=43 // pred_region
          %v4021 = vpack.c.bf16 %v3987, %v3985
          %v4022 = vpack.c.bf16 %v3988, %v3986
          %v4023 = vpack.c.bf16 0.0, 0.0
          %v4024 = vpack.c.bf16 %v3991, %v3989
          %v4025 = vpack.c.bf16 %v3992, %v3990
          %v4026 = vpack.c.bf16 %v3995, %v3993
          %v4027 = vpack.c.bf16 %v3996, %v3994
          %v4028 = vpack.c.bf16 %v3999, %v3997
          %v4029 = vpack.c.bf16 %v4000, %v3998
          %v4030 = vpack.c.bf16 %v4003, %v4001
          %v4031 = vpack.c.bf16 %v4004, %v4002
          %v4032 = vpack.c.bf16 %v4007, %v4005
          %v4033 = vpack.c.bf16 %v4008, %v4006
          %v4034 = vpack.c.bf16 %v4011, %v4009
          %v4035 = vpack.c.bf16 %v4012, %v4010
          %v4036 = vpack.c.bf16 %v4015, %v4013
          %v4037 = vpack.c.bf16 %v4016, %v4014
          %4038 = vst [vmem:[#allocation2] sm:$0xff] %v4021
          %4039 = vst [vmem:[#allocation2 + $0x8] sm:$0xff] %v4022
          %4040 = vst [vmem:[#allocation2 + $0x10] sm:$0xff] %v4023
          %4041 = vst [vmem:[#allocation2 + $0x18] sm:$0xff] %v4023
          %4042 = vst [vmem:[#allocation2 + $0x20] sm:$0xff] %v4024
          %4043 = vst [vmem:[#allocation2 + $0x28] sm:$0xff] %v4025
          %4044 = vst [vmem:[#allocation2 + $0x30] sm:$0xff] %v4021
          %4045 = vst [vmem:[#allocation2 + $0x38] sm:$0xff] %v4022
          %4046 = vst [vmem:[#allocation2 + $0x40] sm:$0xff] %v4026
          %4047 = vst [vmem:[#allocation2 + $0x48] sm:$0xff] %v4027
          %4048 = vst [vmem:[#allocation2 + $0x50] sm:$0xff] %v4024
          %4049 = vst [vmem:[#allocation2 + $0x58] sm:$0xff] %v4025
          %4050 = vst [vmem:[#allocation2 + $0x60] sm:$0xff] %v4028
          %4051 = vst [vmem:[#allocation2 + $0x68] sm:$0xff] %v4029
          %4052 = vst [vmem:[#allocation2 + $0x70] sm:$0xff] %v4026
          %4053 = vst [vmem:[#allocation2 + $0x78] sm:$0xff] %v4027
          %4054 = vst [vmem:[#allocation2 + $0x80] sm:$0xff] %v4030
          %4055 = vst [vmem:[#allocation2 + $0x88] sm:$0xff] %v4031
          %4056 = vst [vmem:[#allocation2 + $0x90] sm:$0xff] %v4028
          %4057 = vst [vmem:[#allocation2 + $0x98] sm:$0xff] %v4029
          %4058 = vst [vmem:[#allocation2 + $0xa0] sm:$0xff] %v4032
          %4059 = vst [vmem:[#allocation2 + $0xa8] sm:$0xff] %v4033
          %4060 = vst [vmem:[#allocation2 + $0xb0] sm:$0xff] %v4030
          %4061 = vst [vmem:[#allocation2 + $0xb8] sm:$0xff] %v4031
          %4062 = vst [vmem:[#allocation2 + $0xc0] sm:$0xff] %v4034
          %4063 = vst [vmem:[#allocation2 + $0xc8] sm:$0xff] %v4035
          %4064 = vst [vmem:[#allocation2 + $0xd0] sm:$0xff] %v4032
          %4065 = vst [vmem:[#allocation2 + $0xd8] sm:$0xff] %v4033
          %4066 = vst [vmem:[#allocation2 + $0xe0] sm:$0xff] %v4036
          %4067 = vst [vmem:[#allocation2 + $0xe8] sm:$0xff] %v4037
          %4068 = vst [vmem:[#allocation2 + $0xf0] sm:$0xff] %v4034
          %4069 = vst [vmem:[#allocation2 + $0xf8] sm:$0xff] %v4035
        $region72: #{net_forward.1} parent=43 // pred_fallthru
          _
        %p4070 = scmp.eq.s32.totalorder %s22, 2
        // Predicated region
        $region73: #{net_forward.1} parent=43 // pred_check
          %p4071 = pneg %p4070
        $region74: #{net_forward.1} parent=43 // pred_check_branch
          %4073 = sbr.rel (%p4071) target = $region76
        $region75: #{net_forward.1} parent=43 // pred_region
          %v4074 = vpack.c.bf16 %v3987, %v3985
          %v4075 = vpack.c.bf16 %v3988, %v3986
          %v4076 = vpack.c.bf16 %v3991, %v3989
          %v4077 = vpack.c.bf16 %v3992, %v3990
          %v4078 = vpack.c.bf16 %v3995, %v3993
          %v4079 = vpack.c.bf16 %v3996, %v3994
          %v4080 = vpack.c.bf16 %v3999, %v3997
          %v4081 = vpack.c.bf16 %v4000, %v3998
          %v4082 = vpack.c.bf16 %v4003, %v4001
          %v4083 = vpack.c.bf16 %v4004, %v4002
          %v4084 = vpack.c.bf16 %v4007, %v4005
          %v4085 = vpack.c.bf16 %v4008, %v4006
          %v4086 = vpack.c.bf16 %v4011, %v4009
          %v4087 = vpack.c.bf16 %v4012, %v4010
          %v4088 = vpack.c.bf16 %v4015, %v4013
          %v4089 = vpack.c.bf16 %v4016, %v4014
          %v4090 = vld [vmem:[#allocation12] sm:$0xf]
          %v4091 = vld [vmem:[#allocation12 + $0x4] sm:$0xf]
          %v4092 = vld [vmem:[#allocation12 + $0x8] sm:$0xf]
          %v4093 = vld [vmem:[#allocation12 + $0xc] sm:$0xf]
          %v4094 = vld [vmem:[#allocation12 + $0x10] sm:$0xf]
          %v4095 = vld [vmem:[#allocation12 + $0x14] sm:$0xf]
          %v4096 = vld [vmem:[#allocation12 + $0x18] sm:$0xf]
          %v4097 = vld [vmem:[#allocation12 + $0x1c] sm:$0xf]
          %v4098 = vld [vmem:[#allocation12 + $0x20] sm:$0xf]
          %v4099 = vld [vmem:[#allocation12 + $0x24] sm:$0xf]
          %v4100 = vld [vmem:[#allocation12 + $0x28] sm:$0xf]
          %v4101 = vld [vmem:[#allocation12 + $0x2c] sm:$0xf]
          %v4102 = vld [vmem:[#allocation12 + $0x30] sm:$0xf]
          %v4103 = vld [vmem:[#allocation12 + $0x34] sm:$0xf]
          %v4104 = vld [vmem:[#allocation12 + $0x38] sm:$0xf]
          %v4105 = vld [vmem:[#allocation12 + $0x3c] sm:$0xf]
          %v4106 = vld [vmem:[#allocation12 + $0x40] sm:$0xf]
          %v4107 = vld [vmem:[#allocation12 + $0x44] sm:$0xf]
          %v4108 = vld [vmem:[#allocation12 + $0x48] sm:$0xf]
          %v4109 = vld [vmem:[#allocation12 + $0x4c] sm:$0xf]
          %v4110 = vld [vmem:[#allocation12 + $0x50] sm:$0xf]
          %v4111 = vld [vmem:[#allocation12 + $0x54] sm:$0xf]
          %v4112 = vld [vmem:[#allocation12 + $0x58] sm:$0xf]
          %v4113 = vld [vmem:[#allocation12 + $0x5c] sm:$0xf]
          %v4114 = vld [vmem:[#allocation12 + $0x60] sm:$0xf]
          %v4115 = vld [vmem:[#allocation12 + $0x64] sm:$0xf]
          %v4116 = vld [vmem:[#allocation12 + $0x68] sm:$0xf]
          %v4117 = vld [vmem:[#allocation12 + $0x6c] sm:$0xf]
          %v4118 = vld [vmem:[#allocation12 + $0x70] sm:$0xf]
          %v4119 = vld [vmem:[#allocation12 + $0x74] sm:$0xf]
          %v4120 = vld [vmem:[#allocation12 + $0x78] sm:$0xf]
          %v4121 = vld [vmem:[#allocation12 + $0x7c] sm:$0xf]
          %v4122 = vld [vmem:[#allocation14] sm:$0x1]
          %v4124 = vlaneseq
          %v4125 = vshrl.u32 %v4124, 7
          %v4126 = vsub.s32 0, %v4125
          %v4127 = vrot.slane %v4122, %v4126
          %v4161 = vunpack.c.l.b16 %v4090
          %v4162 = vunpack.c.l.b16 %v4091
          %v4163 = vunpack.c.l.b16 %v4092
          %v4164 = vunpack.c.l.b16 %v4093
          %v4165 = vunpack.c.l.b16 %v4094
          %v4166 = vunpack.c.l.b16 %v4095
          %v4167 = vunpack.c.l.b16 %v4096
          %v4168 = vunpack.c.l.b16 %v4097
          %v4169 = vunpack.c.l.b16 %v4098
          %v4170 = vunpack.c.l.b16 %v4099
          %v4171 = vunpack.c.l.b16 %v4100
          %v4172 = vunpack.c.l.b16 %v4101
          %v4173 = vunpack.c.l.b16 %v4102
          %v4174 = vunpack.c.l.b16 %v4103
          %v4175 = vunpack.c.l.b16 %v4104
          %v4176 = vunpack.c.l.b16 %v4105
          %v4177 = vunpack.c.l.b16 %v4106
          %v4178 = vunpack.c.l.b16 %v4107
          %v4179 = vunpack.c.l.b16 %v4108
          %v4180 = vunpack.c.l.b16 %v4109
          %v4181 = vunpack.c.l.b16 %v4110
          %v4182 = vunpack.c.l.b16 %v4111
          %v4183 = vunpack.c.l.b16 %v4112
          %v4184 = vunpack.c.l.b16 %v4113
          %v4185 = vunpack.c.l.b16 %v4114
          %v4186 = vunpack.c.l.b16 %v4115
          %v4187 = vunpack.c.l.b16 %v4116
          %v4188 = vunpack.c.l.b16 %v4117
          %v4189 = vunpack.c.l.b16 %v4118
          %v4190 = vunpack.c.l.b16 %v4119
          %v4191 = vunpack.c.l.b16 %v4120
          %v4192 = vunpack.c.l.b16 %v4121
          %v4193 = vpack.c.b16 %v4162, %v4161
          %v4194 = vpack.c.b16 %v4164, %v4163
          %v4195 = vpack.c.b16 %v4166, %v4165
          %v4196 = vpack.c.b16 %v4168, %v4167
          %v4197 = vpack.c.b16 %v4170, %v4169
          %v4198 = vpack.c.b16 %v4172, %v4171
          %v4199 = vpack.c.b16 %v4174, %v4173
          %v4200 = vpack.c.b16 %v4176, %v4175
          %v4201 = vpack.c.b16 %v4178, %v4177
          %v4202 = vpack.c.b16 %v4180, %v4179
          %v4203 = vpack.c.b16 %v4182, %v4181
          %v4204 = vpack.c.b16 %v4184, %v4183
          %v4205 = vpack.c.b16 %v4186, %v4185
          %v4206 = vpack.c.b16 %v4188, %v4187
          %v4207 = vpack.c.b16 %v4190, %v4189
          %v4208 = vpack.c.b16 %v4192, %v4191
          %4225 = vmatprep.subr.bf16.mxu0 0
          %4226 = vmatpush1.bf16.msra.mxu0 %v4193
          %4227 = vmatprep.subr.bf16.mxu0 0
          %4228 = vmatpush1.bf16.msra.mxu0 %v4194
          %4229 = vmatprep.subr.bf16.mxu0 0
          %4230 = vmatpush1.bf16.msra.mxu0 %v4195
          %4231 = vmatprep.subr.bf16.mxu0 0
          %4232 = vmatpush1.bf16.msra.mxu0 %v4196
          %4233 = vmatprep.subr.bf16.mxu0 0
          %4234 = vmatpush1.bf16.msra.mxu0 %v4197
          %4235 = vmatprep.subr.bf16.mxu0 0
          %4236 = vmatpush1.bf16.msra.mxu0 %v4198
          %4237 = vmatprep.subr.bf16.mxu0 0
          %4238 = vmatpush1.bf16.msra.mxu0 %v4199
          %4239 = vmatprep.subr.bf16.mxu0 0
          %4240 = vmatpush1.bf16.msra.mxu0 %v4200
          %4241 = vmatprep.subr.bf16.mxu0 0
          %4242 = vmatpush1.bf16.msra.mxu0 %v4201
          %4243 = vmatprep.subr.bf16.mxu0 0
          %4244 = vmatpush1.bf16.msra.mxu0 %v4202
          %4245 = vmatprep.subr.bf16.mxu0 0
          %4246 = vmatpush1.bf16.msra.mxu0 %v4203
          %4247 = vmatprep.subr.bf16.mxu0 0
          %4248 = vmatpush1.bf16.msra.mxu0 %v4204
          %4249 = vmatprep.subr.bf16.mxu0 0
          %4250 = vmatpush1.bf16.msra.mxu0 %v4205
          %4251 = vmatprep.subr.bf16.mxu0 0
          %4252 = vmatpush1.bf16.msra.mxu0 %v4206
          %4253 = vmatprep.subr.bf16.mxu0 0
          %4254 = vmatpush1.bf16.msra.mxu0 %v4207
          %4255 = vmatprep.subr.bf16.mxu0 0
          %4256 = vmatpush1.bf16.msra.mxu0 %v4208
          %4257 = vmatprep.mubr.bf16.mxu0 %v4075
          %4258 = vmatmul.mubr.bf16.gmra.mrb[0].mxu0 %v4074
          %v4259 = vpop.f32.mrb[0].mxu0
          %v4260 = vadd.f32 %v4127, %v4259
          %v4261 = vpop.f32.mrb[0].mxu0
          %v4262 = vpop.f32.mrb[0].mxu0
          %v4263 = vadd.f32 %v4127, %v4262
          %v4264 = vpop.f32.mrb[0].mxu0
          %4265 = vmatprep.mubr.bf16.mxu0 %v4077
          %4266 = vmatmul.mubr.bf16.gmra.mrb[0].mxu0 %v4076
          %v4267 = vpop.f32.mrb[0].mxu0
          %v4268 = vadd.f32 %v4127, %v4267
          %v4269 = vpop.f32.mrb[0].mxu0
          %v4270 = vpop.f32.mrb[0].mxu0
          %v4271 = vadd.f32 %v4127, %v4270
          %v4272 = vpop.f32.mrb[0].mxu0
          %4273 = vmatprep.mubr.bf16.mxu0 %v4079
          %4274 = vmatmul.mubr.bf16.gmra.mrb[0].mxu0 %v4078
          %v4275 = vpop.f32.mrb[0].mxu0
          %v4276 = vadd.f32 %v4127, %v4275
          %v4277 = vpop.f32.mrb[0].mxu0
          %v4278 = vpop.f32.mrb[0].mxu0
          %v4279 = vadd.f32 %v4127, %v4278
          %v4280 = vpop.f32.mrb[0].mxu0
          %4281 = vmatprep.mubr.bf16.mxu0 %v4081
          %4282 = vmatmul.mubr.bf16.gmra.mrb[0].mxu0 %v4080
          %v4283 = vpop.f32.mrb[0].mxu0
          %v4284 = vadd.f32 %v4127, %v4283
          %v4285 = vpop.f32.mrb[0].mxu0
          %v4286 = vpop.f32.mrb[0].mxu0
          %v4287 = vadd.f32 %v4127, %v4286
          %v4288 = vpop.f32.mrb[0].mxu0
          %4289 = vmatprep.mubr.bf16.mxu0 %v4083
          %4290 = vmatmul.mubr.bf16.gmra.mrb[0].mxu0 %v4082
          %v4291 = vpop.f32.mrb[0].mxu0
          %v4292 = vadd.f32 %v4127, %v4291
          %v4293 = vpop.f32.mrb[0].mxu0
          %v4294 = vpop.f32.mrb[0].mxu0
          %v4295 = vadd.f32 %v4127, %v4294
          %v4296 = vpop.f32.mrb[0].mxu0
          %4297 = vmatprep.mubr.bf16.mxu0 %v4085
          %4298 = vmatmul.mubr.bf16.gmra.mrb[0].mxu0 %v4084
          %v4299 = vpop.f32.mrb[0].mxu0
          %v4300 = vadd.f32 %v4127, %v4299
          %v4301 = vpop.f32.mrb[0].mxu0
          %v4302 = vpop.f32.mrb[0].mxu0
          %v4303 = vadd.f32 %v4127, %v4302
          %v4304 = vpop.f32.mrb[0].mxu0
          %4305 = vmatprep.mubr.bf16.mxu0 %v4087
          %4306 = vmatmul.mubr.bf16.gmra.mrb[0].mxu0 %v4086
          %v4307 = vpop.f32.mrb[0].mxu0
          %v4308 = vadd.f32 %v4127, %v4307
          %v4309 = vpop.f32.mrb[0].mxu0
          %v4310 = vpop.f32.mrb[0].mxu0
          %v4311 = vadd.f32 %v4127, %v4310
          %v4312 = vpop.f32.mrb[0].mxu0
          %4313 = vmatprep.mubr.bf16.mxu0 %v4089
          %4314 = vmatmul.mubr.bf16.gmra.mrb[0].mxu0 %v4088
          %v4315 = vpop.f32.mrb[0].mxu0
          %v4316 = vadd.f32 %v4127, %v4315
          %v4317 = vpop.f32.mrb[0].mxu0
          %v4318 = vpop.f32.mrb[0].mxu0
          %v4319 = vadd.f32 %v4127, %v4318
          %v4320 = vpop.f32.mrb[0].mxu0
          %4321 = vdwg.mxu0
          %4322 = vst [vmem:[%s6] sm:$0xff] %v4260
          %4323 = vst [vmem:[%s6 + $0x8] sm:$0xff] %v4263
          %4324 = vst [vmem:[%s6 + $0x10] sm:$0xff] %v4268
          %4325 = vst [vmem:[%s6 + $0x18] sm:$0xff] %v4271
          %4326 = vst [vmem:[%s6 + $0x20] sm:$0xff] %v4276
          %4327 = vst [vmem:[%s6 + $0x28] sm:$0xff] %v4279
          %4328 = vst [vmem:[%s6 + $0x30] sm:$0xff] %v4284
          %4329 = vst [vmem:[%s6 + $0x38] sm:$0xff] %v4287
          %4330 = vst [vmem:[%s6 + $0x40] sm:$0xff] %v4292
          %4331 = vst [vmem:[%s6 + $0x48] sm:$0xff] %v4295
          %4332 = vst [vmem:[%s6 + $0x50] sm:$0xff] %v4300
          %4333 = vst [vmem:[%s6 + $0x58] sm:$0xff] %v4303
          %4334 = vst [vmem:[%s6 + $0x60] sm:$0xff] %v4308
          %4335 = vst [vmem:[%s6 + $0x68] sm:$0xff] %v4311
          %4336 = vst [vmem:[%s6 + $0x70] sm:$0xff] %v4316
          %4337 = vst [vmem:[%s6 + $0x78] sm:$0xff] %v4319
        $region76: #{net_forward.1} parent=43 // pred_fallthru
          _
        // Predicated region
        $region77: #{net_forward.1} parent=43 // pred_check
          %p4338 = pneg %p171
        $region78: #{net_forward.1} parent=43 // pred_check_branch
          %4340 = sbr.rel (%p4338) target = $region80
        $region79: #{net_forward.1} parent=43 // pred_region
          _
        $region80: #{net_forward.1} parent=43 // pred_fallthru
          _
        // Predicated region
        $region81: #{net_forward.1} parent=43 // pred_check
          %p4341 = pneg %p171
        $region82: #{net_forward.1} parent=43 // pred_check_branch
          %4343 = sbr.rel (%p4341) target = $region84
        $region83: #{net_forward.1} parent=43 // pred_region
          _
        $region84: #{net_forward.1} parent=43 // pred_fallthru
          _
      $region44: #{net_forward.1} parent=5 // pred_fallthru
        _
      %p4344 = scmp.le.s32.totalorder 2, %s17
      // Predicated region
      $region85: #{net_forward.1} parent=5 // pred_check
        %p4345 = pneg %p4344
      $region86: #{net_forward.1} parent=5 // pred_check_branch
        %4347 = sbr.rel (%p4345) target = $region88
      $region87: #{net_forward.1} parent=5 // pred_region
        %s4348 = ssub.s32 %s17, 2
      $region88: #{net_forward.1} parent=5 // pred_fallthru
        _
    $region6: #{net_forward.1} parent=1 // loop_footer
      %s21 = sadd.s32 1, %s17
    $region7: #{net_forward.1} parent=1 // loop_footer_branch
      %16 = sbr.rel target = $region3
    $region8: #{net_forward.1} parent=1 // loop_exit
      _
    %4349 = vsyncpa [#allocation8], 1
    %s4350 = scalar_lea.sflag [#allocation8], 1
    %4351 = vsyncpa %s4350, 1
    %4352 = vsyncpa [#allocation10], 1
    %s4353 = scalar_lea.sflag [#allocation10], 1
    %4354 = vsyncpa %s4353, 1
    %4355 = vsyncpa [#allocation13], 1

</llo_original>
